<compile_context>
chip_gen: v7x
topology: tpu7x:2x2x1
jax: 0.10.0
libtpu: 0.0.40
codegen_flags: <defaults>
</compile_context>

<pallas_src>
import functools
import math

import jax
import jax.numpy as jnp
import numpy as np
from jax.experimental import pallas as pl
from jax.experimental.pallas import tpu as pltpu

# ---- synthetic "mini CodeBERT" config (small shapes, same structure) -------
B, S, H = 2, 8, 32          # batch, seq, hidden  (config.cb_embed == H)
NH, DH = 4, 8               # heads, head dim
NHD = NH * DH               # == H
FF = 64                     # FFN intermediate size
L = 2                       # number of encoder layers
C = 3                       # config.num_classes
CPAD = 128                  # probe output padded to one full 128-lane vreg
VOCAB = 64
PAD_ID = 1                  # RoBERTa pad token id (attention_mask = s != 1)
MAXP = S + 2                # position table size (RoBERTa offsets by pad_id)
TPAD = 128                  # combined (token|position) embedding table rows
QKVW = 128                  # 3*NHD = 96 padded to a full 128-lane vreg
EPS = 1e-5

# vector-bank row layout (see pack_params)
ROW_EG, ROW_EB, ROW_PB = 0, 1, 2
VB_BQKV, VB_BO, VB_G1, VB_BE1, VB_BF1, VB_BF2, VB_G2, VB_BE2 = range(8)
N_VEC_ROWS = 3 + 8 * L


# ---------------- small math helpers ----------------------------------------
def _ln(x, g, b):
    mu = jnp.mean(x, axis=-1, keepdims=True)
    var = jnp.mean((x - mu) ** 2, axis=-1, keepdims=True)
    return (x - mu) * jax.lax.rsqrt(var + EPS) * g + b


def _recip(x):
    # EUP approximate reciprocal + one Newton-Raphson step (~f32 accurate).
    r = pl.reciprocal(x, approx=True)
    return r * (2.0 - x * r)


def _erf(x):
    # Abramowitz & Stegun 7.1.26 polynomial, max abs error 1.5e-7 (f32-exact).
    p = 0.3275911
    a1, a2, a3, a4, a5 = (0.254829592, -0.284496736, 1.421413741,
                          -1.453152027, 1.061405429)
    sgn = jnp.where(x >= 0.0, 1.0, -1.0)
    z = jnp.abs(x)
    t = _recip(1.0 + p * z)          # divide on EUP (+Newton), frees VPU slot
    poly = ((((a5 * t + a4) * t + a3) * t + a2) * t + a1) * t
    return sgn * (1.0 - poly * jnp.exp(-z * z))


def _gelu_exact(x):
    # Exact (erf) GELU, matching HF RoBERTa's "gelu" activation.
    return 0.5 * x * (1.0 + _erf(x * (1.0 / math.sqrt(2.0))))


# ---------------- fused forward kernel --------------------------------------
def codebert_kernel(layer_sel,
                    ids_ref, bias_ref, table_ref, vecs_ref,
                    wqkv_ref, wo_ref, wf1_ref, wf2_ref, pw_ref,
                    o_ref):
    # --- in-kernel embedding lookup: one-hot (iota == id) matmul against the
    #     combined (token | position) table; token-type row is pre-folded.
    iota = jax.lax.broadcasted_iota(jnp.int32, (B * S, TPAD), 1)
    tok_oh = (iota == ids_ref[:, 0:1]).astype(jnp.float32)
    pos_oh = (iota == ids_ref[:, 1:2]).astype(jnp.float32)
    emb = jnp.dot(tok_oh + pos_oh, table_ref[...],
                  preferred_element_type=jnp.float32)          # (B*S, H)

    x = _ln(emb,
            vecs_ref[ROW_EG:ROW_EG + 1, 0:H],
            vecs_ref[ROW_EB:ROW_EB + 1, 0:H])                  # hidden_states[0]

    bias = bias_ref[...]                                        # (B, S) additive mask
    scale = 1.0 / math.sqrt(DH)

    # Statically truncated encoder stack: layers past the probed hidden state
    # are never emitted.
    for l in range(layer_sel):
        base = 3 + 8 * l

        # --- multi-head self-attention: ONE lane-dense QKV matmul ...
        qkv = (jnp.dot(x, wqkv_ref[l], preferred_element_type=jnp.float32)
               + vecs_ref[base + VB_BQKV:base + VB_BQKV + 1, :])   # (B*S, 128)

        ctx_heads = []
        for hd in range(NH):                                    # static, bounded
            o = hd * DH
            q = qkv[:, o:o + DH].reshape(B, S, DH)
            k = qkv[:, NHD + o:NHD + o + DH].reshape(B, S, DH)
            v = qkv[:, 2 * NHD + o:2 * NHD + o + DH].reshape(B, S, DH)

            sc = jnp.einsum('bqd,bkd->bqk', q, k,
                            preferred_element_type=jnp.float32) * scale
            sc = sc + bias[:, None, :]                          # mask padded keys
            sc = sc - jnp.max(sc, axis=-1, keepdims=True)
            p = jnp.exp(sc)
            p = p * _recip(jnp.sum(p, axis=-1, keepdims=True))  # EUP + Newton
            ctx = jnp.einsum('bqk,bkd->bqd', p, v,
                             preferred_element_type=jnp.float32)
            ctx_heads.append(ctx.reshape(B * S, DH))

        # ... and ONE Wo matmul on the lane-concatenated context.
        ctx_all = jnp.concatenate(ctx_heads, axis=-1)           # (B*S, NHD)
        attn = (jnp.dot(ctx_all, wo_ref[l], preferred_element_type=jnp.float32)
                + vecs_ref[base + VB_BO:base + VB_BO + 1, 0:H])

        h1 = _ln(x + attn,
                 vecs_ref[base + VB_G1:base + VB_G1 + 1, 0:H],
                 vecs_ref[base + VB_BE1:base + VB_BE1 + 1, 0:H])

        # --- feed-forward with exact (erf) GELU
        ff = _gelu_exact(jnp.dot(h1, wf1_ref[l], preferred_element_type=jnp.float32)
                         + vecs_ref[base + VB_BF1:base + VB_BF1 + 1, 0:FF])
        ff = (jnp.dot(ff, wf2_ref[l], preferred_element_type=jnp.float32)
              + vecs_ref[base + VB_BF2:base + VB_BF2 + 1, 0:H])
        x = _ln(h1 + ff,
                vecs_ref[base + VB_G2:base + VB_G2 + 1, 0:H],
                vecs_ref[base + VB_BE2:base + VB_BE2 + 1, 0:H])

    # CLS token of hidden_states[layer_sel], then lane-dense linear probe.
    cls = x.reshape(B, S, H)[:, 0, :]                           # (B, H)
    o_ref[...] = (jnp.dot(cls, pw_ref[...], preferred_element_type=jnp.float32)
                  + vecs_ref[ROW_PB:ROW_PB + 1, :])             # (B, CPAD)


def _block_all(a):
    nd = a.ndim
    return pl.BlockSpec(a.shape, lambda: (0,) * nd)             # explicit zero-arg map


# ---------------- wrapper: CodeBERT.forward(s, layer, tag) ------------------
def codebert_forward(s, layer, pk, tag=True):
    if not tag:
        # TODO(synk): tag=False path calls self.classifier which is never defined
        # in the reference module (would raise AttributeError); not implemented.
        raise NotImplementedError("tag=False path is undefined in the reference module")

    # Only the tiny (B,S) int mask / position-id / bias math stays in the
    # wrapper; the gather + adds happen inside the kernel.
    mask = (s != PAD_ID)                                         # attention_mask = s.ne(1)
    mask_i = mask.astype(jnp.int32)
    pos_ids = jnp.cumsum(mask_i, axis=1) * mask_i + PAD_ID       # RoBERTa position ids
    ids = jnp.stack([s.reshape(B * S),
                     (pos_ids + VOCAB).reshape(B * S)], axis=1).astype(jnp.int32)
    attn_bias = jnp.where(mask, 0.0, -1e9).astype(jnp.float32)   # (B, S)

    args = (ids, attn_bias, pk['table'], pk['vecs'],
            pk['wqkv'], pk['wo'], pk['wf1'], pk['wf2'], pk['pw'])

    out = pl.pallas_call(
        functools.partial(codebert_kernel, layer),
        out_shape=jax.ShapeDtypeStruct((B, CPAD), jnp.float32),
        in_specs=[_block_all(a) for a in args],
        out_specs=pl.BlockSpec((B, CPAD), lambda: (0, 0)),
        compiler_params=pltpu.CompilerParams(vmem_limit_bytes=8 * 1024 * 1024),
    )(*args)
    return out[:, :C]                                            # drop lane padding


# ---------------- parameter init (deterministic, synthetic) -----------------
def init_params(key):
    keys = iter(jax.random.split(key, 256))

    def rnd(shape, scale=0.02):
        return (scale * jax.random.normal(next(keys), shape)).astype(jnp.float32)

    params = {
        'tok_emb': rnd((VOCAB, H)),
        'pos_emb': rnd((MAXP, H)),
        'type_emb': rnd((1, H)),
        'emb_ln_g': jnp.ones((1, H), jnp.float32),
        'emb_ln_b': jnp.zeros((1, H), jnp.float32),
        'prob_w': rnd((H, C)),
        'prob_b': jnp.zeros((1, C), jnp.float32),
        'layers': [],
    }
    for _ in range(L):
        params['layers'].append({
            'wq': rnd((H, H)), 'bq': jnp.zeros((1, H), jnp.float32),
            'wk': rnd((H, H)), 'bk': jnp.zeros((1, H), jnp.float32),
            'wv': rnd((H, H)), 'bv': jnp.zeros((1, H), jnp.float32),
            'wo': rnd((H, H)), 'bo': jnp.zeros((1, H), jnp.float32),
            'g1': jnp.ones((1, H), jnp.float32), 'be1': jnp.zeros((1, H), jnp.float32),
            'wf1': rnd((H, FF)), 'bf1': jnp.zeros((1, FF), jnp.float32),
            'wf2': rnd((FF, H)), 'bf2': jnp.zeros((1, H), jnp.float32),
            'g2': jnp.ones((1, H), jnp.float32), 'be2': jnp.zeros((1, H), jnp.float32),
        })
    return params


def pack_params(p):
    """Pack PyTorch-style params into the coalesced kernel layout:
       one embedding table, one (19,128) vector bank, stacked lane-dense
       QKV / Wo / FFN weight slabs, and a lane-padded probe matrix."""
    # combined embedding table: token rows (token-type folded in), then positions
    table = jnp.zeros((TPAD, H), jnp.float32)
    table = table.at[:VOCAB].set(p['tok_emb'] + p['type_emb'][0])
    table = table.at[VOCAB:VOCAB + MAXP].set(p['pos_emb'])

    vecs = jnp.zeros((N_VEC_ROWS, 128), jnp.float32)
    vecs = vecs.at[ROW_EG, :H].set(p['emb_ln_g'][0])
    vecs = vecs.at[ROW_EB, :H].set(p['emb_ln_b'][0])
    vecs = vecs.at[ROW_PB, :C].set(p['prob_b'][0])

    wqkv, wo, wf1, wf2 = [], [], [], []
    for l, lp in enumerate(p['layers']):
        base = 3 + 8 * l
        bqkv = jnp.concatenate([lp['bq'][0], lp['bk'][0], lp['bv'][0]])     # (96,)
        vecs = vecs.at[base + VB_BQKV, :3 * NHD].set(bqkv)
        vecs = vecs.at[base + VB_BO, :H].set(lp['bo'][0])
        vecs = vecs.at[base + VB_G1, :H].set(lp['g1'][0])
        vecs = vecs.at[base + VB_BE1, :H].set(lp['be1'][0])
        vecs = vecs.at[base + VB_BF1, :FF].set(lp['bf1'][0])
        vecs = vecs.at[base + VB_BF2, :H].set(lp['bf2'][0])
        vecs = vecs.at[base + VB_G2, :H].set(lp['g2'][0])
        vecs = vecs.at[base + VB_BE2, :H].set(lp['be2'][0])

        wqkv_l = jnp.zeros((H, QKVW), jnp.float32).at[:, :3 * NHD].set(
            jnp.concatenate([lp['wq'], lp['wk'], lp['wv']], axis=1))
        wqkv.append(wqkv_l)
        wo.append(lp['wo'])            # rows already head-major (matches concat)
        wf1.append(lp['wf1'])
        wf2.append(lp['wf2'])

    pw = jnp.zeros((H, CPAD), jnp.float32).at[:, :C].set(p['prob_w'])
    return {
        'table': table, 'vecs': vecs,
        'wqkv': jnp.stack(wqkv), 'wo': jnp.stack(wo),
        'wf1': jnp.stack(wf1), 'wf2': jnp.stack(wf2), 'pw': pw,
    }


# ---------------- pure-JAX reference (exact softmax division, erf GELU) -----
def ref_forward(s, layer, params):
    mask = (s != PAD_ID)
    mask_i = mask.astype(jnp.int32)
    pos_ids = jnp.cumsum(mask_i, axis=1) * mask_i + PAD_ID
    emb = (params['tok_emb'][s] + params['pos_emb'][pos_ids]
           + params['type_emb'][0]).astype(jnp.float32)
    h = _ln(emb, params['emb_ln_g'], params['emb_ln_b'])
    hidden = [h]
    bias = jnp.where(mask, 0.0, -1e9)[:, None, None, :].astype(jnp.float32)
    for lp in params['layers']:
        q = (h @ lp['wq'] + lp['bq']).reshape(B, S, NH, DH).transpose(0, 2, 1, 3)
        k = (h @ lp['wk'] + lp['bk']).reshape(B, S, NH, DH).transpose(0, 2, 1, 3)
        v = (h @ lp['wv'] + lp['bv']).reshape(B, S, NH, DH).transpose(0, 2, 1, 3)
        sc = (q @ k.transpose(0, 1, 3, 2)) / math.sqrt(DH) + bias
        p = jax.nn.softmax(sc, axis=-1)
        ctx = (p @ v).transpose(0, 2, 1, 3).reshape(B, S, H)
        attn = ctx @ lp['wo'] + lp['bo']
        h1 = _ln(h + attn, lp['g1'], lp['be1'])
        ff = jax.nn.gelu(h1 @ lp['wf1'] + lp['bf1'], approximate=False)
        ff = ff @ lp['wf2'] + lp['bf2']
        h = _ln(h1 + ff, lp['g2'], lp['be2'])
        hidden.append(h)
    cls = hidden[layer][:, 0, :]
    return cls @ params['prob_w'] + params['prob_b']


if __name__ == "__main__":
    key = jax.random.PRNGKey(0)
    k_tok, k_par = jax.random.split(key)

    s = jax.random.randint(k_tok, (B, S), 2, VOCAB, dtype=jnp.int32)
    s = s.at[1, S - 2:].set(PAD_ID)      # add some padding tokens to example 1

    params = init_params(k_par)
    packed = pack_params(params)

    fwd = jax.jit(codebert_forward, static_argnames=("layer", "tag"))
    out = fwd(s, layer=L, pk=packed, tag=True)          # probe last hidden layer
    jax.block_until_ready(out)
    assert out.shape == (B, C)

    # Correctness gate vs highest-precision pure-JAX reference.  The in-kernel
    # reciprocals are Newton-refined (error ~1e-7), so the gate is much tighter
    # than before; remaining tolerance covers matmul accumulation differences.
    with jax.default_matmul_precision("highest"):
        ref = ref_forward(s, L, params)
    np.testing.assert_allclose(np.asarray(out), np.asarray(ref),
                               rtol=2e-3, atol=2e-4)

    print("KERNEL_OK")
</pallas_src>

<mosaic_0001>
module attributes {stable_mosaic.version = 11 : i64} {
  func.func @codebert_kernel(%arg0: memref<16x2xi32, #tpu.memory_space<vmem>>, %arg1: memref<2x8xf32, #tpu.memory_space<vmem>>, %arg2: memref<128x32xf32, #tpu.memory_space<vmem>>, %arg3: memref<19x128xf32, #tpu.memory_space<vmem>>, %arg4: memref<2x32x128xf32, #tpu.memory_space<vmem>>, %arg5: memref<2x32x32xf32, #tpu.memory_space<vmem>>, %arg6: memref<2x32x64xf32, #tpu.memory_space<vmem>>, %arg7: memref<2x64x32xf32, #tpu.memory_space<vmem>>, %arg8: memref<32x128xf32, #tpu.memory_space<vmem>>, %arg9: memref<2x128xf32, #tpu.memory_space<vmem>>) attributes {dimension_semantics = [], scalar_prefetch = 0 : i64, scratch_operands = 0 : i64, tpu.core_type = #tpu.core_type<tc>} {
    %0 = tpu.iota {dimensions = array<i32: 1>} : vector<16x128xi32>
    %c0 = arith.constant 0 : index
    %c0_0 = arith.constant 0 : index
    %1 = vector.load %arg0[%c0, %c0_0] : memref<16x2xi32, #tpu.memory_space<vmem>>, vector<16x1xi32>
    %2 = vector.broadcast %1 : vector<16x1xi32> to vector<16x128xi32>
    %3 = arith.cmpi eq, %0, %2 : vector<16x128xi32>
    %4 = arith.extui %3 : vector<16x128xi1> to vector<16x128xi32>
    %5 = arith.sitofp %4 : vector<16x128xi32> to vector<16x128xf32>
    %c0_1 = arith.constant 0 : index
    %c1 = arith.constant 1 : index
    %6 = vector.load %arg0[%c0_1, %c1] : memref<16x2xi32, #tpu.memory_space<vmem>>, vector<16x1xi32>
    %7 = vector.broadcast %6 : vector<16x1xi32> to vector<16x128xi32>
    %8 = arith.cmpi eq, %0, %7 : vector<16x128xi32>
    %9 = arith.extui %8 : vector<16x128xi1> to vector<16x128xi32>
    %10 = arith.sitofp %9 : vector<16x128xi32> to vector<16x128xf32>
    %11 = arith.addf %5, %10 : vector<16x128xf32>
    %c0_2 = arith.constant 0 : index
    %c0_3 = arith.constant 0 : index
    %12 = vector.load %arg2[%c0_2, %c0_3] : memref<128x32xf32, #tpu.memory_space<vmem>>, vector<128x32xf32>
    %cst = arith.constant dense<0.000000e+00> : vector<16x32xf32>
    %13 = tpu.matmul %11, %12, %cst {dimension_numbers = #tpu.dot_dimension_numbers<[1], [0], [0], [1], [0, 0, 1, 1], [], []>} : vector<16x128xf32>, vector<128x32xf32>, vector<16x32xf32> -> vector<16x32xf32>
    %c0_4 = arith.constant 0 : index
    %c0_5 = arith.constant 0 : index
    %14 = vector.load %arg3[%c0_4, %c0_5] : memref<19x128xf32, #tpu.memory_space<vmem>>, vector<1x32xf32>
    %c1_6 = arith.constant 1 : index
    %c0_7 = arith.constant 0 : index
    %15 = vector.load %arg3[%c1_6, %c0_7] : memref<19x128xf32, #tpu.memory_space<vmem>>, vector<1x32xf32>
    %cst_8 = arith.constant dense<0.000000e+00> : vector<16xf32>
    %16 = vector.multi_reduction <add>, %13, %cst_8 [1] : vector<16x32xf32> to vector<16xf32>
    %17 = vector.shape_cast %16 : vector<16xf32> to vector<16x1xf32>
    %cst_9 = arith.constant 3.200000e+01 : f32
    %18 = vector.broadcast %cst_9 : f32 to vector<16x1xf32>
    %19 = arith.divf %17, %18 : vector<16x1xf32>
    %20 = vector.broadcast %19 : vector<16x1xf32> to vector<16x32xf32>
    %21 = arith.subf %13, %20 : vector<16x32xf32>
    %22 = arith.mulf %21, %21 : vector<16x32xf32>
    %cst_10 = arith.constant dense<0.000000e+00> : vector<16xf32>
    %23 = vector.multi_reduction <add>, %22, %cst_10 [1] : vector<16x32xf32> to vector<16xf32>
    %24 = vector.shape_cast %23 : vector<16xf32> to vector<16x1xf32>
    %cst_11 = arith.constant 3.200000e+01 : f32
    %25 = vector.broadcast %cst_11 : f32 to vector<16x1xf32>
    %26 = arith.divf %24, %25 : vector<16x1xf32>
    %27 = vector.broadcast %19 : vector<16x1xf32> to vector<16x32xf32>
    %28 = arith.subf %13, %27 : vector<16x32xf32>
    %cst_12 = arith.constant 9.99999974E-6 : f32
    %29 = vector.broadcast %cst_12 : f32 to vector<16x1xf32>
    %30 = arith.addf %26, %29 : vector<16x1xf32>
    %31 = math.rsqrt %30 : vector<16x1xf32>
    %32 = vector.broadcast %31 : vector<16x1xf32> to vector<16x32xf32>
    %33 = arith.mulf %28, %32 : vector<16x32xf32>
    %34 = vector.broadcast %14 : vector<1x32xf32> to vector<16x32xf32>
    %35 = arith.mulf %33, %34 : vector<16x32xf32>
    %36 = vector.broadcast %15 : vector<1x32xf32> to vector<16x32xf32>
    %37 = arith.addf %35, %36 : vector<16x32xf32>
    %c0_13 = arith.constant 0 : index
    %c0_14 = arith.constant 0 : index
    %38 = vector.load %arg1[%c0_13, %c0_14] : memref<2x8xf32, #tpu.memory_space<vmem>>, vector<2x8xf32>
    %c0_15 = arith.constant 0 : index
    %c0_16 = arith.constant 0 : index
    %c0_17 = arith.constant 0 : index
    %39 = vector.load %arg4[%c0_15, %c0_16, %c0_17] : memref<2x32x128xf32, #tpu.memory_space<vmem>>, vector<1x32x128xf32>
    %40 = vector.shape_cast %39 : vector<1x32x128xf32> to vector<32x128xf32>
    %cst_18 = arith.constant dense<0.000000e+00> : vector<16x128xf32>
    %41 = tpu.matmul %37, %40, %cst_18 {dimension_numbers = #tpu.dot_dimension_numbers<[1], [0], [0], [1], [0, 0, 1, 1], [], []>} : vector<16x32xf32>, vector<32x128xf32>, vector<16x128xf32> -> vector<16x128xf32>
    %c3 = arith.constant 3 : index
    %c0_19 = arith.constant 0 : index
    %42 = vector.load %arg3[%c3, %c0_19] : memref<19x128xf32, #tpu.memory_space<vmem>>, vector<1x128xf32>
    %43 = vector.broadcast %42 : vector<1x128xf32> to vector<16x128xf32>
    %44 = arith.addf %41, %43 : vector<16x128xf32>
    %45 = vector.extract_strided_slice %44 {offsets = [0, 0], sizes = [16, 8], strides = [1, 1]} : vector<16x128xf32> to vector<16x8xf32>
    %46 = vector.shape_cast %45 : vector<16x8xf32> to vector<2x8x8xf32>
    %47 = vector.extract_strided_slice %44 {offsets = [0, 32], sizes = [16, 8], strides = [1, 1]} : vector<16x128xf32> to vector<16x8xf32>
    %48 = vector.shape_cast %47 : vector<16x8xf32> to vector<2x8x8xf32>
    %49 = vector.extract_strided_slice %44 {offsets = [0, 64], sizes = [16, 8], strides = [1, 1]} : vector<16x128xf32> to vector<16x8xf32>
    %50 = vector.shape_cast %49 : vector<16x8xf32> to vector<2x8x8xf32>
    "tpu.trace_start"() <{level = 10 : i32, message = "bqd,bkd->bqk"}> : () -> ()
    %cst_20 = arith.constant dense<0.000000e+00> : vector<2x8x8xf32>
    %51 = tpu.matmul %46, %48, %cst_20 {dimension_numbers = #tpu.dot_dimension_numbers<[2], [2], [1], [1], [0, 0, 0, 1, 1, 1], [0], [0]>} : vector<2x8x8xf32>, vector<2x8x8xf32>, vector<2x8x8xf32> -> vector<2x8x8xf32>
    "tpu.trace_stop"() : () -> ()
    %cst_21 = arith.constant 0.353553385 : f32
    %52 = vector.broadcast %cst_21 : f32 to vector<2x8x8xf32>
    %53 = arith.mulf %51, %52 : vector<2x8x8xf32>
    %54 = vector.shape_cast %38 : vector<2x8xf32> to vector<2x1x8xf32>
    %55 = vector.broadcast %54 : vector<2x1x8xf32> to vector<2x8x8xf32>
    %56 = arith.addf %53, %55 : vector<2x8x8xf32>
    %cst_22 = arith.constant dense<0xFF800000> : vector<2x8xf32>
    %57 = vector.multi_reduction <maximumf>, %56, %cst_22 [2] : vector<2x8x8xf32> to vector<2x8xf32>
    %58 = vector.shape_cast %57 : vector<2x8xf32> to vector<2x8x1xf32>
    %59 = vector.broadcast %58 : vector<2x8x1xf32> to vector<2x8x8xf32>
    %60 = arith.subf %56, %59 : vector<2x8x8xf32>
    %61 = math.exp %60 : vector<2x8x8xf32>
    %cst_23 = arith.constant dense<0.000000e+00> : vector<2x8xf32>
    %62 = vector.multi_reduction <add>, %61, %cst_23 [2] : vector<2x8x8xf32> to vector<2x8xf32>
    %63 = vector.shape_cast %62 : vector<2x8xf32> to vector<2x8x1xf32>
    %64 = tpu.reciprocal %63 {approx = true} : vector<2x8x1xf32> -> vector<2x8x1xf32>
    %65 = arith.mulf %63, %64 : vector<2x8x1xf32>
    %cst_24 = arith.constant 2.000000e+00 : f32
    %66 = vector.broadcast %cst_24 : f32 to vector<2x8x1xf32>
    %67 = arith.subf %66, %65 : vector<2x8x1xf32>
    %68 = arith.mulf %64, %67 : vector<2x8x1xf32>
    %69 = vector.broadcast %68 : vector<2x8x1xf32> to vector<2x8x8xf32>
    %70 = arith.mulf %61, %69 : vector<2x8x8xf32>
    "tpu.trace_start"() <{level = 10 : i32, message = "bqk,bkd->bqd"}> : () -> ()
    %cst_25 = arith.constant dense<0.000000e+00> : vector<2x8x8xf32>
    %71 = tpu.matmul %70, %50, %cst_25 {dimension_numbers = #tpu.dot_dimension_numbers<[2], [1], [1], [2], [0, 0, 0, 1, 1, 2], [0], [0]>} : vector<2x8x8xf32>, vector<2x8x8xf32>, vector<2x8x8xf32> -> vector<2x8x8xf32>
    "tpu.trace_stop"() : () -> ()
    %72 = vector.shape_cast %71 : vector<2x8x8xf32> to vector<16x8xf32>
    %73 = vector.extract_strided_slice %44 {offsets = [0, 8], sizes = [16, 8], strides = [1, 1]} : vector<16x128xf32> to vector<16x8xf32>
    %74 = vector.shape_cast %73 : vector<16x8xf32> to vector<2x8x8xf32>
    %75 = vector.extract_strided_slice %44 {offsets = [0, 40], sizes = [16, 8], strides = [1, 1]} : vector<16x128xf32> to vector<16x8xf32>
    %76 = vector.shape_cast %75 : vector<16x8xf32> to vector<2x8x8xf32>
    %77 = vector.extract_strided_slice %44 {offsets = [0, 72], sizes = [16, 8], strides = [1, 1]} : vector<16x128xf32> to vector<16x8xf32>
    %78 = vector.shape_cast %77 : vector<16x8xf32> to vector<2x8x8xf32>
    "tpu.trace_start"() <{level = 10 : i32, message = "bqd,bkd->bqk"}> : () -> ()
    %cst_26 = arith.constant dense<0.000000e+00> : vector<2x8x8xf32>
    %79 = tpu.matmul %74, %76, %cst_26 {dimension_numbers = #tpu.dot_dimension_numbers<[2], [2], [1], [1], [0, 0, 0, 1, 1, 1], [0], [0]>} : vector<2x8x8xf32>, vector<2x8x8xf32>, vector<2x8x8xf32> -> vector<2x8x8xf32>
    "tpu.trace_stop"() : () -> ()
    %cst_27 = arith.constant 0.353553385 : f32
    %80 = vector.broadcast %cst_27 : f32 to vector<2x8x8xf32>
    %81 = arith.mulf %79, %80 : vector<2x8x8xf32>
    %82 = vector.shape_cast %38 : vector<2x8xf32> to vector<2x1x8xf32>
    %83 = vector.broadcast %82 : vector<2x1x8xf32> to vector<2x8x8xf32>
    %84 = arith.addf %81, %83 : vector<2x8x8xf32>
    %cst_28 = arith.constant dense<0xFF800000> : vector<2x8xf32>
    %85 = vector.multi_reduction <maximumf>, %84, %cst_28 [2] : vector<2x8x8xf32> to vector<2x8xf32>
    %86 = vector.shape_cast %85 : vector<2x8xf32> to vector<2x8x1xf32>
    %87 = vector.broadcast %86 : vector<2x8x1xf32> to vector<2x8x8xf32>
    %88 = arith.subf %84, %87 : vector<2x8x8xf32>
    %89 = math.exp %88 : vector<2x8x8xf32>
    %cst_29 = arith.constant dense<0.000000e+00> : vector<2x8xf32>
    %90 = vector.multi_reduction <add>, %89, %cst_29 [2] : vector<2x8x8xf32> to vector<2x8xf32>
    %91 = vector.shape_cast %90 : vector<2x8xf32> to vector<2x8x1xf32>
    %92 = tpu.reciprocal %91 {approx = true} : vector<2x8x1xf32> -> vector<2x8x1xf32>
    %93 = arith.mulf %91, %92 : vector<2x8x1xf32>
    %cst_30 = arith.constant 2.000000e+00 : f32
    %94 = vector.broadcast %cst_30 : f32 to vector<2x8x1xf32>
    %95 = arith.subf %94, %93 : vector<2x8x1xf32>
    %96 = arith.mulf %92, %95 : vector<2x8x1xf32>
    %97 = vector.broadcast %96 : vector<2x8x1xf32> to vector<2x8x8xf32>
    %98 = arith.mulf %89, %97 : vector<2x8x8xf32>
    "tpu.trace_start"() <{level = 10 : i32, message = "bqk,bkd->bqd"}> : () -> ()
    %cst_31 = arith.constant dense<0.000000e+00> : vector<2x8x8xf32>
    %99 = tpu.matmul %98, %78, %cst_31 {dimension_numbers = #tpu.dot_dimension_numbers<[2], [1], [1], [2], [0, 0, 0, 1, 1, 2], [0], [0]>} : vector<2x8x8xf32>, vector<2x8x8xf32>, vector<2x8x8xf32> -> vector<2x8x8xf32>
    "tpu.trace_stop"() : () -> ()
    %100 = vector.shape_cast %99 : vector<2x8x8xf32> to vector<16x8xf32>
    %101 = vector.extract_strided_slice %44 {offsets = [0, 16], sizes = [16, 8], strides = [1, 1]} : vector<16x128xf32> to vector<16x8xf32>
    %102 = vector.shape_cast %101 : vector<16x8xf32> to vector<2x8x8xf32>
    %103 = vector.extract_strided_slice %44 {offsets = [0, 48], sizes = [16, 8], strides = [1, 1]} : vector<16x128xf32> to vector<16x8xf32>
    %104 = vector.shape_cast %103 : vector<16x8xf32> to vector<2x8x8xf32>
    %105 = vector.extract_strided_slice %44 {offsets = [0, 80], sizes = [16, 8], strides = [1, 1]} : vector<16x128xf32> to vector<16x8xf32>
    %106 = vector.shape_cast %105 : vector<16x8xf32> to vector<2x8x8xf32>
    "tpu.trace_start"() <{level = 10 : i32, message = "bqd,bkd->bqk"}> : () -> ()
    %cst_32 = arith.constant dense<0.000000e+00> : vector<2x8x8xf32>
    %107 = tpu.matmul %102, %104, %cst_32 {dimension_numbers = #tpu.dot_dimension_numbers<[2], [2], [1], [1], [0, 0, 0, 1, 1, 1], [0], [0]>} : vector<2x8x8xf32>, vector<2x8x8xf32>, vector<2x8x8xf32> -> vector<2x8x8xf32>
    "tpu.trace_stop"() : () -> ()
    %cst_33 = arith.constant 0.353553385 : f32
    %108 = vector.broadcast %cst_33 : f32 to vector<2x8x8xf32>
    %109 = arith.mulf %107, %108 : vector<2x8x8xf32>
    %110 = vector.shape_cast %38 : vector<2x8xf32> to vector<2x1x8xf32>
    %111 = vector.broadcast %110 : vector<2x1x8xf32> to vector<2x8x8xf32>
    %112 = arith.addf %109, %111 : vector<2x8x8xf32>
    %cst_34 = arith.constant dense<0xFF800000> : vector<2x8xf32>
    %113 = vector.multi_reduction <maximumf>, %112, %cst_34 [2] : vector<2x8x8xf32> to vector<2x8xf32>
    %114 = vector.shape_cast %113 : vector<2x8xf32> to vector<2x8x1xf32>
    %115 = vector.broadcast %114 : vector<2x8x1xf32> to vector<2x8x8xf32>
    %116 = arith.subf %112, %115 : vector<2x8x8xf32>
    %117 = math.exp %116 : vector<2x8x8xf32>
    %cst_35 = arith.constant dense<0.000000e+00> : vector<2x8xf32>
    %118 = vector.multi_reduction <add>, %117, %cst_35 [2] : vector<2x8x8xf32> to vector<2x8xf32>
    %119 = vector.shape_cast %118 : vector<2x8xf32> to vector<2x8x1xf32>
    %120 = tpu.reciprocal %119 {approx = true} : vector<2x8x1xf32> -> vector<2x8x1xf32>
    %121 = arith.mulf %119, %120 : vector<2x8x1xf32>
    %cst_36 = arith.constant 2.000000e+00 : f32
    %122 = vector.broadcast %cst_36 : f32 to vector<2x8x1xf32>
    %123 = arith.subf %122, %121 : vector<2x8x1xf32>
    %124 = arith.mulf %120, %123 : vector<2x8x1xf32>
    %125 = vector.broadcast %124 : vector<2x8x1xf32> to vector<2x8x8xf32>
    %126 = arith.mulf %117, %125 : vector<2x8x8xf32>
    "tpu.trace_start"() <{level = 10 : i32, message = "bqk,bkd->bqd"}> : () -> ()
    %cst_37 = arith.constant dense<0.000000e+00> : vector<2x8x8xf32>
    %127 = tpu.matmul %126, %106, %cst_37 {dimension_numbers = #tpu.dot_dimension_numbers<[2], [1], [1], [2], [0, 0, 0, 1, 1, 2], [0], [0]>} : vector<2x8x8xf32>, vector<2x8x8xf32>, vector<2x8x8xf32> -> vector<2x8x8xf32>
    "tpu.trace_stop"() : () -> ()
    %128 = vector.shape_cast %127 : vector<2x8x8xf32> to vector<16x8xf32>
    %129 = vector.extract_strided_slice %44 {offsets = [0, 24], sizes = [16, 8], strides = [1, 1]} : vector<16x128xf32> to vector<16x8xf32>
    %130 = vector.shape_cast %129 : vector<16x8xf32> to vector<2x8x8xf32>
    %131 = vector.extract_strided_slice %44 {offsets = [0, 56], sizes = [16, 8], strides = [1, 1]} : vector<16x128xf32> to vector<16x8xf32>
    %132 = vector.shape_cast %131 : vector<16x8xf32> to vector<2x8x8xf32>
    %133 = vector.extract_strided_slice %44 {offsets = [0, 88], sizes = [16, 8], strides = [1, 1]} : vector<16x128xf32> to vector<16x8xf32>
    %134 = vector.shape_cast %133 : vector<16x8xf32> to vector<2x8x8xf32>
    "tpu.trace_start"() <{level = 10 : i32, message = "bqd,bkd->bqk"}> : () -> ()
    %cst_38 = arith.constant dense<0.000000e+00> : vector<2x8x8xf32>
    %135 = tpu.matmul %130, %132, %cst_38 {dimension_numbers = #tpu.dot_dimension_numbers<[2], [2], [1], [1], [0, 0, 0, 1, 1, 1], [0], [0]>} : vector<2x8x8xf32>, vector<2x8x8xf32>, vector<2x8x8xf32> -> vector<2x8x8xf32>
    "tpu.trace_stop"() : () -> ()
    %cst_39 = arith.constant 0.353553385 : f32
    %136 = vector.broadcast %cst_39 : f32 to vector<2x8x8xf32>
    %137 = arith.mulf %135, %136 : vector<2x8x8xf32>
    %138 = vector.shape_cast %38 : vector<2x8xf32> to vector<2x1x8xf32>
    %139 = vector.broadcast %138 : vector<2x1x8xf32> to vector<2x8x8xf32>
    %140 = arith.addf %137, %139 : vector<2x8x8xf32>
    %cst_40 = arith.constant dense<0xFF800000> : vector<2x8xf32>
    %141 = vector.multi_reduction <maximumf>, %140, %cst_40 [2] : vector<2x8x8xf32> to vector<2x8xf32>
    %142 = vector.shape_cast %141 : vector<2x8xf32> to vector<2x8x1xf32>
    %143 = vector.broadcast %142 : vector<2x8x1xf32> to vector<2x8x8xf32>
    %144 = arith.subf %140, %143 : vector<2x8x8xf32>
    %145 = math.exp %144 : vector<2x8x8xf32>
    %cst_41 = arith.constant dense<0.000000e+00> : vector<2x8xf32>
    %146 = vector.multi_reduction <add>, %145, %cst_41 [2] : vector<2x8x8xf32> to vector<2x8xf32>
    %147 = vector.shape_cast %146 : vector<2x8xf32> to vector<2x8x1xf32>
    %148 = tpu.reciprocal %147 {approx = true} : vector<2x8x1xf32> -> vector<2x8x1xf32>
    %149 = arith.mulf %147, %148 : vector<2x8x1xf32>
    %cst_42 = arith.constant 2.000000e+00 : f32
    %150 = vector.broadcast %cst_42 : f32 to vector<2x8x1xf32>
    %151 = arith.subf %150, %149 : vector<2x8x1xf32>
    %152 = arith.mulf %148, %151 : vector<2x8x1xf32>
    %153 = vector.broadcast %152 : vector<2x8x1xf32> to vector<2x8x8xf32>
    %154 = arith.mulf %145, %153 : vector<2x8x8xf32>
    "tpu.trace_start"() <{level = 10 : i32, message = "bqk,bkd->bqd"}> : () -> ()
    %cst_43 = arith.constant dense<0.000000e+00> : vector<2x8x8xf32>
    %155 = tpu.matmul %154, %134, %cst_43 {dimension_numbers = #tpu.dot_dimension_numbers<[2], [1], [1], [2], [0, 0, 0, 1, 1, 2], [0], [0]>} : vector<2x8x8xf32>, vector<2x8x8xf32>, vector<2x8x8xf32> -> vector<2x8x8xf32>
    "tpu.trace_stop"() : () -> ()
    %156 = vector.shape_cast %155 : vector<2x8x8xf32> to vector<16x8xf32>
    %157 = tpu.concatenate %72, %100, %128, %156 in 1 : vector<16x8xf32>, vector<16x8xf32>, vector<16x8xf32>, vector<16x8xf32> -> vector<16x32xf32>
    %c0_44 = arith.constant 0 : index
    %c0_45 = arith.constant 0 : index
    %c0_46 = arith.constant 0 : index
    %158 = vector.load %arg5[%c0_44, %c0_45, %c0_46] : memref<2x32x32xf32, #tpu.memory_space<vmem>>, vector<1x32x32xf32>
    %159 = vector.shape_cast %158 : vector<1x32x32xf32> to vector<32x32xf32>
    %cst_47 = arith.constant dense<0.000000e+00> : vector<16x32xf32>
    %160 = tpu.matmul %157, %159, %cst_47 {dimension_numbers = #tpu.dot_dimension_numbers<[1], [0], [0], [1], [0, 0, 1, 1], [], []>} : vector<16x32xf32>, vector<32x32xf32>, vector<16x32xf32> -> vector<16x32xf32>
    %c4 = arith.constant 4 : index
    %c0_48 = arith.constant 0 : index
    %161 = vector.load %arg3[%c4, %c0_48] : memref<19x128xf32, #tpu.memory_space<vmem>>, vector<1x32xf32>
    %162 = vector.broadcast %161 : vector<1x32xf32> to vector<16x32xf32>
    %163 = arith.addf %160, %162 : vector<16x32xf32>
    %164 = arith.addf %37, %163 : vector<16x32xf32>
    %c5 = arith.constant 5 : index
    %c0_49 = arith.constant 0 : index
    %165 = vector.load %arg3[%c5, %c0_49] : memref<19x128xf32, #tpu.memory_space<vmem>>, vector<1x32xf32>
    %c6 = arith.constant 6 : index
    %c0_50 = arith.constant 0 : index
    %166 = vector.load %arg3[%c6, %c0_50] : memref<19x128xf32, #tpu.memory_space<vmem>>, vector<1x32xf32>
    %cst_51 = arith.constant dense<0.000000e+00> : vector<16xf32>
    %167 = vector.multi_reduction <add>, %164, %cst_51 [1] : vector<16x32xf32> to vector<16xf32>
    %168 = vector.shape_cast %167 : vector<16xf32> to vector<16x1xf32>
    %cst_52 = arith.constant 3.200000e+01 : f32
    %169 = vector.broadcast %cst_52 : f32 to vector<16x1xf32>
    %170 = arith.divf %168, %169 : vector<16x1xf32>
    %171 = vector.broadcast %170 : vector<16x1xf32> to vector<16x32xf32>
    %172 = arith.subf %164, %171 : vector<16x32xf32>
    %173 = arith.mulf %172, %172 : vector<16x32xf32>
    %cst_53 = arith.constant dense<0.000000e+00> : vector<16xf32>
    %174 = vector.multi_reduction <add>, %173, %cst_53 [1] : vector<16x32xf32> to vector<16xf32>
    %175 = vector.shape_cast %174 : vector<16xf32> to vector<16x1xf32>
    %cst_54 = arith.constant 3.200000e+01 : f32
    %176 = vector.broadcast %cst_54 : f32 to vector<16x1xf32>
    %177 = arith.divf %175, %176 : vector<16x1xf32>
    %178 = vector.broadcast %170 : vector<16x1xf32> to vector<16x32xf32>
    %179 = arith.subf %164, %178 : vector<16x32xf32>
    %cst_55 = arith.constant 9.99999974E-6 : f32
    %180 = vector.broadcast %cst_55 : f32 to vector<16x1xf32>
    %181 = arith.addf %177, %180 : vector<16x1xf32>
    %182 = math.rsqrt %181 : vector<16x1xf32>
    %183 = vector.broadcast %182 : vector<16x1xf32> to vector<16x32xf32>
    %184 = arith.mulf %179, %183 : vector<16x32xf32>
    %185 = vector.broadcast %165 : vector<1x32xf32> to vector<16x32xf32>
    %186 = arith.mulf %184, %185 : vector<16x32xf32>
    %187 = vector.broadcast %166 : vector<1x32xf32> to vector<16x32xf32>
    %188 = arith.addf %186, %187 : vector<16x32xf32>
    %c0_56 = arith.constant 0 : index
    %c0_57 = arith.constant 0 : index
    %c0_58 = arith.constant 0 : index
    %189 = vector.load %arg6[%c0_56, %c0_57, %c0_58] : memref<2x32x64xf32, #tpu.memory_space<vmem>>, vector<1x32x64xf32>
    %190 = vector.shape_cast %189 : vector<1x32x64xf32> to vector<32x64xf32>
    %cst_59 = arith.constant dense<0.000000e+00> : vector<16x64xf32>
    %191 = tpu.matmul %188, %190, %cst_59 {dimension_numbers = #tpu.dot_dimension_numbers<[1], [0], [0], [1], [0, 0, 1, 1], [], []>} : vector<16x32xf32>, vector<32x64xf32>, vector<16x64xf32> -> vector<16x64xf32>
    %c7 = arith.constant 7 : index
    %c0_60 = arith.constant 0 : index
    %192 = vector.load %arg3[%c7, %c0_60] : memref<19x128xf32, #tpu.memory_space<vmem>>, vector<1x64xf32>
    %193 = vector.broadcast %192 : vector<1x64xf32> to vector<16x64xf32>
    %194 = arith.addf %191, %193 : vector<16x64xf32>
    %cst_61 = arith.constant 5.000000e-01 : f32
    %195 = vector.broadcast %cst_61 : f32 to vector<16x64xf32>
    %196 = arith.mulf %195, %194 : vector<16x64xf32>
    %cst_62 = arith.constant 0.707106769 : f32
    %197 = vector.broadcast %cst_62 : f32 to vector<16x64xf32>
    %198 = arith.mulf %194, %197 : vector<16x64xf32>
    %cst_63 = arith.constant 0.000000e+00 : f32
    %199 = vector.broadcast %cst_63 : f32 to vector<16x64xf32>
    %200 = arith.cmpf oge, %198, %199 : vector<16x64xf32>
    %cst_64 = arith.constant 1.000000e+00 : f32
    %cst_65 = arith.constant -1.000000e+00 : f32
    %201 = vector.broadcast %cst_64 : f32 to vector<16x64xf32>
    %202 = vector.broadcast %cst_65 : f32 to vector<16x64xf32>
    %203 = arith.select %200, %201, %202 : vector<16x64xi1>, vector<16x64xf32>
    %204 = math.absf %198 : vector<16x64xf32>
    %cst_66 = arith.constant 0.327591091 : f32
    %205 = vector.broadcast %cst_66 : f32 to vector<16x64xf32>
    %206 = arith.mulf %205, %204 : vector<16x64xf32>
    %cst_67 = arith.constant 1.000000e+00 : f32
    %207 = vector.broadcast %cst_67 : f32 to vector<16x64xf32>
    %208 = arith.addf %207, %206 : vector<16x64xf32>
    %209 = tpu.reciprocal %208 {approx = true} : vector<16x64xf32> -> vector<16x64xf32>
    %210 = arith.mulf %208, %209 : vector<16x64xf32>
    %cst_68 = arith.constant 2.000000e+00 : f32
    %211 = vector.broadcast %cst_68 : f32 to vector<16x64xf32>
    %212 = arith.subf %211, %210 : vector<16x64xf32>
    %213 = arith.mulf %209, %212 : vector<16x64xf32>
    %cst_69 = arith.constant 1.06140542 : f32
    %214 = vector.broadcast %cst_69 : f32 to vector<16x64xf32>
    %215 = arith.mulf %214, %213 : vector<16x64xf32>
    %cst_70 = arith.constant -1.45315206 : f32
    %216 = vector.broadcast %cst_70 : f32 to vector<16x64xf32>
    %217 = arith.addf %215, %216 : vector<16x64xf32>
    %218 = arith.mulf %217, %213 : vector<16x64xf32>
    %cst_71 = arith.constant 1.42141378 : f32
    %219 = vector.broadcast %cst_71 : f32 to vector<16x64xf32>
    %220 = arith.addf %218, %219 : vector<16x64xf32>
    %221 = arith.mulf %220, %213 : vector<16x64xf32>
    %cst_72 = arith.constant -0.284496725 : f32
    %222 = vector.broadcast %cst_72 : f32 to vector<16x64xf32>
    %223 = arith.addf %221, %222 : vector<16x64xf32>
    %224 = arith.mulf %223, %213 : vector<16x64xf32>
    %cst_73 = arith.constant 0.254829586 : f32
    %225 = vector.broadcast %cst_73 : f32 to vector<16x64xf32>
    %226 = arith.addf %224, %225 : vector<16x64xf32>
    %227 = arith.mulf %226, %213 : vector<16x64xf32>
    %cst_74 = arith.constant 0.000000e+00 : f32
    %228 = vector.broadcast %cst_74 : f32 to vector<16x64xf32>
    %229 = arith.subf %228, %204 : vector<16x64xf32>
    %230 = arith.mulf %229, %204 : vector<16x64xf32>
    %231 = math.exp %230 : vector<16x64xf32>
    %232 = arith.mulf %227, %231 : vector<16x64xf32>
    %cst_75 = arith.constant 1.000000e+00 : f32
    %233 = vector.broadcast %cst_75 : f32 to vector<16x64xf32>
    %234 = arith.subf %233, %232 : vector<16x64xf32>
    %235 = arith.mulf %203, %234 : vector<16x64xf32>
    %cst_76 = arith.constant 1.000000e+00 : f32
    %236 = vector.broadcast %cst_76 : f32 to vector<16x64xf32>
    %237 = arith.addf %236, %235 : vector<16x64xf32>
    %238 = arith.mulf %196, %237 : vector<16x64xf32>
    %c0_77 = arith.constant 0 : index
    %c0_78 = arith.constant 0 : index
    %c0_79 = arith.constant 0 : index
    %239 = vector.load %arg7[%c0_77, %c0_78, %c0_79] : memref<2x64x32xf32, #tpu.memory_space<vmem>>, vector<1x64x32xf32>
    %240 = vector.shape_cast %239 : vector<1x64x32xf32> to vector<64x32xf32>
    %cst_80 = arith.constant dense<0.000000e+00> : vector<16x32xf32>
    %241 = tpu.matmul %238, %240, %cst_80 {dimension_numbers = #tpu.dot_dimension_numbers<[1], [0], [0], [1], [0, 0, 1, 1], [], []>} : vector<16x64xf32>, vector<64x32xf32>, vector<16x32xf32> -> vector<16x32xf32>
    %c8 = arith.constant 8 : index
    %c0_81 = arith.constant 0 : index
    %242 = vector.load %arg3[%c8, %c0_81] : memref<19x128xf32, #tpu.memory_space<vmem>>, vector<1x32xf32>
    %243 = vector.broadcast %242 : vector<1x32xf32> to vector<16x32xf32>
    %244 = arith.addf %241, %243 : vector<16x32xf32>
    %245 = arith.addf %188, %244 : vector<16x32xf32>
    %c9 = arith.constant 9 : index
    %c0_82 = arith.constant 0 : index
    %246 = vector.load %arg3[%c9, %c0_82] : memref<19x128xf32, #tpu.memory_space<vmem>>, vector<1x32xf32>
    %c10 = arith.constant 10 : index
    %c0_83 = arith.constant 0 : index
    %247 = vector.load %arg3[%c10, %c0_83] : memref<19x128xf32, #tpu.memory_space<vmem>>, vector<1x32xf32>
    %cst_84 = arith.constant dense<0.000000e+00> : vector<16xf32>
    %248 = vector.multi_reduction <add>, %245, %cst_84 [1] : vector<16x32xf32> to vector<16xf32>
    %249 = vector.shape_cast %248 : vector<16xf32> to vector<16x1xf32>
    %cst_85 = arith.constant 3.200000e+01 : f32
    %250 = vector.broadcast %cst_85 : f32 to vector<16x1xf32>
    %251 = arith.divf %249, %250 : vector<16x1xf32>
    %252 = vector.broadcast %251 : vector<16x1xf32> to vector<16x32xf32>
    %253 = arith.subf %245, %252 : vector<16x32xf32>
    %254 = arith.mulf %253, %253 : vector<16x32xf32>
    %cst_86 = arith.constant dense<0.000000e+00> : vector<16xf32>
    %255 = vector.multi_reduction <add>, %254, %cst_86 [1] : vector<16x32xf32> to vector<16xf32>
    %256 = vector.shape_cast %255 : vector<16xf32> to vector<16x1xf32>
    %cst_87 = arith.constant 3.200000e+01 : f32
    %257 = vector.broadcast %cst_87 : f32 to vector<16x1xf32>
    %258 = arith.divf %256, %257 : vector<16x1xf32>
    %259 = vector.broadcast %251 : vector<16x1xf32> to vector<16x32xf32>
    %260 = arith.subf %245, %259 : vector<16x32xf32>
    %cst_88 = arith.constant 9.99999974E-6 : f32
    %261 = vector.broadcast %cst_88 : f32 to vector<16x1xf32>
    %262 = arith.addf %258, %261 : vector<16x1xf32>
    %263 = math.rsqrt %262 : vector<16x1xf32>
    %264 = vector.broadcast %263 : vector<16x1xf32> to vector<16x32xf32>
    %265 = arith.mulf %260, %264 : vector<16x32xf32>
    %266 = vector.broadcast %246 : vector<1x32xf32> to vector<16x32xf32>
    %267 = arith.mulf %265, %266 : vector<16x32xf32>
    %268 = vector.broadcast %247 : vector<1x32xf32> to vector<16x32xf32>
    %269 = arith.addf %267, %268 : vector<16x32xf32>
    %c1_89 = arith.constant 1 : index
    %c0_90 = arith.constant 0 : index
    %c0_91 = arith.constant 0 : index
    %270 = vector.load %arg4[%c1_89, %c0_90, %c0_91] : memref<2x32x128xf32, #tpu.memory_space<vmem>>, vector<1x32x128xf32>
    %271 = vector.shape_cast %270 : vector<1x32x128xf32> to vector<32x128xf32>
    %cst_92 = arith.constant dense<0.000000e+00> : vector<16x128xf32>
    %272 = tpu.matmul %269, %271, %cst_92 {dimension_numbers = #tpu.dot_dimension_numbers<[1], [0], [0], [1], [0, 0, 1, 1], [], []>} : vector<16x32xf32>, vector<32x128xf32>, vector<16x128xf32> -> vector<16x128xf32>
    %c11 = arith.constant 11 : index
    %c0_93 = arith.constant 0 : index
    %273 = vector.load %arg3[%c11, %c0_93] : memref<19x128xf32, #tpu.memory_space<vmem>>, vector<1x128xf32>
    %274 = vector.broadcast %273 : vector<1x128xf32> to vector<16x128xf32>
    %275 = arith.addf %272, %274 : vector<16x128xf32>
    %276 = vector.extract_strided_slice %275 {offsets = [0, 0], sizes = [16, 8], strides = [1, 1]} : vector<16x128xf32> to vector<16x8xf32>
    %277 = vector.shape_cast %276 : vector<16x8xf32> to vector<2x8x8xf32>
    %278 = vector.extract_strided_slice %275 {offsets = [0, 32], sizes = [16, 8], strides = [1, 1]} : vector<16x128xf32> to vector<16x8xf32>
    %279 = vector.shape_cast %278 : vector<16x8xf32> to vector<2x8x8xf32>
    %280 = vector.extract_strided_slice %275 {offsets = [0, 64], sizes = [16, 8], strides = [1, 1]} : vector<16x128xf32> to vector<16x8xf32>
    %281 = vector.shape_cast %280 : vector<16x8xf32> to vector<2x8x8xf32>
    "tpu.trace_start"() <{level = 10 : i32, message = "bqd,bkd->bqk"}> : () -> ()
    %cst_94 = arith.constant dense<0.000000e+00> : vector<2x8x8xf32>
    %282 = tpu.matmul %277, %279, %cst_94 {dimension_numbers = #tpu.dot_dimension_numbers<[2], [2], [1], [1], [0, 0, 0, 1, 1, 1], [0], [0]>} : vector<2x8x8xf32>, vector<2x8x8xf32>, vector<2x8x8xf32> -> vector<2x8x8xf32>
    "tpu.trace_stop"() : () -> ()
    %cst_95 = arith.constant 0.353553385 : f32
    %283 = vector.broadcast %cst_95 : f32 to vector<2x8x8xf32>
    %284 = arith.mulf %282, %283 : vector<2x8x8xf32>
    %285 = vector.shape_cast %38 : vector<2x8xf32> to vector<2x1x8xf32>
    %286 = vector.broadcast %285 : vector<2x1x8xf32> to vector<2x8x8xf32>
    %287 = arith.addf %284, %286 : vector<2x8x8xf32>
    %cst_96 = arith.constant dense<0xFF800000> : vector<2x8xf32>
    %288 = vector.multi_reduction <maximumf>, %287, %cst_96 [2] : vector<2x8x8xf32> to vector<2x8xf32>
    %289 = vector.shape_cast %288 : vector<2x8xf32> to vector<2x8x1xf32>
    %290 = vector.broadcast %289 : vector<2x8x1xf32> to vector<2x8x8xf32>
    %291 = arith.subf %287, %290 : vector<2x8x8xf32>
    %292 = math.exp %291 : vector<2x8x8xf32>
    %cst_97 = arith.constant dense<0.000000e+00> : vector<2x8xf32>
    %293 = vector.multi_reduction <add>, %292, %cst_97 [2] : vector<2x8x8xf32> to vector<2x8xf32>
    %294 = vector.shape_cast %293 : vector<2x8xf32> to vector<2x8x1xf32>
    %295 = tpu.reciprocal %294 {approx = true} : vector<2x8x1xf32> -> vector<2x8x1xf32>
    %296 = arith.mulf %294, %295 : vector<2x8x1xf32>
    %cst_98 = arith.constant 2.000000e+00 : f32
    %297 = vector.broadcast %cst_98 : f32 to vector<2x8x1xf32>
    %298 = arith.subf %297, %296 : vector<2x8x1xf32>
    %299 = arith.mulf %295, %298 : vector<2x8x1xf32>
    %300 = vector.broadcast %299 : vector<2x8x1xf32> to vector<2x8x8xf32>
    %301 = arith.mulf %292, %300 : vector<2x8x8xf32>
    "tpu.trace_start"() <{level = 10 : i32, message = "bqk,bkd->bqd"}> : () -> ()
    %cst_99 = arith.constant dense<0.000000e+00> : vector<2x8x8xf32>
    %302 = tpu.matmul %301, %281, %cst_99 {dimension_numbers = #tpu.dot_dimension_numbers<[2], [1], [1], [2], [0, 0, 0, 1, 1, 2], [0], [0]>} : vector<2x8x8xf32>, vector<2x8x8xf32>, vector<2x8x8xf32> -> vector<2x8x8xf32>
    "tpu.trace_stop"() : () -> ()
    %303 = vector.shape_cast %302 : vector<2x8x8xf32> to vector<16x8xf32>
    %304 = vector.extract_strided_slice %275 {offsets = [0, 8], sizes = [16, 8], strides = [1, 1]} : vector<16x128xf32> to vector<16x8xf32>
    %305 = vector.shape_cast %304 : vector<16x8xf32> to vector<2x8x8xf32>
    %306 = vector.extract_strided_slice %275 {offsets = [0, 40], sizes = [16, 8], strides = [1, 1]} : vector<16x128xf32> to vector<16x8xf32>
    %307 = vector.shape_cast %306 : vector<16x8xf32> to vector<2x8x8xf32>
    %308 = vector.extract_strided_slice %275 {offsets = [0, 72], sizes = [16, 8], strides = [1, 1]} : vector<16x128xf32> to vector<16x8xf32>
    %309 = vector.shape_cast %308 : vector<16x8xf32> to vector<2x8x8xf32>
    "tpu.trace_start"() <{level = 10 : i32, message = "bqd,bkd->bqk"}> : () -> ()
    %cst_100 = arith.constant dense<0.000000e+00> : vector<2x8x8xf32>
    %310 = tpu.matmul %305, %307, %cst_100 {dimension_numbers = #tpu.dot_dimension_numbers<[2], [2], [1], [1], [0, 0, 0, 1, 1, 1], [0], [0]>} : vector<2x8x8xf32>, vector<2x8x8xf32>, vector<2x8x8xf32> -> vector<2x8x8xf32>
    "tpu.trace_stop"() : () -> ()
    %cst_101 = arith.constant 0.353553385 : f32
    %311 = vector.broadcast %cst_101 : f32 to vector<2x8x8xf32>
    %312 = arith.mulf %310, %311 : vector<2x8x8xf32>
    %313 = vector.shape_cast %38 : vector<2x8xf32> to vector<2x1x8xf32>
    %314 = vector.broadcast %313 : vector<2x1x8xf32> to vector<2x8x8xf32>
    %315 = arith.addf %312, %314 : vector<2x8x8xf32>
    %cst_102 = arith.constant dense<0xFF800000> : vector<2x8xf32>
    %316 = vector.multi_reduction <maximumf>, %315, %cst_102 [2] : vector<2x8x8xf32> to vector<2x8xf32>
    %317 = vector.shape_cast %316 : vector<2x8xf32> to vector<2x8x1xf32>
    %318 = vector.broadcast %317 : vector<2x8x1xf32> to vector<2x8x8xf32>
    %319 = arith.subf %315, %318 : vector<2x8x8xf32>
    %320 = math.exp %319 : vector<2x8x8xf32>
    %cst_103 = arith.constant dense<0.000000e+00> : vector<2x8xf32>
    %321 = vector.multi_reduction <add>, %320, %cst_103 [2] : vector<2x8x8xf32> to vector<2x8xf32>
    %322 = vector.shape_cast %321 : vector<2x8xf32> to vector<2x8x1xf32>
    %323 = tpu.reciprocal %322 {approx = true} : vector<2x8x1xf32> -> vector<2x8x1xf32>
    %324 = arith.mulf %322, %323 : vector<2x8x1xf32>
    %cst_104 = arith.constant 2.000000e+00 : f32
    %325 = vector.broadcast %cst_104 : f32 to vector<2x8x1xf32>
    %326 = arith.subf %325, %324 : vector<2x8x1xf32>
    %327 = arith.mulf %323, %326 : vector<2x8x1xf32>
    %328 = vector.broadcast %327 : vector<2x8x1xf32> to vector<2x8x8xf32>
    %329 = arith.mulf %320, %328 : vector<2x8x8xf32>
    "tpu.trace_start"() <{level = 10 : i32, message = "bqk,bkd->bqd"}> : () -> ()
    %cst_105 = arith.constant dense<0.000000e+00> : vector<2x8x8xf32>
    %330 = tpu.matmul %329, %309, %cst_105 {dimension_numbers = #tpu.dot_dimension_numbers<[2], [1], [1], [2], [0, 0, 0, 1, 1, 2], [0], [0]>} : vector<2x8x8xf32>, vector<2x8x8xf32>, vector<2x8x8xf32> -> vector<2x8x8xf32>
    "tpu.trace_stop"() : () -> ()
    %331 = vector.shape_cast %330 : vector<2x8x8xf32> to vector<16x8xf32>
    %332 = vector.extract_strided_slice %275 {offsets = [0, 16], sizes = [16, 8], strides = [1, 1]} : vector<16x128xf32> to vector<16x8xf32>
    %333 = vector.shape_cast %332 : vector<16x8xf32> to vector<2x8x8xf32>
    %334 = vector.extract_strided_slice %275 {offsets = [0, 48], sizes = [16, 8], strides = [1, 1]} : vector<16x128xf32> to vector<16x8xf32>
    %335 = vector.shape_cast %334 : vector<16x8xf32> to vector<2x8x8xf32>
    %336 = vector.extract_strided_slice %275 {offsets = [0, 80], sizes = [16, 8], strides = [1, 1]} : vector<16x128xf32> to vector<16x8xf32>
    %337 = vector.shape_cast %336 : vector<16x8xf32> to vector<2x8x8xf32>
    "tpu.trace_start"() <{level = 10 : i32, message = "bqd,bkd->bqk"}> : () -> ()
    %cst_106 = arith.constant dense<0.000000e+00> : vector<2x8x8xf32>
    %338 = tpu.matmul %333, %335, %cst_106 {dimension_numbers = #tpu.dot_dimension_numbers<[2], [2], [1], [1], [0, 0, 0, 1, 1, 1], [0], [0]>} : vector<2x8x8xf32>, vector<2x8x8xf32>, vector<2x8x8xf32> -> vector<2x8x8xf32>
    "tpu.trace_stop"() : () -> ()
    %cst_107 = arith.constant 0.353553385 : f32
    %339 = vector.broadcast %cst_107 : f32 to vector<2x8x8xf32>
    %340 = arith.mulf %338, %339 : vector<2x8x8xf32>
    %341 = vector.shape_cast %38 : vector<2x8xf32> to vector<2x1x8xf32>
    %342 = vector.broadcast %341 : vector<2x1x8xf32> to vector<2x8x8xf32>
    %343 = arith.addf %340, %342 : vector<2x8x8xf32>
    %cst_108 = arith.constant dense<0xFF800000> : vector<2x8xf32>
    %344 = vector.multi_reduction <maximumf>, %343, %cst_108 [2] : vector<2x8x8xf32> to vector<2x8xf32>
    %345 = vector.shape_cast %344 : vector<2x8xf32> to vector<2x8x1xf32>
    %346 = vector.broadcast %345 : vector<2x8x1xf32> to vector<2x8x8xf32>
    %347 = arith.subf %343, %346 : vector<2x8x8xf32>
    %348 = math.exp %347 : vector<2x8x8xf32>
    %cst_109 = arith.constant dense<0.000000e+00> : vector<2x8xf32>
    %349 = vector.multi_reduction <add>, %348, %cst_109 [2] : vector<2x8x8xf32> to vector<2x8xf32>
    %350 = vector.shape_cast %349 : vector<2x8xf32> to vector<2x8x1xf32>
    %351 = tpu.reciprocal %350 {approx = true} : vector<2x8x1xf32> -> vector<2x8x1xf32>
    %352 = arith.mulf %350, %351 : vector<2x8x1xf32>
    %cst_110 = arith.constant 2.000000e+00 : f32
    %353 = vector.broadcast %cst_110 : f32 to vector<2x8x1xf32>
    %354 = arith.subf %353, %352 : vector<2x8x1xf32>
    %355 = arith.mulf %351, %354 : vector<2x8x1xf32>
    %356 = vector.broadcast %355 : vector<2x8x1xf32> to vector<2x8x8xf32>
    %357 = arith.mulf %348, %356 : vector<2x8x8xf32>
    "tpu.trace_start"() <{level = 10 : i32, message = "bqk,bkd->bqd"}> : () -> ()
    %cst_111 = arith.constant dense<0.000000e+00> : vector<2x8x8xf32>
    %358 = tpu.matmul %357, %337, %cst_111 {dimension_numbers = #tpu.dot_dimension_numbers<[2], [1], [1], [2], [0, 0, 0, 1, 1, 2], [0], [0]>} : vector<2x8x8xf32>, vector<2x8x8xf32>, vector<2x8x8xf32> -> vector<2x8x8xf32>
    "tpu.trace_stop"() : () -> ()
    %359 = vector.shape_cast %358 : vector<2x8x8xf32> to vector<16x8xf32>
    %360 = vector.extract_strided_slice %275 {offsets = [0, 24], sizes = [16, 8], strides = [1, 1]} : vector<16x128xf32> to vector<16x8xf32>
    %361 = vector.shape_cast %360 : vector<16x8xf32> to vector<2x8x8xf32>
    %362 = vector.extract_strided_slice %275 {offsets = [0, 56], sizes = [16, 8], strides = [1, 1]} : vector<16x128xf32> to vector<16x8xf32>
    %363 = vector.shape_cast %362 : vector<16x8xf32> to vector<2x8x8xf32>
    %364 = vector.extract_strided_slice %275 {offsets = [0, 88], sizes = [16, 8], strides = [1, 1]} : vector<16x128xf32> to vector<16x8xf32>
    %365 = vector.shape_cast %364 : vector<16x8xf32> to vector<2x8x8xf32>
    "tpu.trace_start"() <{level = 10 : i32, message = "bqd,bkd->bqk"}> : () -> ()
    %cst_112 = arith.constant dense<0.000000e+00> : vector<2x8x8xf32>
    %366 = tpu.matmul %361, %363, %cst_112 {dimension_numbers = #tpu.dot_dimension_numbers<[2], [2], [1], [1], [0, 0, 0, 1, 1, 1], [0], [0]>} : vector<2x8x8xf32>, vector<2x8x8xf32>, vector<2x8x8xf32> -> vector<2x8x8xf32>
    "tpu.trace_stop"() : () -> ()
    %cst_113 = arith.constant 0.353553385 : f32
    %367 = vector.broadcast %cst_113 : f32 to vector<2x8x8xf32>
    %368 = arith.mulf %366, %367 : vector<2x8x8xf32>
    %369 = vector.shape_cast %38 : vector<2x8xf32> to vector<2x1x8xf32>
    %370 = vector.broadcast %369 : vector<2x1x8xf32> to vector<2x8x8xf32>
    %371 = arith.addf %368, %370 : vector<2x8x8xf32>
    %cst_114 = arith.constant dense<0xFF800000> : vector<2x8xf32>
    %372 = vector.multi_reduction <maximumf>, %371, %cst_114 [2] : vector<2x8x8xf32> to vector<2x8xf32>
    %373 = vector.shape_cast %372 : vector<2x8xf32> to vector<2x8x1xf32>
    %374 = vector.broadcast %373 : vector<2x8x1xf32> to vector<2x8x8xf32>
    %375 = arith.subf %371, %374 : vector<2x8x8xf32>
    %376 = math.exp %375 : vector<2x8x8xf32>
    %cst_115 = arith.constant dense<0.000000e+00> : vector<2x8xf32>
    %377 = vector.multi_reduction <add>, %376, %cst_115 [2] : vector<2x8x8xf32> to vector<2x8xf32>
    %378 = vector.shape_cast %377 : vector<2x8xf32> to vector<2x8x1xf32>
    %379 = tpu.reciprocal %378 {approx = true} : vector<2x8x1xf32> -> vector<2x8x1xf32>
    %380 = arith.mulf %378, %379 : vector<2x8x1xf32>
    %cst_116 = arith.constant 2.000000e+00 : f32
    %381 = vector.broadcast %cst_116 : f32 to vector<2x8x1xf32>
    %382 = arith.subf %381, %380 : vector<2x8x1xf32>
    %383 = arith.mulf %379, %382 : vector<2x8x1xf32>
    %384 = vector.broadcast %383 : vector<2x8x1xf32> to vector<2x8x8xf32>
    %385 = arith.mulf %376, %384 : vector<2x8x8xf32>
    "tpu.trace_start"() <{level = 10 : i32, message = "bqk,bkd->bqd"}> : () -> ()
    %cst_117 = arith.constant dense<0.000000e+00> : vector<2x8x8xf32>
    %386 = tpu.matmul %385, %365, %cst_117 {dimension_numbers = #tpu.dot_dimension_numbers<[2], [1], [1], [2], [0, 0, 0, 1, 1, 2], [0], [0]>} : vector<2x8x8xf32>, vector<2x8x8xf32>, vector<2x8x8xf32> -> vector<2x8x8xf32>
    "tpu.trace_stop"() : () -> ()
    %387 = vector.shape_cast %386 : vector<2x8x8xf32> to vector<16x8xf32>
    %388 = tpu.concatenate %303, %331, %359, %387 in 1 : vector<16x8xf32>, vector<16x8xf32>, vector<16x8xf32>, vector<16x8xf32> -> vector<16x32xf32>
    %c1_118 = arith.constant 1 : index
    %c0_119 = arith.constant 0 : index
    %c0_120 = arith.constant 0 : index
    %389 = vector.load %arg5[%c1_118, %c0_119, %c0_120] : memref<2x32x32xf32, #tpu.memory_space<vmem>>, vector<1x32x32xf32>
    %390 = vector.shape_cast %389 : vector<1x32x32xf32> to vector<32x32xf32>
    %cst_121 = arith.constant dense<0.000000e+00> : vector<16x32xf32>
    %391 = tpu.matmul %388, %390, %cst_121 {dimension_numbers = #tpu.dot_dimension_numbers<[1], [0], [0], [1], [0, 0, 1, 1], [], []>} : vector<16x32xf32>, vector<32x32xf32>, vector<16x32xf32> -> vector<16x32xf32>
    %c12 = arith.constant 12 : index
    %c0_122 = arith.constant 0 : index
    %392 = vector.load %arg3[%c12, %c0_122] : memref<19x128xf32, #tpu.memory_space<vmem>>, vector<1x32xf32>
    %393 = vector.broadcast %392 : vector<1x32xf32> to vector<16x32xf32>
    %394 = arith.addf %391, %393 : vector<16x32xf32>
    %395 = arith.addf %269, %394 : vector<16x32xf32>
    %c13 = arith.constant 13 : index
    %c0_123 = arith.constant 0 : index
    %396 = vector.load %arg3[%c13, %c0_123] : memref<19x128xf32, #tpu.memory_space<vmem>>, vector<1x32xf32>
    %c14 = arith.constant 14 : index
    %c0_124 = arith.constant 0 : index
    %397 = vector.load %arg3[%c14, %c0_124] : memref<19x128xf32, #tpu.memory_space<vmem>>, vector<1x32xf32>
    %cst_125 = arith.constant dense<0.000000e+00> : vector<16xf32>
    %398 = vector.multi_reduction <add>, %395, %cst_125 [1] : vector<16x32xf32> to vector<16xf32>
    %399 = vector.shape_cast %398 : vector<16xf32> to vector<16x1xf32>
    %cst_126 = arith.constant 3.200000e+01 : f32
    %400 = vector.broadcast %cst_126 : f32 to vector<16x1xf32>
    %401 = arith.divf %399, %400 : vector<16x1xf32>
    %402 = vector.broadcast %401 : vector<16x1xf32> to vector<16x32xf32>
    %403 = arith.subf %395, %402 : vector<16x32xf32>
    %404 = arith.mulf %403, %403 : vector<16x32xf32>
    %cst_127 = arith.constant dense<0.000000e+00> : vector<16xf32>
    %405 = vector.multi_reduction <add>, %404, %cst_127 [1] : vector<16x32xf32> to vector<16xf32>
    %406 = vector.shape_cast %405 : vector<16xf32> to vector<16x1xf32>
    %cst_128 = arith.constant 3.200000e+01 : f32
    %407 = vector.broadcast %cst_128 : f32 to vector<16x1xf32>
    %408 = arith.divf %406, %407 : vector<16x1xf32>
    %409 = vector.broadcast %401 : vector<16x1xf32> to vector<16x32xf32>
    %410 = arith.subf %395, %409 : vector<16x32xf32>
    %cst_129 = arith.constant 9.99999974E-6 : f32
    %411 = vector.broadcast %cst_129 : f32 to vector<16x1xf32>
    %412 = arith.addf %408, %411 : vector<16x1xf32>
    %413 = math.rsqrt %412 : vector<16x1xf32>
    %414 = vector.broadcast %413 : vector<16x1xf32> to vector<16x32xf32>
    %415 = arith.mulf %410, %414 : vector<16x32xf32>
    %416 = vector.broadcast %396 : vector<1x32xf32> to vector<16x32xf32>
    %417 = arith.mulf %415, %416 : vector<16x32xf32>
    %418 = vector.broadcast %397 : vector<1x32xf32> to vector<16x32xf32>
    %419 = arith.addf %417, %418 : vector<16x32xf32>
    %c1_130 = arith.constant 1 : index
    %c0_131 = arith.constant 0 : index
    %c0_132 = arith.constant 0 : index
    %420 = vector.load %arg6[%c1_130, %c0_131, %c0_132] : memref<2x32x64xf32, #tpu.memory_space<vmem>>, vector<1x32x64xf32>
    %421 = vector.shape_cast %420 : vector<1x32x64xf32> to vector<32x64xf32>
    %cst_133 = arith.constant dense<0.000000e+00> : vector<16x64xf32>
    %422 = tpu.matmul %419, %421, %cst_133 {dimension_numbers = #tpu.dot_dimension_numbers<[1], [0], [0], [1], [0, 0, 1, 1], [], []>} : vector<16x32xf32>, vector<32x64xf32>, vector<16x64xf32> -> vector<16x64xf32>
    %c15 = arith.constant 15 : index
    %c0_134 = arith.constant 0 : index
    %423 = vector.load %arg3[%c15, %c0_134] : memref<19x128xf32, #tpu.memory_space<vmem>>, vector<1x64xf32>
    %424 = vector.broadcast %423 : vector<1x64xf32> to vector<16x64xf32>
    %425 = arith.addf %422, %424 : vector<16x64xf32>
    %cst_135 = arith.constant 5.000000e-01 : f32
    %426 = vector.broadcast %cst_135 : f32 to vector<16x64xf32>
    %427 = arith.mulf %426, %425 : vector<16x64xf32>
    %cst_136 = arith.constant 0.707106769 : f32
    %428 = vector.broadcast %cst_136 : f32 to vector<16x64xf32>
    %429 = arith.mulf %425, %428 : vector<16x64xf32>
    %cst_137 = arith.constant 0.000000e+00 : f32
    %430 = vector.broadcast %cst_137 : f32 to vector<16x64xf32>
    %431 = arith.cmpf oge, %429, %430 : vector<16x64xf32>
    %cst_138 = arith.constant 1.000000e+00 : f32
    %cst_139 = arith.constant -1.000000e+00 : f32
    %432 = vector.broadcast %cst_138 : f32 to vector<16x64xf32>
    %433 = vector.broadcast %cst_139 : f32 to vector<16x64xf32>
    %434 = arith.select %431, %432, %433 : vector<16x64xi1>, vector<16x64xf32>
    %435 = math.absf %429 : vector<16x64xf32>
    %cst_140 = arith.constant 0.327591091 : f32
    %436 = vector.broadcast %cst_140 : f32 to vector<16x64xf32>
    %437 = arith.mulf %436, %435 : vector<16x64xf32>
    %cst_141 = arith.constant 1.000000e+00 : f32
    %438 = vector.broadcast %cst_141 : f32 to vector<16x64xf32>
    %439 = arith.addf %438, %437 : vector<16x64xf32>
    %440 = tpu.reciprocal %439 {approx = true} : vector<16x64xf32> -> vector<16x64xf32>
    %441 = arith.mulf %439, %440 : vector<16x64xf32>
    %cst_142 = arith.constant 2.000000e+00 : f32
    %442 = vector.broadcast %cst_142 : f32 to vector<16x64xf32>
    %443 = arith.subf %442, %441 : vector<16x64xf32>
    %444 = arith.mulf %440, %443 : vector<16x64xf32>
    %cst_143 = arith.constant 1.06140542 : f32
    %445 = vector.broadcast %cst_143 : f32 to vector<16x64xf32>
    %446 = arith.mulf %445, %444 : vector<16x64xf32>
    %cst_144 = arith.constant -1.45315206 : f32
    %447 = vector.broadcast %cst_144 : f32 to vector<16x64xf32>
    %448 = arith.addf %446, %447 : vector<16x64xf32>
    %449 = arith.mulf %448, %444 : vector<16x64xf32>
    %cst_145 = arith.constant 1.42141378 : f32
    %450 = vector.broadcast %cst_145 : f32 to vector<16x64xf32>
    %451 = arith.addf %449, %450 : vector<16x64xf32>
    %452 = arith.mulf %451, %444 : vector<16x64xf32>
    %cst_146 = arith.constant -0.284496725 : f32
    %453 = vector.broadcast %cst_146 : f32 to vector<16x64xf32>
    %454 = arith.addf %452, %453 : vector<16x64xf32>
    %455 = arith.mulf %454, %444 : vector<16x64xf32>
    %cst_147 = arith.constant 0.254829586 : f32
    %456 = vector.broadcast %cst_147 : f32 to vector<16x64xf32>
    %457 = arith.addf %455, %456 : vector<16x64xf32>
    %458 = arith.mulf %457, %444 : vector<16x64xf32>
    %cst_148 = arith.constant 0.000000e+00 : f32
    %459 = vector.broadcast %cst_148 : f32 to vector<16x64xf32>
    %460 = arith.subf %459, %435 : vector<16x64xf32>
    %461 = arith.mulf %460, %435 : vector<16x64xf32>
    %462 = math.exp %461 : vector<16x64xf32>
    %463 = arith.mulf %458, %462 : vector<16x64xf32>
    %cst_149 = arith.constant 1.000000e+00 : f32
    %464 = vector.broadcast %cst_149 : f32 to vector<16x64xf32>
    %465 = arith.subf %464, %463 : vector<16x64xf32>
    %466 = arith.mulf %434, %465 : vector<16x64xf32>
    %cst_150 = arith.constant 1.000000e+00 : f32
    %467 = vector.broadcast %cst_150 : f32 to vector<16x64xf32>
    %468 = arith.addf %467, %466 : vector<16x64xf32>
    %469 = arith.mulf %427, %468 : vector<16x64xf32>
    %c1_151 = arith.constant 1 : index
    %c0_152 = arith.constant 0 : index
    %c0_153 = arith.constant 0 : index
    %470 = vector.load %arg7[%c1_151, %c0_152, %c0_153] : memref<2x64x32xf32, #tpu.memory_space<vmem>>, vector<1x64x32xf32>
    %471 = vector.shape_cast %470 : vector<1x64x32xf32> to vector<64x32xf32>
    %cst_154 = arith.constant dense<0.000000e+00> : vector<16x32xf32>
    %472 = tpu.matmul %469, %471, %cst_154 {dimension_numbers = #tpu.dot_dimension_numbers<[1], [0], [0], [1], [0, 0, 1, 1], [], []>} : vector<16x64xf32>, vector<64x32xf32>, vector<16x32xf32> -> vector<16x32xf32>
    %c16 = arith.constant 16 : index
    %c0_155 = arith.constant 0 : index
    %473 = vector.load %arg3[%c16, %c0_155] : memref<19x128xf32, #tpu.memory_space<vmem>>, vector<1x32xf32>
    %474 = vector.broadcast %473 : vector<1x32xf32> to vector<16x32xf32>
    %475 = arith.addf %472, %474 : vector<16x32xf32>
    %476 = arith.addf %419, %475 : vector<16x32xf32>
    %c17 = arith.constant 17 : index
    %c0_156 = arith.constant 0 : index
    %477 = vector.load %arg3[%c17, %c0_156] : memref<19x128xf32, #tpu.memory_space<vmem>>, vector<1x32xf32>
    %c18 = arith.constant 18 : index
    %c0_157 = arith.constant 0 : index
    %478 = vector.load %arg3[%c18, %c0_157] : memref<19x128xf32, #tpu.memory_space<vmem>>, vector<1x32xf32>
    %cst_158 = arith.constant dense<0.000000e+00> : vector<16xf32>
    %479 = vector.multi_reduction <add>, %476, %cst_158 [1] : vector<16x32xf32> to vector<16xf32>
    %480 = vector.shape_cast %479 : vector<16xf32> to vector<16x1xf32>
    %cst_159 = arith.constant 3.200000e+01 : f32
    %481 = vector.broadcast %cst_159 : f32 to vector<16x1xf32>
    %482 = arith.divf %480, %481 : vector<16x1xf32>
    %483 = vector.broadcast %482 : vector<16x1xf32> to vector<16x32xf32>
    %484 = arith.subf %476, %483 : vector<16x32xf32>
    %485 = arith.mulf %484, %484 : vector<16x32xf32>
    %cst_160 = arith.constant dense<0.000000e+00> : vector<16xf32>
    %486 = vector.multi_reduction <add>, %485, %cst_160 [1] : vector<16x32xf32> to vector<16xf32>
    %487 = vector.shape_cast %486 : vector<16xf32> to vector<16x1xf32>
    %cst_161 = arith.constant 3.200000e+01 : f32
    %488 = vector.broadcast %cst_161 : f32 to vector<16x1xf32>
    %489 = arith.divf %487, %488 : vector<16x1xf32>
    %490 = vector.broadcast %482 : vector<16x1xf32> to vector<16x32xf32>
    %491 = arith.subf %476, %490 : vector<16x32xf32>
    %cst_162 = arith.constant 9.99999974E-6 : f32
    %492 = vector.broadcast %cst_162 : f32 to vector<16x1xf32>
    %493 = arith.addf %489, %492 : vector<16x1xf32>
    %494 = math.rsqrt %493 : vector<16x1xf32>
    %495 = vector.broadcast %494 : vector<16x1xf32> to vector<16x32xf32>
    %496 = arith.mulf %491, %495 : vector<16x32xf32>
    %497 = vector.broadcast %477 : vector<1x32xf32> to vector<16x32xf32>
    %498 = arith.mulf %496, %497 : vector<16x32xf32>
    %499 = vector.broadcast %478 : vector<1x32xf32> to vector<16x32xf32>
    %500 = arith.addf %498, %499 : vector<16x32xf32>
    %501 = vector.shape_cast %500 : vector<16x32xf32> to vector<2x8x32xf32>
    %502 = vector.extract_strided_slice %501 {offsets = [0, 0, 0], sizes = [2, 1, 32], strides = [1, 1, 1]} : vector<2x8x32xf32> to vector<2x1x32xf32>
    %503 = vector.shape_cast %502 : vector<2x1x32xf32> to vector<2x32xf32>
    %c0_163 = arith.constant 0 : index
    %c0_164 = arith.constant 0 : index
    %504 = vector.load %arg8[%c0_163, %c0_164] : memref<32x128xf32, #tpu.memory_space<vmem>>, vector<32x128xf32>
    %cst_165 = arith.constant dense<0.000000e+00> : vector<2x128xf32>
    %505 = tpu.matmul %503, %504, %cst_165 {dimension_numbers = #tpu.dot_dimension_numbers<[1], [0], [0], [1], [0, 0, 1, 1], [], []>} : vector<2x32xf32>, vector<32x128xf32>, vector<2x128xf32> -> vector<2x128xf32>
    %c2 = arith.constant 2 : index
    %c0_166 = arith.constant 0 : index
    %506 = vector.load %arg3[%c2, %c0_166] : memref<19x128xf32, #tpu.memory_space<vmem>>, vector<1x128xf32>
    %507 = vector.broadcast %506 : vector<1x128xf32> to vector<2x128xf32>
    %508 = arith.addf %505, %507 : vector<2x128xf32>
    %c0_167 = arith.constant 0 : index
    %c0_168 = arith.constant 0 : index
    %509 = vector.load %arg9[%c0_167, %c0_168] : memref<2x128xf32, #tpu.memory_space<vmem>>, vector<2x128xf32>
    tpu.vector_store %arg9[%c0_167, %c0_168], %508 {strides = array<i32>} : memref<2x128xf32, #tpu.memory_space<vmem>>, vector<2x128xf32>,
    return
  }
}

</mosaic_0001>

<llo_original>
// kernel: codebert_forward.1
$region0: #{codebert_forward.1}
  #allocation0 [shape = 'u32[]', space=smem, size = 0x4, offset = 0x4, fixed_abs, tag = 'smem constant byte address 0x4 - core index']
  #allocation1 [shape = 'u32[144,128]{1,0:T(1,128)}', space=vmem, size = 0x12000, scoped, tag = 'internal scratch']
  %s0 = inlined_call_operand.vmem [shape: s32[16,2], index: 0, kind: input, shape index: {}]
  %s1 = inlined_call_operand.vmem [shape: f32[2,8], index: 1, kind: input, shape index: {}]
  %s2 = inlined_call_operand.vmem [shape: f32[128,32], index: 2, kind: input, shape index: {}]
  %s3 = inlined_call_operand.vmem [shape: f32[19,128], index: 3, kind: input, shape index: {}]
  %s4 = inlined_call_operand.vmem [shape: f32[2,32,128], index: 4, kind: input, shape index: {}]
  %s5 = inlined_call_operand.vmem [shape: f32[2,32,32], index: 5, kind: input, shape index: {}]
  %s6 = inlined_call_operand.vmem [shape: f32[2,32,64], index: 6, kind: input, shape index: {}]
  %s7 = inlined_call_operand.vmem [shape: f32[2,64,32], index: 7, kind: input, shape index: {}]
  %s8 = inlined_call_operand.vmem [shape: f32[32,128], index: 8, kind: input, shape index: {}]
  %s9 = inlined_call_operand.hbm [shape: f32[2,128], index: 9, kind: output, shape index: {}]
  %s10 = sld [smem:[#allocation0]]
  $region46: #{codebert_forward.1} parent=0
    _
  %s12 = ssub.s32 1, %s10
  %s13 = scalar_select 0, %s12, %s10
  $region1: #{codebert_forward.1} parent=0
    #allocation2 [shape = 'u8[1024]{0}', space=vmem, size = 0x400, scoped, tag = 'output window, operand 0, single buffered']
    #allocation3 [shape = 's32[1]{0}', space=sflag, size = 0x4, scoped, tag = 'scoped memory for codebert_forward.1']
    %14 = vsyncpa [#allocation3], 0
    // Predicated region
    $region2: #{codebert_forward.1} parent=1 // pred_check
      _
    $region3: #{codebert_forward.1} parent=1 // pred_check_branch
      %16 = sbr.rel (0) target = $region5
    $region4: #{codebert_forward.1} parent=1 // pred_region
      _
    $region5: #{codebert_forward.1} parent=1 // pred_fallthru
      _
    // Predicated region
    $region6: #{codebert_forward.1} parent=1 // pred_check
      _
    $region7: #{codebert_forward.1} parent=1 // pred_check_branch
      %18 = sbr.rel (0) target = $region9
    $region8: #{codebert_forward.1} parent=1 // pred_region
      _
    $region9: #{codebert_forward.1} parent=1 // pred_fallthru
      _
    // Predicated region
    $region10: #{codebert_forward.1} parent=1 // pred_check
      _
    $region11: #{codebert_forward.1} parent=1 // pred_check_branch
      %20 = sbr.rel (0) target = $region13
    $region12: #{codebert_forward.1} parent=1 // pred_region
      _
    $region13: #{codebert_forward.1} parent=1 // pred_fallthru
      _
    // Predicated region
    $region14: #{codebert_forward.1} parent=1 // pred_check
      _
    $region15: #{codebert_forward.1} parent=1 // pred_check_branch
      %22 = sbr.rel (0) target = $region17
    $region16: #{codebert_forward.1} parent=1 // pred_region
      _
    $region17: #{codebert_forward.1} parent=1 // pred_fallthru
      _
    // Predicated region
    $region18: #{codebert_forward.1} parent=1 // pred_check
      _
    $region19: #{codebert_forward.1} parent=1 // pred_check_branch
      %24 = sbr.rel (0) target = $region21
    $region20: #{codebert_forward.1} parent=1 // pred_region
      _
    $region21: #{codebert_forward.1} parent=1 // pred_fallthru
      _
    // Predicated region
    $region22: #{codebert_forward.1} parent=1 // pred_check
      _
    $region23: #{codebert_forward.1} parent=1 // pred_check_branch
      %26 = sbr.rel (0) target = $region25
    $region24: #{codebert_forward.1} parent=1 // pred_region
      _
    $region25: #{codebert_forward.1} parent=1 // pred_fallthru
      _
    // Predicated region
    $region26: #{codebert_forward.1} parent=1 // pred_check
      _
    $region27: #{codebert_forward.1} parent=1 // pred_check_branch
      %28 = sbr.rel (0) target = $region29
    $region28: #{codebert_forward.1} parent=1 // pred_region
      _
    $region29: #{codebert_forward.1} parent=1 // pred_fallthru
      _
    // Predicated region
    $region30: #{codebert_forward.1} parent=1 // pred_check
      _
    $region31: #{codebert_forward.1} parent=1 // pred_check_branch
      %30 = sbr.rel (0) target = $region33
    $region32: #{codebert_forward.1} parent=1 // pred_region
      _
    $region33: #{codebert_forward.1} parent=1 // pred_fallthru
      _
    // Predicated region
    $region34: #{codebert_forward.1} parent=1 // pred_check
      _
    $region35: #{codebert_forward.1} parent=1 // pred_check_branch
      %32 = sbr.rel (0) target = $region37
    $region36: #{codebert_forward.1} parent=1 // pred_region
      _
    $region37: #{codebert_forward.1} parent=1 // pred_fallthru
      _
    %v33 = vlaneseq
    %v34 = vand.u32 %v33, 127
    %v35 = vld [vmem:[%s0] sm:$0xff]
    %v36 = vld [vmem:[%s0 + $0x8] sm:$0xff]
    %37 = vset.pattern.permute.xlu0 0
    %38 = vperm.xlu0 %37, %v35
    %v39 = vpop.permute.xlu0 %38
    %40 = vset.pattern.permute.xlu0 0
    %41 = vperm.xlu0 %40, %v36
    %v42 = vpop.permute.xlu0 %41
    %vm43 = vcmp.eq.s32.totalorder %v34, %v39
    %vm44 = vcmp.eq.s32.totalorder %v34, %v42
    %v45 = vsel %vm43, 1, 0
    %v46 = vsel %vm44, 1, 0
    %v47 = vcvt.s32.f32 %v45
    %v48 = vcvt.s32.f32 %v46
    %49 = vset.pattern.permute.xlu0 1
    %50 = vperm.xlu0 %49, %v35
    %v51 = vpop.permute.xlu0 %50
    %52 = vset.pattern.permute.xlu0 1
    %53 = vperm.xlu0 %52, %v36
    %v54 = vpop.permute.xlu0 %53
    %vm55 = vcmp.eq.s32.totalorder %v34, %v51
    %vm56 = vcmp.eq.s32.totalorder %v34, %v54
    %v57 = vsel %vm55, 1, 0
    %v58 = vsel %vm56, 1, 0
    %v59 = vcvt.s32.f32 %v57
    %v60 = vcvt.s32.f32 %v58
    %v61 = vadd.f32 %v47, %v59
    %v62 = vadd.f32 %v48, %v60
    %v63 = vld [vmem:[%s2] sm:$0xff]
    %v64 = vld [vmem:[%s2 + $0x8] sm:$0xff]
    %v65 = vld [vmem:[%s2 + $0x10] sm:$0xff]
    %v66 = vld [vmem:[%s2 + $0x18] sm:$0xff]
    %v67 = vld [vmem:[%s2 + $0x20] sm:$0xff]
    %v68 = vld [vmem:[%s2 + $0x28] sm:$0xff]
    %v69 = vld [vmem:[%s2 + $0x30] sm:$0xff]
    %v70 = vld [vmem:[%s2 + $0x38] sm:$0xff]
    %v71 = vld [vmem:[%s2 + $0x40] sm:$0xff]
    %v72 = vld [vmem:[%s2 + $0x48] sm:$0xff]
    %v73 = vld [vmem:[%s2 + $0x50] sm:$0xff]
    %v74 = vld [vmem:[%s2 + $0x58] sm:$0xff]
    %v75 = vld [vmem:[%s2 + $0x60] sm:$0xff]
    %v76 = vld [vmem:[%s2 + $0x68] sm:$0xff]
    %v77 = vld [vmem:[%s2 + $0x70] sm:$0xff]
    %v78 = vld [vmem:[%s2 + $0x78] sm:$0xff]
    %79 = vmatprep.subr.mxu0 0.0
    %80 = vmatpush1.msra.mxu0 %v63
    %81 = vmatprep.subr.mxu0 0.0
    %82 = vmatpush1.msra.mxu0 %v64
    %83 = vmatprep.subr.mxu0 0.0
    %84 = vmatpush1.msra.mxu0 %v65
    %85 = vmatprep.subr.mxu0 0.0
    %86 = vmatpush1.msra.mxu0 %v66
    %87 = vmatprep.subr.mxu0 0.0
    %88 = vmatpush1.msra.mxu0 %v67
    %89 = vmatprep.subr.mxu0 0.0
    %90 = vmatpush1.msra.mxu0 %v68
    %91 = vmatprep.subr.mxu0 0.0
    %92 = vmatpush1.msra.mxu0 %v69
    %93 = vmatprep.subr.mxu0 0.0
    %94 = vmatpush1.msra.mxu0 %v70
    %95 = vmatprep.subr.mxu0 0.0
    %96 = vmatpush1.msra.mxu0 %v71
    %97 = vmatprep.subr.mxu0 0.0
    %98 = vmatpush1.msra.mxu0 %v72
    %99 = vmatprep.subr.mxu0 0.0
    %100 = vmatpush1.msra.mxu0 %v73
    %101 = vmatprep.subr.mxu0 0.0
    %102 = vmatpush1.msra.mxu0 %v74
    %103 = vmatprep.subr.mxu0 0.0
    %104 = vmatpush1.msra.mxu0 %v75
    %105 = vmatprep.subr.mxu0 0.0
    %106 = vmatpush1.msra.mxu0 %v76
    %107 = vmatprep.subr.mxu0 0.0
    %108 = vmatpush1.msra.mxu0 %v77
    %109 = vmatprep.subr.mxu0 0.0
    %110 = vmatpush1.msra.mxu0 %v78
    %111 = vmatprep.subr.mxu0 0.0
    %112 = vmatpush1.msra.mxu0 0.0
    %113 = vmatprep.subr.mxu0 0.0
    %114 = vmatpush1.msra.mxu0 0.0
    %115 = vmatprep.subr.mxu0 0.0
    %116 = vmatpush1.msra.mxu0 0.0
    %117 = vmatprep.subr.mxu0 0.0
    %118 = vmatpush1.msra.mxu0 0.0
    %119 = vmatprep.subr.mxu0 0.0
    %120 = vmatpush1.msra.mxu0 0.0
    %121 = vmatprep.subr.mxu0 0.0
    %122 = vmatpush1.msra.mxu0 0.0
    %123 = vmatprep.subr.mxu0 0.0
    %124 = vmatpush1.msra.mxu0 0.0
    %125 = vmatprep.subr.mxu0 0.0
    %126 = vmatpush1.msra.mxu0 0.0
    %127 = vmatprep.subr.mxu0 0.0
    %128 = vmatpush1.msra.mxu0 0.0
    %129 = vmatprep.subr.mxu0 0.0
    %130 = vmatpush1.msra.mxu0 0.0
    %131 = vmatprep.subr.mxu0 0.0
    %132 = vmatpush1.msra.mxu0 0.0
    %133 = vmatprep.subr.mxu0 0.0
    %134 = vmatpush1.msra.mxu0 0.0
    %135 = vmatprep.subr.mxu0 0.0
    %136 = vmatpush1.msra.mxu0 0.0
    %137 = vmatprep.subr.mxu0 0.0
    %138 = vmatpush1.msra.mxu0 0.0
    %139 = vmatprep.subr.mxu0 0.0
    %140 = vmatpush1.msra.mxu0 0.0
    %141 = vmatprep.subr.mxu0 0.0
    %142 = vmatpush1.msra.mxu0 0.0
    %143 = vmatprep.mubr.f32.mxu0 0.0
    %144 = vmatmul.mubr.f32.gmra.mrb[0].mxu0 %v61
    %v145 = vpop.f32.mrb[0].mxu0
    %v146 = vadd.f32 0.0, %v145
    %v147 = vpop.f32.mrb[0].mxu0
    %148 = vmatprep.mubr.f32.mxu0 0.0
    %149 = vmatmul.mubr.f32.gmra.mrb[0].mxu0 %v62
    %v150 = vpop.f32.mrb[0].mxu0
    %v151 = vadd.f32 0.0, %v150
    %v152 = vpop.f32.mrb[0].mxu0
    %153 = vdwg.mxu0
    %v154 = vld [vmem:[%s3] sm:$0x1]
    %v155 = vld [vmem:[%s3 + $0x1] sm:$0x1]
    %vm156 = vcmask 261120
    %v157 = vsel %vm156, %v146, 0.0
    %158 = vadd.xlane.f32.xlu0 %v157
    %v159 = vpop.xlane.xlu0 %158
    %v160 = vsel %vm156, %v151, 0.0
    %161 = vadd.xlane.f32.xlu0 %v160
    %v162 = vpop.xlane.xlu0 %161
    %v163 = vrcp.pop 32.0
    %v164 = vmul.f32 %v159, %v163
    %v165 = vmul.f32 %v162, %v163
    %v166 = vsub.f32 %v146, %v164
    %v167 = vsub.f32 %v151, %v165
    %v168 = vmul.f32 %v166, %v166
    %v169 = vmul.f32 %v167, %v167
    %v170 = vsel %vm156, %v168, 0.0
    %171 = vadd.xlane.f32.xlu0 %v170
    %v172 = vpop.xlane.xlu0 %171
    %v173 = vsel %vm156, %v169, 0.0
    %174 = vadd.xlane.f32.xlu0 %v173
    %v175 = vpop.xlane.xlu0 %174
    %v176 = vmul.f32 %v172, %v163
    %v177 = vmul.f32 %v175, %v163
    %v178 = vadd.f32 %v176, 1e-05
    %v179 = vadd.f32 %v177, 1e-05
    %v180 = vrsqrt.pop %v178
    %v181 = vrsqrt.pop %v179
    %v182 = vmul.f32 %v166, %v180
    %v183 = vmul.f32 %v167, %v181
    %v184 = vlaneseq
    %v185 = vshrl.u32 %v184, 7
    %v186 = vsub.s32 0, %v185
    %v187 = vrot.slane %v154, %v186
    %v188 = vmul.f32 %v182, %v187
    %v189 = vmul.f32 %v183, %v187
    %v190 = vlaneseq
    %v191 = vshrl.u32 %v190, 7
    %v192 = vsub.s32 0, %v191
    %v193 = vrot.slane %v155, %v192
    %v194 = vadd.f32 %v188, %v193
    %v195 = vadd.f32 %v189, %v193
    %v196 = vld [vmem:[%s1] sm:$0x3]
    %v197 = vld [vmem:[%s4] sm:$0xff]
    %v198 = vld [vmem:[%s4 + $0x8] sm:$0xff]
    %v199 = vld [vmem:[%s4 + $0x10] sm:$0xff]
    %v200 = vld [vmem:[%s4 + $0x18] sm:$0xff]
    %v201 = vld [vmem:[%s3 + $0x3] sm:$0x1]
    %v202 = vlaneseq
    %v203 = vshrl.u32 %v202, 7
    %v204 = vsub.s32 0, %v203
    %v205 = vrot.slane %v201, %v204
    %v207 = vsel %vm156, %v194, 0
    %v210 = vsel %vm156, %v195, 0
    %212 = vmatprep.subr.mxu0 0.0
    %213 = vmatpush1.msra.mxu0 %v197
    %214 = vmatprep.subr.mxu0 0.0
    %215 = vmatpush1.msra.mxu0 %v198
    %216 = vmatprep.subr.mxu0 0.0
    %217 = vmatpush1.msra.mxu0 %v199
    %218 = vmatprep.subr.mxu0 0.0
    %219 = vmatpush1.msra.mxu0 %v200
    %220 = vmatprep.subr.mxu0 0.0
    %221 = vmatpush1.msra.mxu0 0.0
    %222 = vmatprep.subr.mxu0 0.0
    %223 = vmatpush1.msra.mxu0 0.0
    %224 = vmatprep.subr.mxu0 0.0
    %225 = vmatpush1.msra.mxu0 0.0
    %226 = vmatprep.subr.mxu0 0.0
    %227 = vmatpush1.msra.mxu0 0.0
    %228 = vmatprep.subr.mxu0 0.0
    %229 = vmatpush1.msra.mxu0 0.0
    %230 = vmatprep.subr.mxu0 0.0
    %231 = vmatpush1.msra.mxu0 0.0
    %232 = vmatprep.subr.mxu0 0.0
    %233 = vmatpush1.msra.mxu0 0.0
    %234 = vmatprep.subr.mxu0 0.0
    %235 = vmatpush1.msra.mxu0 0.0
    %236 = vmatprep.subr.mxu0 0.0
    %237 = vmatpush1.msra.mxu0 0.0
    %238 = vmatprep.subr.mxu0 0.0
    %239 = vmatpush1.msra.mxu0 0.0
    %240 = vmatprep.subr.mxu0 0.0
    %241 = vmatpush1.msra.mxu0 0.0
    %242 = vmatprep.subr.mxu0 0.0
    %243 = vmatpush1.msra.mxu0 0.0
    %244 = vmatprep.subr.mxu0 0.0
    %245 = vmatpush1.msra.mxu0 0.0
    %246 = vmatprep.subr.mxu0 0.0
    %247 = vmatpush1.msra.mxu0 0.0
    %248 = vmatprep.subr.mxu0 0.0
    %249 = vmatpush1.msra.mxu0 0.0
    %250 = vmatprep.subr.mxu0 0.0
    %251 = vmatpush1.msra.mxu0 0.0
    %252 = vmatprep.subr.mxu0 0.0
    %253 = vmatpush1.msra.mxu0 0.0
    %254 = vmatprep.subr.mxu0 0.0
    %255 = vmatpush1.msra.mxu0 0.0
    %256 = vmatprep.subr.mxu0 0.0
    %257 = vmatpush1.msra.mxu0 0.0
    %258 = vmatprep.subr.mxu0 0.0
    %259 = vmatpush1.msra.mxu0 0.0
    %260 = vmatprep.subr.mxu0 0.0
    %261 = vmatpush1.msra.mxu0 0.0
    %262 = vmatprep.subr.mxu0 0.0
    %263 = vmatpush1.msra.mxu0 0.0
    %264 = vmatprep.subr.mxu0 0.0
    %265 = vmatpush1.msra.mxu0 0.0
    %266 = vmatprep.subr.mxu0 0.0
    %267 = vmatpush1.msra.mxu0 0.0
    %268 = vmatprep.subr.mxu0 0.0
    %269 = vmatpush1.msra.mxu0 0.0
    %270 = vmatprep.subr.mxu0 0.0
    %271 = vmatpush1.msra.mxu0 0.0
    %272 = vmatprep.subr.mxu0 0.0
    %273 = vmatpush1.msra.mxu0 0.0
    %274 = vmatprep.subr.mxu0 0.0
    %275 = vmatpush1.msra.mxu0 0.0
    %276 = vmatprep.mubr.f32.mxu0 0.0
    %277 = vmatmul.mubr.f32.gmra.mrb[0].mxu0 %v207
    %v278 = vpop.f32.mrb[0].mxu0
    %v279 = vadd.f32 %v205, %v278
    %v280 = vpop.f32.mrb[0].mxu0
    %281 = vmatprep.mubr.f32.mxu0 0.0
    %282 = vmatmul.mubr.f32.gmra.mrb[0].mxu0 %v210
    %v283 = vpop.f32.mrb[0].mxu0
    %v284 = vadd.f32 %v205, %v283
    %v285 = vpop.f32.mrb[0].mxu0
    %286 = vdwg.mxu0
    %288 = vrot.lane.b32.xlu0 %v279, 96
    %v289 = vpop.permute.xlu0 %288
    %vm290 = vcmask 64512
    %v291 = vsel %vm290, %v279, 0
    %v293 = vsel %vm290, %v289, 0
    %295 = vmatprep.subr.mxu0 0.0
    %296 = vmatpush1.xpose.msra.mxu0 %v293
    %297 = vmatprep.subr.mxu0 0.0
    %298 = vmatpush1.xpose.msra.mxu0 0.0
    %299 = vmatprep.subr.mxu0 0.0
    %300 = vmatpush1.xpose.msra.mxu0 0.0
    %301 = vmatprep.subr.mxu0 0.0
    %302 = vmatpush1.xpose.msra.mxu0 0.0
    %303 = vmatprep.subr.mxu0 0.0
    %304 = vmatpush1.xpose.msra.mxu0 0.0
    %305 = vmatprep.subr.mxu0 0.0
    %306 = vmatpush1.xpose.msra.mxu0 0.0
    %307 = vmatprep.subr.mxu0 0.0
    %308 = vmatpush1.xpose.msra.mxu0 0.0
    %309 = vmatprep.subr.mxu0 0.0
    %310 = vmatpush1.xpose.msra.mxu0 0.0
    %311 = vmatprep.subr.mxu0 0.0
    %312 = vmatpush1.xpose.msra.mxu0 0.0
    %313 = vmatprep.subr.mxu0 0.0
    %314 = vmatpush1.xpose.msra.mxu0 0.0
    %315 = vmatprep.subr.mxu0 0.0
    %316 = vmatpush1.xpose.msra.mxu0 0.0
    %317 = vmatprep.subr.mxu0 0.0
    %318 = vmatpush1.xpose.msra.mxu0 0.0
    %319 = vmatprep.subr.mxu0 0.0
    %320 = vmatpush1.xpose.msra.mxu0 0.0
    %321 = vmatprep.subr.mxu0 0.0
    %322 = vmatpush1.xpose.msra.mxu0 0.0
    %323 = vmatprep.subr.mxu0 0.0
    %324 = vmatpush1.xpose.msra.mxu0 0.0
    %325 = vmatprep.subr.mxu0 0.0
    %326 = vmatpush1.xpose.msra.mxu0 0.0
    %327 = vmatprep.subr.mxu0 0.0
    %328 = vmatpush1.xpose.msra.mxu0 0.0
    %329 = vmatprep.subr.mxu0 0.0
    %330 = vmatpush1.xpose.msra.mxu0 0.0
    %331 = vmatprep.subr.mxu0 0.0
    %332 = vmatpush1.xpose.msra.mxu0 0.0
    %333 = vmatprep.subr.mxu0 0.0
    %334 = vmatpush1.xpose.msra.mxu0 0.0
    %335 = vmatprep.subr.mxu0 0.0
    %336 = vmatpush1.xpose.msra.mxu0 0.0
    %337 = vmatprep.subr.mxu0 0.0
    %338 = vmatpush1.xpose.msra.mxu0 0.0
    %339 = vmatprep.subr.mxu0 0.0
    %340 = vmatpush1.xpose.msra.mxu0 0.0
    %341 = vmatprep.subr.mxu0 0.0
    %342 = vmatpush1.xpose.msra.mxu0 0.0
    %343 = vmatprep.subr.mxu0 0.0
    %344 = vmatpush1.xpose.msra.mxu0 0.0
    %345 = vmatprep.subr.mxu0 0.0
    %346 = vmatpush1.xpose.msra.mxu0 0.0
    %347 = vmatprep.subr.mxu0 0.0
    %348 = vmatpush1.xpose.msra.mxu0 0.0
    %349 = vmatprep.subr.mxu0 0.0
    %350 = vmatpush1.xpose.msra.mxu0 0.0
    %351 = vmatprep.subr.mxu0 0.0
    %352 = vmatpush1.xpose.msra.mxu0 0.0
    %353 = vmatprep.subr.mxu0 0.0
    %354 = vmatpush1.xpose.msra.mxu0 0.0
    %355 = vmatprep.subr.mxu0 0.0
    %356 = vmatpush1.xpose.msra.mxu0 0.0
    %357 = vmatprep.subr.mxu0 0.0
    %358 = vmatpush1.xpose.msra.mxu0 0.0
    %359 = vmatprep.mubr.f32.mxu0 0.0
    %360 = vmatmul.mubr.f32.gmra.mrb[0].mxu0 %v291
    %v361 = vpop.f32.mrb[0].mxu0
    %v362 = vadd.f32 0.0, %v361
    %v363 = vpop.f32.mrb[0].mxu0
    %364 = vdwg.mxu0
    %366 = vrot.lane.b32.xlu0 %v284, 96
    %v367 = vpop.permute.xlu0 %366
    %v368 = vsel %vm290, %v284, 0
    %v370 = vsel %vm290, %v367, 0
    %372 = vmatprep.subr.mxu0 0.0
    %373 = vmatpush1.xpose.msra.mxu0 %v370
    %374 = vmatprep.subr.mxu0 0.0
    %375 = vmatpush1.xpose.msra.mxu0 0.0
    %376 = vmatprep.subr.mxu0 0.0
    %377 = vmatpush1.xpose.msra.mxu0 0.0
    %378 = vmatprep.subr.mxu0 0.0
    %379 = vmatpush1.xpose.msra.mxu0 0.0
    %380 = vmatprep.subr.mxu0 0.0
    %381 = vmatpush1.xpose.msra.mxu0 0.0
    %382 = vmatprep.subr.mxu0 0.0
    %383 = vmatpush1.xpose.msra.mxu0 0.0
    %384 = vmatprep.subr.mxu0 0.0
    %385 = vmatpush1.xpose.msra.mxu0 0.0
    %386 = vmatprep.subr.mxu0 0.0
    %387 = vmatpush1.xpose.msra.mxu0 0.0
    %388 = vmatprep.subr.mxu0 0.0
    %389 = vmatpush1.xpose.msra.mxu0 0.0
    %390 = vmatprep.subr.mxu0 0.0
    %391 = vmatpush1.xpose.msra.mxu0 0.0
    %392 = vmatprep.subr.mxu0 0.0
    %393 = vmatpush1.xpose.msra.mxu0 0.0
    %394 = vmatprep.subr.mxu0 0.0
    %395 = vmatpush1.xpose.msra.mxu0 0.0
    %396 = vmatprep.subr.mxu0 0.0
    %397 = vmatpush1.xpose.msra.mxu0 0.0
    %398 = vmatprep.subr.mxu0 0.0
    %399 = vmatpush1.xpose.msra.mxu0 0.0
    %400 = vmatprep.subr.mxu0 0.0
    %401 = vmatpush1.xpose.msra.mxu0 0.0
    %402 = vmatprep.subr.mxu0 0.0
    %403 = vmatpush1.xpose.msra.mxu0 0.0
    %404 = vmatprep.subr.mxu0 0.0
    %405 = vmatpush1.xpose.msra.mxu0 0.0
    %406 = vmatprep.subr.mxu0 0.0
    %407 = vmatpush1.xpose.msra.mxu0 0.0
    %408 = vmatprep.subr.mxu0 0.0
    %409 = vmatpush1.xpose.msra.mxu0 0.0
    %410 = vmatprep.subr.mxu0 0.0
    %411 = vmatpush1.xpose.msra.mxu0 0.0
    %412 = vmatprep.subr.mxu0 0.0
    %413 = vmatpush1.xpose.msra.mxu0 0.0
    %414 = vmatprep.subr.mxu0 0.0
    %415 = vmatpush1.xpose.msra.mxu0 0.0
    %416 = vmatprep.subr.mxu0 0.0
    %417 = vmatpush1.xpose.msra.mxu0 0.0
    %418 = vmatprep.subr.mxu0 0.0
    %419 = vmatpush1.xpose.msra.mxu0 0.0
    %420 = vmatprep.subr.mxu0 0.0
    %421 = vmatpush1.xpose.msra.mxu0 0.0
    %422 = vmatprep.subr.mxu0 0.0
    %423 = vmatpush1.xpose.msra.mxu0 0.0
    %424 = vmatprep.subr.mxu0 0.0
    %425 = vmatpush1.xpose.msra.mxu0 0.0
    %426 = vmatprep.subr.mxu0 0.0
    %427 = vmatpush1.xpose.msra.mxu0 0.0
    %428 = vmatprep.subr.mxu0 0.0
    %429 = vmatpush1.xpose.msra.mxu0 0.0
    %430 = vmatprep.subr.mxu0 0.0
    %431 = vmatpush1.xpose.msra.mxu0 0.0
    %432 = vmatprep.subr.mxu0 0.0
    %433 = vmatpush1.xpose.msra.mxu0 0.0
    %434 = vmatprep.subr.mxu0 0.0
    %435 = vmatpush1.xpose.msra.mxu0 0.0
    %436 = vmatprep.mubr.f32.mxu0 0.0
    %437 = vmatmul.mubr.f32.gmra.mrb[0].mxu0 %v368
    %v438 = vpop.f32.mrb[0].mxu0
    %v439 = vadd.f32 0.0, %v438
    %v440 = vpop.f32.mrb[0].mxu0
    %441 = vdwg.mxu0
    %v442 = vmul.f32 %v362, 0.35355338
    %v443 = vmul.f32 %v439, 0.35355338
    %v446 = vunpack.c.l.s4 1966171168
    %v447 = vunpack.c.0.s8 %v446
    %v448 = vlaneseq
    %v449 = vshrl.u32 %v448, 7
    %v450 = vsub.s32 %v447, %v449
    %v451 = vrot.slane %v196, %v450
    %v452 = vcombine.high %v451, %v451
    %v454 = vunpack.c.l.s4 1966171168
    %v455 = vunpack.c.0.s8 %v454
    %v456 = vlaneseq
    %v457 = vshrl.u32 %v456, 7
    %v458 = vsub.s32 %v455, %v457
    %v459 = vrot.slane %v451, %v458
    %v461 = vunpack.c.l.s4 1966171168
    %v462 = vunpack.c.0.s8 %v461
    %v463 = vlaneseq
    %v464 = vshrl.u32 %v463, 7
    %v465 = vsub.s32 %v462, %v464
    %v466 = vrot.slane %v452, %v465
    %v467 = vlaneseq
    %v468 = vshrl.u32 %v467, 7
    %v469 = vsub.s32 0, %v468
    %v470 = vrot.slane %v459, %v469
    %v471 = vlaneseq
    %v472 = vshrl.u32 %v471, 7
    %v473 = vsub.s32 0, %v472
    %v474 = vrot.slane %v466, %v473
    %v477 = vadd.f32 %v442, %v470
    %v478 = vadd.f32 %v443, %v474
    %v479 = vsel %vm290, %v477, -inf
    %480 = vmax.xlane.f32.xlu0 %v479
    %v481 = vpop.xlane.xlu0 %480
    %v482 = vsel %vm290, %v478, -inf
    %483 = vmax.xlane.f32.xlu0 %v482
    %v484 = vpop.xlane.xlu0 %483
    %v485 = vsub.f32 %v477, %v481
    %v486 = vsub.f32 %v478, %v484
    %v487 = vmul.f32 %v485, 1.442695
    %v488 = vpow.pop %v487
    %v489 = vmul.f32 %v486, 1.442695
    %v490 = vpow.pop %v489
    %v491 = vsel %vm290, %v488, 0.0
    %492 = vadd.xlane.f32.xlu0 %v491
    %v493 = vpop.xlane.xlu0 %492
    %v494 = vsel %vm290, %v490, 0.0
    %495 = vadd.xlane.f32.xlu0 %v494
    %v496 = vpop.xlane.xlu0 %495
    %v497 = vrcp.pop %v493
    %v498 = vrcp.pop %v496
    %v499 = vmul.f32 %v493, %v497
    %v500 = vmul.f32 %v496, %v498
    %v501 = vsub.f32 2.0, %v499
    %v502 = vsub.f32 2.0, %v500
    %v503 = vmul.f32 %v497, %v501
    %v504 = vmul.f32 %v498, %v502
    %v505 = vmul.f32 %v488, %v503
    %v506 = vmul.f32 %v490, %v504
    %507 = vrot.lane.b32.xlu0 %v279, 64
    %v508 = vpop.permute.xlu0 %507
    %v511 = vsel %vm290, %v505, 0
    %513 = vmatprep.subr.mxu0 0.0
    %514 = vmatpush1.msra.mxu0 %v508
    %515 = vmatprep.subr.mxu0 0.0
    %516 = vmatpush1.msra.mxu0 0.0
    %517 = vmatprep.subr.mxu0 0.0
    %518 = vmatpush1.msra.mxu0 0.0
    %519 = vmatprep.subr.mxu0 0.0
    %520 = vmatpush1.msra.mxu0 0.0
    %521 = vmatprep.subr.mxu0 0.0
    %522 = vmatpush1.msra.mxu0 0.0
    %523 = vmatprep.subr.mxu0 0.0
    %524 = vmatpush1.msra.mxu0 0.0
    %525 = vmatprep.subr.mxu0 0.0
    %526 = vmatpush1.msra.mxu0 0.0
    %527 = vmatprep.subr.mxu0 0.0
    %528 = vmatpush1.msra.mxu0 0.0
    %529 = vmatprep.subr.mxu0 0.0
    %530 = vmatpush1.msra.mxu0 0.0
    %531 = vmatprep.subr.mxu0 0.0
    %532 = vmatpush1.msra.mxu0 0.0
    %533 = vmatprep.subr.mxu0 0.0
    %534 = vmatpush1.msra.mxu0 0.0
    %535 = vmatprep.subr.mxu0 0.0
    %536 = vmatpush1.msra.mxu0 0.0
    %537 = vmatprep.subr.mxu0 0.0
    %538 = vmatpush1.msra.mxu0 0.0
    %539 = vmatprep.subr.mxu0 0.0
    %540 = vmatpush1.msra.mxu0 0.0
    %541 = vmatprep.subr.mxu0 0.0
    %542 = vmatpush1.msra.mxu0 0.0
    %543 = vmatprep.subr.mxu0 0.0
    %544 = vmatpush1.msra.mxu0 0.0
    %545 = vmatprep.subr.mxu0 0.0
    %546 = vmatpush1.msra.mxu0 0.0
    %547 = vmatprep.subr.mxu0 0.0
    %548 = vmatpush1.msra.mxu0 0.0
    %549 = vmatprep.subr.mxu0 0.0
    %550 = vmatpush1.msra.mxu0 0.0
    %551 = vmatprep.subr.mxu0 0.0
    %552 = vmatpush1.msra.mxu0 0.0
    %553 = vmatprep.subr.mxu0 0.0
    %554 = vmatpush1.msra.mxu0 0.0
    %555 = vmatprep.subr.mxu0 0.0
    %556 = vmatpush1.msra.mxu0 0.0
    %557 = vmatprep.subr.mxu0 0.0
    %558 = vmatpush1.msra.mxu0 0.0
    %559 = vmatprep.subr.mxu0 0.0
    %560 = vmatpush1.msra.mxu0 0.0
    %561 = vmatprep.subr.mxu0 0.0
    %562 = vmatpush1.msra.mxu0 0.0
    %563 = vmatprep.subr.mxu0 0.0
    %564 = vmatpush1.msra.mxu0 0.0
    %565 = vmatprep.subr.mxu0 0.0
    %566 = vmatpush1.msra.mxu0 0.0
    %567 = vmatprep.subr.mxu0 0.0
    %568 = vmatpush1.msra.mxu0 0.0
    %569 = vmatprep.subr.mxu0 0.0
    %570 = vmatpush1.msra.mxu0 0.0
    %571 = vmatprep.subr.mxu0 0.0
    %572 = vmatpush1.msra.mxu0 0.0
    %573 = vmatprep.subr.mxu0 0.0
    %574 = vmatpush1.msra.mxu0 0.0
    %575 = vmatprep.subr.mxu0 0.0
    %576 = vmatpush1.msra.mxu0 0.0
    %577 = vmatprep.mubr.f32.mxu0 0.0
    %578 = vmatmul.mubr.f32.gmra.mrb[0].mxu0 %v511
    %v579 = vpop.f32.mrb[0].mxu0
    %v580 = vadd.f32 0.0, %v579
    %v581 = vpop.f32.mrb[0].mxu0
    %582 = vdwg.mxu0
    %583 = vrot.lane.b32.xlu0 %v284, 64
    %v584 = vpop.permute.xlu0 %583
    %v587 = vsel %vm290, %v506, 0
    %589 = vmatprep.subr.mxu0 0.0
    %590 = vmatpush1.msra.mxu0 %v584
    %591 = vmatprep.subr.mxu0 0.0
    %592 = vmatpush1.msra.mxu0 0.0
    %593 = vmatprep.subr.mxu0 0.0
    %594 = vmatpush1.msra.mxu0 0.0
    %595 = vmatprep.subr.mxu0 0.0
    %596 = vmatpush1.msra.mxu0 0.0
    %597 = vmatprep.subr.mxu0 0.0
    %598 = vmatpush1.msra.mxu0 0.0
    %599 = vmatprep.subr.mxu0 0.0
    %600 = vmatpush1.msra.mxu0 0.0
    %601 = vmatprep.subr.mxu0 0.0
    %602 = vmatpush1.msra.mxu0 0.0
    %603 = vmatprep.subr.mxu0 0.0
    %604 = vmatpush1.msra.mxu0 0.0
    %605 = vmatprep.subr.mxu0 0.0
    %606 = vmatpush1.msra.mxu0 0.0
    %607 = vmatprep.subr.mxu0 0.0
    %608 = vmatpush1.msra.mxu0 0.0
    %609 = vmatprep.subr.mxu0 0.0
    %610 = vmatpush1.msra.mxu0 0.0
    %611 = vmatprep.subr.mxu0 0.0
    %612 = vmatpush1.msra.mxu0 0.0
    %613 = vmatprep.subr.mxu0 0.0
    %614 = vmatpush1.msra.mxu0 0.0
    %615 = vmatprep.subr.mxu0 0.0
    %616 = vmatpush1.msra.mxu0 0.0
    %617 = vmatprep.subr.mxu0 0.0
    %618 = vmatpush1.msra.mxu0 0.0
    %619 = vmatprep.subr.mxu0 0.0
    %620 = vmatpush1.msra.mxu0 0.0
    %621 = vmatprep.subr.mxu0 0.0
    %622 = vmatpush1.msra.mxu0 0.0
    %623 = vmatprep.subr.mxu0 0.0
    %624 = vmatpush1.msra.mxu0 0.0
    %625 = vmatprep.subr.mxu0 0.0
    %626 = vmatpush1.msra.mxu0 0.0
    %627 = vmatprep.subr.mxu0 0.0
    %628 = vmatpush1.msra.mxu0 0.0
    %629 = vmatprep.subr.mxu0 0.0
    %630 = vmatpush1.msra.mxu0 0.0
    %631 = vmatprep.subr.mxu0 0.0
    %632 = vmatpush1.msra.mxu0 0.0
    %633 = vmatprep.subr.mxu0 0.0
    %634 = vmatpush1.msra.mxu0 0.0
    %635 = vmatprep.subr.mxu0 0.0
    %636 = vmatpush1.msra.mxu0 0.0
    %637 = vmatprep.subr.mxu0 0.0
    %638 = vmatpush1.msra.mxu0 0.0
    %639 = vmatprep.subr.mxu0 0.0
    %640 = vmatpush1.msra.mxu0 0.0
    %641 = vmatprep.subr.mxu0 0.0
    %642 = vmatpush1.msra.mxu0 0.0
    %643 = vmatprep.subr.mxu0 0.0
    %644 = vmatpush1.msra.mxu0 0.0
    %645 = vmatprep.subr.mxu0 0.0
    %646 = vmatpush1.msra.mxu0 0.0
    %647 = vmatprep.subr.mxu0 0.0
    %648 = vmatpush1.msra.mxu0 0.0
    %649 = vmatprep.subr.mxu0 0.0
    %650 = vmatpush1.msra.mxu0 0.0
    %651 = vmatprep.subr.mxu0 0.0
    %652 = vmatpush1.msra.mxu0 0.0
    %653 = vmatprep.mubr.f32.mxu0 0.0
    %654 = vmatmul.mubr.f32.gmra.mrb[0].mxu0 %v587
    %v655 = vpop.f32.mrb[0].mxu0
    %v656 = vadd.f32 0.0, %v655
    %v657 = vpop.f32.mrb[0].mxu0
    %658 = vdwg.mxu0
    %659 = vrot.lane.b32.xlu0 %v279, 120
    %v660 = vpop.permute.xlu0 %659
    %661 = vrot.lane.b32.xlu0 %v279, 88
    %v662 = vpop.permute.xlu0 %661
    %v663 = vsel %vm290, %v660, 0
    %v665 = vsel %vm290, %v662, 0
    %667 = vmatprep.subr.mxu0 0.0
    %668 = vmatpush1.xpose.msra.mxu0 %v665
    %669 = vmatprep.subr.mxu0 0.0
    %670 = vmatpush1.xpose.msra.mxu0 0.0
    %671 = vmatprep.subr.mxu0 0.0
    %672 = vmatpush1.xpose.msra.mxu0 0.0
    %673 = vmatprep.subr.mxu0 0.0
    %674 = vmatpush1.xpose.msra.mxu0 0.0
    %675 = vmatprep.subr.mxu0 0.0
    %676 = vmatpush1.xpose.msra.mxu0 0.0
    %677 = vmatprep.subr.mxu0 0.0
    %678 = vmatpush1.xpose.msra.mxu0 0.0
    %679 = vmatprep.subr.mxu0 0.0
    %680 = vmatpush1.xpose.msra.mxu0 0.0
    %681 = vmatprep.subr.mxu0 0.0
    %682 = vmatpush1.xpose.msra.mxu0 0.0
    %683 = vmatprep.subr.mxu0 0.0
    %684 = vmatpush1.xpose.msra.mxu0 0.0
    %685 = vmatprep.subr.mxu0 0.0
    %686 = vmatpush1.xpose.msra.mxu0 0.0
    %687 = vmatprep.subr.mxu0 0.0
    %688 = vmatpush1.xpose.msra.mxu0 0.0
    %689 = vmatprep.subr.mxu0 0.0
    %690 = vmatpush1.xpose.msra.mxu0 0.0
    %691 = vmatprep.subr.mxu0 0.0
    %692 = vmatpush1.xpose.msra.mxu0 0.0
    %693 = vmatprep.subr.mxu0 0.0
    %694 = vmatpush1.xpose.msra.mxu0 0.0
    %695 = vmatprep.subr.mxu0 0.0
    %696 = vmatpush1.xpose.msra.mxu0 0.0
    %697 = vmatprep.subr.mxu0 0.0
    %698 = vmatpush1.xpose.msra.mxu0 0.0
    %699 = vmatprep.subr.mxu0 0.0
    %700 = vmatpush1.xpose.msra.mxu0 0.0
    %701 = vmatprep.subr.mxu0 0.0
    %702 = vmatpush1.xpose.msra.mxu0 0.0
    %703 = vmatprep.subr.mxu0 0.0
    %704 = vmatpush1.xpose.msra.mxu0 0.0
    %705 = vmatprep.subr.mxu0 0.0
    %706 = vmatpush1.xpose.msra.mxu0 0.0
    %707 = vmatprep.subr.mxu0 0.0
    %708 = vmatpush1.xpose.msra.mxu0 0.0
    %709 = vmatprep.subr.mxu0 0.0
    %710 = vmatpush1.xpose.msra.mxu0 0.0
    %711 = vmatprep.subr.mxu0 0.0
    %712 = vmatpush1.xpose.msra.mxu0 0.0
    %713 = vmatprep.subr.mxu0 0.0
    %714 = vmatpush1.xpose.msra.mxu0 0.0
    %715 = vmatprep.subr.mxu0 0.0
    %716 = vmatpush1.xpose.msra.mxu0 0.0
    %717 = vmatprep.subr.mxu0 0.0
    %718 = vmatpush1.xpose.msra.mxu0 0.0
    %719 = vmatprep.subr.mxu0 0.0
    %720 = vmatpush1.xpose.msra.mxu0 0.0
    %721 = vmatprep.subr.mxu0 0.0
    %722 = vmatpush1.xpose.msra.mxu0 0.0
    %723 = vmatprep.subr.mxu0 0.0
    %724 = vmatpush1.xpose.msra.mxu0 0.0
    %725 = vmatprep.subr.mxu0 0.0
    %726 = vmatpush1.xpose.msra.mxu0 0.0
    %727 = vmatprep.subr.mxu0 0.0
    %728 = vmatpush1.xpose.msra.mxu0 0.0
    %729 = vmatprep.subr.mxu0 0.0
    %730 = vmatpush1.xpose.msra.mxu0 0.0
    %731 = vmatprep.mubr.f32.mxu0 0.0
    %732 = vmatmul.mubr.f32.gmra.mrb[0].mxu0 %v663
    %v733 = vpop.f32.mrb[0].mxu0
    %v734 = vadd.f32 0.0, %v733
    %v735 = vpop.f32.mrb[0].mxu0
    %736 = vdwg.mxu0
    %737 = vrot.lane.b32.xlu0 %v284, 120
    %v738 = vpop.permute.xlu0 %737
    %739 = vrot.lane.b32.xlu0 %v284, 88
    %v740 = vpop.permute.xlu0 %739
    %v741 = vsel %vm290, %v738, 0
    %v743 = vsel %vm290, %v740, 0
    %745 = vmatprep.subr.mxu0 0.0
    %746 = vmatpush1.xpose.msra.mxu0 %v743
    %747 = vmatprep.subr.mxu0 0.0
    %748 = vmatpush1.xpose.msra.mxu0 0.0
    %749 = vmatprep.subr.mxu0 0.0
    %750 = vmatpush1.xpose.msra.mxu0 0.0
    %751 = vmatprep.subr.mxu0 0.0
    %752 = vmatpush1.xpose.msra.mxu0 0.0
    %753 = vmatprep.subr.mxu0 0.0
    %754 = vmatpush1.xpose.msra.mxu0 0.0
    %755 = vmatprep.subr.mxu0 0.0
    %756 = vmatpush1.xpose.msra.mxu0 0.0
    %757 = vmatprep.subr.mxu0 0.0
    %758 = vmatpush1.xpose.msra.mxu0 0.0
    %759 = vmatprep.subr.mxu0 0.0
    %760 = vmatpush1.xpose.msra.mxu0 0.0
    %761 = vmatprep.subr.mxu0 0.0
    %762 = vmatpush1.xpose.msra.mxu0 0.0
    %763 = vmatprep.subr.mxu0 0.0
    %764 = vmatpush1.xpose.msra.mxu0 0.0
    %765 = vmatprep.subr.mxu0 0.0
    %766 = vmatpush1.xpose.msra.mxu0 0.0
    %767 = vmatprep.subr.mxu0 0.0
    %768 = vmatpush1.xpose.msra.mxu0 0.0
    %769 = vmatprep.subr.mxu0 0.0
    %770 = vmatpush1.xpose.msra.mxu0 0.0
    %771 = vmatprep.subr.mxu0 0.0
    %772 = vmatpush1.xpose.msra.mxu0 0.0
    %773 = vmatprep.subr.mxu0 0.0
    %774 = vmatpush1.xpose.msra.mxu0 0.0
    %775 = vmatprep.subr.mxu0 0.0
    %776 = vmatpush1.xpose.msra.mxu0 0.0
    %777 = vmatprep.subr.mxu0 0.0
    %778 = vmatpush1.xpose.msra.mxu0 0.0
    %779 = vmatprep.subr.mxu0 0.0
    %780 = vmatpush1.xpose.msra.mxu0 0.0
    %781 = vmatprep.subr.mxu0 0.0
    %782 = vmatpush1.xpose.msra.mxu0 0.0
    %783 = vmatprep.subr.mxu0 0.0
    %784 = vmatpush1.xpose.msra.mxu0 0.0
    %785 = vmatprep.subr.mxu0 0.0
    %786 = vmatpush1.xpose.msra.mxu0 0.0
    %787 = vmatprep.subr.mxu0 0.0
    %788 = vmatpush1.xpose.msra.mxu0 0.0
    %789 = vmatprep.subr.mxu0 0.0
    %790 = vmatpush1.xpose.msra.mxu0 0.0
    %791 = vmatprep.subr.mxu0 0.0
    %792 = vmatpush1.xpose.msra.mxu0 0.0
    %793 = vmatprep.subr.mxu0 0.0
    %794 = vmatpush1.xpose.msra.mxu0 0.0
    %795 = vmatprep.subr.mxu0 0.0
    %796 = vmatpush1.xpose.msra.mxu0 0.0
    %797 = vmatprep.subr.mxu0 0.0
    %798 = vmatpush1.xpose.msra.mxu0 0.0
    %799 = vmatprep.subr.mxu0 0.0
    %800 = vmatpush1.xpose.msra.mxu0 0.0
    %801 = vmatprep.subr.mxu0 0.0
    %802 = vmatpush1.xpose.msra.mxu0 0.0
    %803 = vmatprep.subr.mxu0 0.0
    %804 = vmatpush1.xpose.msra.mxu0 0.0
    %805 = vmatprep.subr.mxu0 0.0
    %806 = vmatpush1.xpose.msra.mxu0 0.0
    %807 = vmatprep.subr.mxu0 0.0
    %808 = vmatpush1.xpose.msra.mxu0 0.0
    %809 = vmatprep.mubr.f32.mxu0 0.0
    %810 = vmatmul.mubr.f32.gmra.mrb[0].mxu0 %v741
    %v811 = vpop.f32.mrb[0].mxu0
    %v812 = vadd.f32 0.0, %v811
    %v813 = vpop.f32.mrb[0].mxu0
    %814 = vdwg.mxu0
    %v815 = vmul.f32 %v734, 0.35355338
    %v816 = vmul.f32 %v812, 0.35355338
    %v817 = vadd.f32 %v815, %v470
    %v818 = vadd.f32 %v816, %v474
    %v819 = vsel %vm290, %v817, -inf
    %820 = vmax.xlane.f32.xlu0 %v819
    %v821 = vpop.xlane.xlu0 %820
    %v822 = vsel %vm290, %v818, -inf
    %823 = vmax.xlane.f32.xlu0 %v822
    %v824 = vpop.xlane.xlu0 %823
    %v825 = vsub.f32 %v817, %v821
    %v826 = vsub.f32 %v818, %v824
    %v827 = vmul.f32 %v825, 1.442695
    %v828 = vpow.pop %v827
    %v829 = vmul.f32 %v826, 1.442695
    %v830 = vpow.pop %v829
    %v831 = vsel %vm290, %v828, 0.0
    %832 = vadd.xlane.f32.xlu0 %v831
    %v833 = vpop.xlane.xlu0 %832
    %v834 = vsel %vm290, %v830, 0.0
    %835 = vadd.xlane.f32.xlu0 %v834
    %v836 = vpop.xlane.xlu0 %835
    %v837 = vrcp.pop %v833
    %v838 = vrcp.pop %v836
    %v839 = vmul.f32 %v833, %v837
    %v840 = vmul.f32 %v836, %v838
    %v841 = vsub.f32 2.0, %v839
    %v842 = vsub.f32 2.0, %v840
    %v843 = vmul.f32 %v837, %v841
    %v844 = vmul.f32 %v838, %v842
    %v845 = vmul.f32 %v828, %v843
    %v846 = vmul.f32 %v830, %v844
    %847 = vrot.lane.b32.xlu0 %v279, 56
    %v848 = vpop.permute.xlu0 %847
    %v851 = vsel %vm290, %v845, 0
    %853 = vmatprep.subr.mxu0 0.0
    %854 = vmatpush1.msra.mxu0 %v848
    %855 = vmatprep.subr.mxu0 0.0
    %856 = vmatpush1.msra.mxu0 0.0
    %857 = vmatprep.subr.mxu0 0.0
    %858 = vmatpush1.msra.mxu0 0.0
    %859 = vmatprep.subr.mxu0 0.0
    %860 = vmatpush1.msra.mxu0 0.0
    %861 = vmatprep.subr.mxu0 0.0
    %862 = vmatpush1.msra.mxu0 0.0
    %863 = vmatprep.subr.mxu0 0.0
    %864 = vmatpush1.msra.mxu0 0.0
    %865 = vmatprep.subr.mxu0 0.0
    %866 = vmatpush1.msra.mxu0 0.0
    %867 = vmatprep.subr.mxu0 0.0
    %868 = vmatpush1.msra.mxu0 0.0
    %869 = vmatprep.subr.mxu0 0.0
    %870 = vmatpush1.msra.mxu0 0.0
    %871 = vmatprep.subr.mxu0 0.0
    %872 = vmatpush1.msra.mxu0 0.0
    %873 = vmatprep.subr.mxu0 0.0
    %874 = vmatpush1.msra.mxu0 0.0
    %875 = vmatprep.subr.mxu0 0.0
    %876 = vmatpush1.msra.mxu0 0.0
    %877 = vmatprep.subr.mxu0 0.0
    %878 = vmatpush1.msra.mxu0 0.0
    %879 = vmatprep.subr.mxu0 0.0
    %880 = vmatpush1.msra.mxu0 0.0
    %881 = vmatprep.subr.mxu0 0.0
    %882 = vmatpush1.msra.mxu0 0.0
    %883 = vmatprep.subr.mxu0 0.0
    %884 = vmatpush1.msra.mxu0 0.0
    %885 = vmatprep.subr.mxu0 0.0
    %886 = vmatpush1.msra.mxu0 0.0
    %887 = vmatprep.subr.mxu0 0.0
    %888 = vmatpush1.msra.mxu0 0.0
    %889 = vmatprep.subr.mxu0 0.0
    %890 = vmatpush1.msra.mxu0 0.0
    %891 = vmatprep.subr.mxu0 0.0
    %892 = vmatpush1.msra.mxu0 0.0
    %893 = vmatprep.subr.mxu0 0.0
    %894 = vmatpush1.msra.mxu0 0.0
    %895 = vmatprep.subr.mxu0 0.0
    %896 = vmatpush1.msra.mxu0 0.0
    %897 = vmatprep.subr.mxu0 0.0
    %898 = vmatpush1.msra.mxu0 0.0
    %899 = vmatprep.subr.mxu0 0.0
    %900 = vmatpush1.msra.mxu0 0.0
    %901 = vmatprep.subr.mxu0 0.0
    %902 = vmatpush1.msra.mxu0 0.0
    %903 = vmatprep.subr.mxu0 0.0
    %904 = vmatpush1.msra.mxu0 0.0
    %905 = vmatprep.subr.mxu0 0.0
    %906 = vmatpush1.msra.mxu0 0.0
    %907 = vmatprep.subr.mxu0 0.0
    %908 = vmatpush1.msra.mxu0 0.0
    %909 = vmatprep.subr.mxu0 0.0
    %910 = vmatpush1.msra.mxu0 0.0
    %911 = vmatprep.subr.mxu0 0.0
    %912 = vmatpush1.msra.mxu0 0.0
    %913 = vmatprep.subr.mxu0 0.0
    %914 = vmatpush1.msra.mxu0 0.0
    %915 = vmatprep.subr.mxu0 0.0
    %916 = vmatpush1.msra.mxu0 0.0
    %917 = vmatprep.mubr.f32.mxu0 0.0
    %918 = vmatmul.mubr.f32.gmra.mrb[0].mxu0 %v851
    %v919 = vpop.f32.mrb[0].mxu0
    %v920 = vadd.f32 0.0, %v919
    %v921 = vpop.f32.mrb[0].mxu0
    %922 = vdwg.mxu0
    %923 = vrot.lane.b32.xlu0 %v284, 56
    %v924 = vpop.permute.xlu0 %923
    %v927 = vsel %vm290, %v846, 0
    %929 = vmatprep.subr.mxu0 0.0
    %930 = vmatpush1.msra.mxu0 %v924
    %931 = vmatprep.subr.mxu0 0.0
    %932 = vmatpush1.msra.mxu0 0.0
    %933 = vmatprep.subr.mxu0 0.0
    %934 = vmatpush1.msra.mxu0 0.0
    %935 = vmatprep.subr.mxu0 0.0
    %936 = vmatpush1.msra.mxu0 0.0
    %937 = vmatprep.subr.mxu0 0.0
    %938 = vmatpush1.msra.mxu0 0.0
    %939 = vmatprep.subr.mxu0 0.0
    %940 = vmatpush1.msra.mxu0 0.0
    %941 = vmatprep.subr.mxu0 0.0
    %942 = vmatpush1.msra.mxu0 0.0
    %943 = vmatprep.subr.mxu0 0.0
    %944 = vmatpush1.msra.mxu0 0.0
    %945 = vmatprep.subr.mxu0 0.0
    %946 = vmatpush1.msra.mxu0 0.0
    %947 = vmatprep.subr.mxu0 0.0
    %948 = vmatpush1.msra.mxu0 0.0
    %949 = vmatprep.subr.mxu0 0.0
    %950 = vmatpush1.msra.mxu0 0.0
    %951 = vmatprep.subr.mxu0 0.0
    %952 = vmatpush1.msra.mxu0 0.0
    %953 = vmatprep.subr.mxu0 0.0
    %954 = vmatpush1.msra.mxu0 0.0
    %955 = vmatprep.subr.mxu0 0.0
    %956 = vmatpush1.msra.mxu0 0.0
    %957 = vmatprep.subr.mxu0 0.0
    %958 = vmatpush1.msra.mxu0 0.0
    %959 = vmatprep.subr.mxu0 0.0
    %960 = vmatpush1.msra.mxu0 0.0
    %961 = vmatprep.subr.mxu0 0.0
    %962 = vmatpush1.msra.mxu0 0.0
    %963 = vmatprep.subr.mxu0 0.0
    %964 = vmatpush1.msra.mxu0 0.0
    %965 = vmatprep.subr.mxu0 0.0
    %966 = vmatpush1.msra.mxu0 0.0
    %967 = vmatprep.subr.mxu0 0.0
    %968 = vmatpush1.msra.mxu0 0.0
    %969 = vmatprep.subr.mxu0 0.0
    %970 = vmatpush1.msra.mxu0 0.0
    %971 = vmatprep.subr.mxu0 0.0
    %972 = vmatpush1.msra.mxu0 0.0
    %973 = vmatprep.subr.mxu0 0.0
    %974 = vmatpush1.msra.mxu0 0.0
    %975 = vmatprep.subr.mxu0 0.0
    %976 = vmatpush1.msra.mxu0 0.0
    %977 = vmatprep.subr.mxu0 0.0
    %978 = vmatpush1.msra.mxu0 0.0
    %979 = vmatprep.subr.mxu0 0.0
    %980 = vmatpush1.msra.mxu0 0.0
    %981 = vmatprep.subr.mxu0 0.0
    %982 = vmatpush1.msra.mxu0 0.0
    %983 = vmatprep.subr.mxu0 0.0
    %984 = vmatpush1.msra.mxu0 0.0
    %985 = vmatprep.subr.mxu0 0.0
    %986 = vmatpush1.msra.mxu0 0.0
    %987 = vmatprep.subr.mxu0 0.0
    %988 = vmatpush1.msra.mxu0 0.0
    %989 = vmatprep.subr.mxu0 0.0
    %990 = vmatpush1.msra.mxu0 0.0
    %991 = vmatprep.subr.mxu0 0.0
    %992 = vmatpush1.msra.mxu0 0.0
    %993 = vmatprep.mubr.f32.mxu0 0.0
    %994 = vmatmul.mubr.f32.gmra.mrb[0].mxu0 %v927
    %v995 = vpop.f32.mrb[0].mxu0
    %v996 = vadd.f32 0.0, %v995
    %v997 = vpop.f32.mrb[0].mxu0
    %998 = vdwg.mxu0
    %999 = vrot.lane.b32.xlu0 %v279, 112
    %v1000 = vpop.permute.xlu0 %999
    %1001 = vrot.lane.b32.xlu0 %v279, 80
    %v1002 = vpop.permute.xlu0 %1001
    %v1003 = vsel %vm290, %v1000, 0
    %v1005 = vsel %vm290, %v1002, 0
    %1007 = vmatprep.subr.mxu0 0.0
    %1008 = vmatpush1.xpose.msra.mxu0 %v1005
    %1009 = vmatprep.subr.mxu0 0.0
    %1010 = vmatpush1.xpose.msra.mxu0 0.0
    %1011 = vmatprep.subr.mxu0 0.0
    %1012 = vmatpush1.xpose.msra.mxu0 0.0
    %1013 = vmatprep.subr.mxu0 0.0
    %1014 = vmatpush1.xpose.msra.mxu0 0.0
    %1015 = vmatprep.subr.mxu0 0.0
    %1016 = vmatpush1.xpose.msra.mxu0 0.0
    %1017 = vmatprep.subr.mxu0 0.0
    %1018 = vmatpush1.xpose.msra.mxu0 0.0
    %1019 = vmatprep.subr.mxu0 0.0
    %1020 = vmatpush1.xpose.msra.mxu0 0.0
    %1021 = vmatprep.subr.mxu0 0.0
    %1022 = vmatpush1.xpose.msra.mxu0 0.0
    %1023 = vmatprep.subr.mxu0 0.0
    %1024 = vmatpush1.xpose.msra.mxu0 0.0
    %1025 = vmatprep.subr.mxu0 0.0
    %1026 = vmatpush1.xpose.msra.mxu0 0.0
    %1027 = vmatprep.subr.mxu0 0.0
    %1028 = vmatpush1.xpose.msra.mxu0 0.0
    %1029 = vmatprep.subr.mxu0 0.0
    %1030 = vmatpush1.xpose.msra.mxu0 0.0
    %1031 = vmatprep.subr.mxu0 0.0
    %1032 = vmatpush1.xpose.msra.mxu0 0.0
    %1033 = vmatprep.subr.mxu0 0.0
    %1034 = vmatpush1.xpose.msra.mxu0 0.0
    %1035 = vmatprep.subr.mxu0 0.0
    %1036 = vmatpush1.xpose.msra.mxu0 0.0
    %1037 = vmatprep.subr.mxu0 0.0
    %1038 = vmatpush1.xpose.msra.mxu0 0.0
    %1039 = vmatprep.subr.mxu0 0.0
    %1040 = vmatpush1.xpose.msra.mxu0 0.0
    %1041 = vmatprep.subr.mxu0 0.0
    %1042 = vmatpush1.xpose.msra.mxu0 0.0
    %1043 = vmatprep.subr.mxu0 0.0
    %1044 = vmatpush1.xpose.msra.mxu0 0.0
    %1045 = vmatprep.subr.mxu0 0.0
    %1046 = vmatpush1.xpose.msra.mxu0 0.0
    %1047 = vmatprep.subr.mxu0 0.0
    %1048 = vmatpush1.xpose.msra.mxu0 0.0
    %1049 = vmatprep.subr.mxu0 0.0
    %1050 = vmatpush1.xpose.msra.mxu0 0.0
    %1051 = vmatprep.subr.mxu0 0.0
    %1052 = vmatpush1.xpose.msra.mxu0 0.0
    %1053 = vmatprep.subr.mxu0 0.0
    %1054 = vmatpush1.xpose.msra.mxu0 0.0
    %1055 = vmatprep.subr.mxu0 0.0
    %1056 = vmatpush1.xpose.msra.mxu0 0.0
    %1057 = vmatprep.subr.mxu0 0.0
    %1058 = vmatpush1.xpose.msra.mxu0 0.0
    %1059 = vmatprep.subr.mxu0 0.0
    %1060 = vmatpush1.xpose.msra.mxu0 0.0
    %1061 = vmatprep.subr.mxu0 0.0
    %1062 = vmatpush1.xpose.msra.mxu0 0.0
    %1063 = vmatprep.subr.mxu0 0.0
    %1064 = vmatpush1.xpose.msra.mxu0 0.0
    %1065 = vmatprep.subr.mxu0 0.0
    %1066 = vmatpush1.xpose.msra.mxu0 0.0
    %1067 = vmatprep.subr.mxu0 0.0
    %1068 = vmatpush1.xpose.msra.mxu0 0.0
    %1069 = vmatprep.subr.mxu0 0.0
    %1070 = vmatpush1.xpose.msra.mxu0 0.0
    %1071 = vmatprep.mubr.f32.mxu0 0.0
    %1072 = vmatmul.mubr.f32.gmra.mrb[0].mxu0 %v1003
    %v1073 = vpop.f32.mrb[0].mxu0
    %v1074 = vadd.f32 0.0, %v1073
    %v1075 = vpop.f32.mrb[0].mxu0
    %1076 = vdwg.mxu0
    %1077 = vrot.lane.b32.xlu0 %v284, 112
    %v1078 = vpop.permute.xlu0 %1077
    %1079 = vrot.lane.b32.xlu0 %v284, 80
    %v1080 = vpop.permute.xlu0 %1079
    %v1081 = vsel %vm290, %v1078, 0
    %v1083 = vsel %vm290, %v1080, 0
    %1085 = vmatprep.subr.mxu0 0.0
    %1086 = vmatpush1.xpose.msra.mxu0 %v1083
    %1087 = vmatprep.subr.mxu0 0.0
    %1088 = vmatpush1.xpose.msra.mxu0 0.0
    %1089 = vmatprep.subr.mxu0 0.0
    %1090 = vmatpush1.xpose.msra.mxu0 0.0
    %1091 = vmatprep.subr.mxu0 0.0
    %1092 = vmatpush1.xpose.msra.mxu0 0.0
    %1093 = vmatprep.subr.mxu0 0.0
    %1094 = vmatpush1.xpose.msra.mxu0 0.0
    %1095 = vmatprep.subr.mxu0 0.0
    %1096 = vmatpush1.xpose.msra.mxu0 0.0
    %1097 = vmatprep.subr.mxu0 0.0
    %1098 = vmatpush1.xpose.msra.mxu0 0.0
    %1099 = vmatprep.subr.mxu0 0.0
    %1100 = vmatpush1.xpose.msra.mxu0 0.0
    %1101 = vmatprep.subr.mxu0 0.0
    %1102 = vmatpush1.xpose.msra.mxu0 0.0
    %1103 = vmatprep.subr.mxu0 0.0
    %1104 = vmatpush1.xpose.msra.mxu0 0.0
    %1105 = vmatprep.subr.mxu0 0.0
    %1106 = vmatpush1.xpose.msra.mxu0 0.0
    %1107 = vmatprep.subr.mxu0 0.0
    %1108 = vmatpush1.xpose.msra.mxu0 0.0
    %1109 = vmatprep.subr.mxu0 0.0
    %1110 = vmatpush1.xpose.msra.mxu0 0.0
    %1111 = vmatprep.subr.mxu0 0.0
    %1112 = vmatpush1.xpose.msra.mxu0 0.0
    %1113 = vmatprep.subr.mxu0 0.0
    %1114 = vmatpush1.xpose.msra.mxu0 0.0
    %1115 = vmatprep.subr.mxu0 0.0
    %1116 = vmatpush1.xpose.msra.mxu0 0.0
    %1117 = vmatprep.subr.mxu0 0.0
    %1118 = vmatpush1.xpose.msra.mxu0 0.0
    %1119 = vmatprep.subr.mxu0 0.0
    %1120 = vmatpush1.xpose.msra.mxu0 0.0
    %1121 = vmatprep.subr.mxu0 0.0
    %1122 = vmatpush1.xpose.msra.mxu0 0.0
    %1123 = vmatprep.subr.mxu0 0.0
    %1124 = vmatpush1.xpose.msra.mxu0 0.0
    %1125 = vmatprep.subr.mxu0 0.0
    %1126 = vmatpush1.xpose.msra.mxu0 0.0
    %1127 = vmatprep.subr.mxu0 0.0
    %1128 = vmatpush1.xpose.msra.mxu0 0.0
    %1129 = vmatprep.subr.mxu0 0.0
    %1130 = vmatpush1.xpose.msra.mxu0 0.0
    %1131 = vmatprep.subr.mxu0 0.0
    %1132 = vmatpush1.xpose.msra.mxu0 0.0
    %1133 = vmatprep.subr.mxu0 0.0
    %1134 = vmatpush1.xpose.msra.mxu0 0.0
    %1135 = vmatprep.subr.mxu0 0.0
    %1136 = vmatpush1.xpose.msra.mxu0 0.0
    %1137 = vmatprep.subr.mxu0 0.0
    %1138 = vmatpush1.xpose.msra.mxu0 0.0
    %1139 = vmatprep.subr.mxu0 0.0
    %1140 = vmatpush1.xpose.msra.mxu0 0.0
    %1141 = vmatprep.subr.mxu0 0.0
    %1142 = vmatpush1.xpose.msra.mxu0 0.0
    %1143 = vmatprep.subr.mxu0 0.0
    %1144 = vmatpush1.xpose.msra.mxu0 0.0
    %1145 = vmatprep.subr.mxu0 0.0
    %1146 = vmatpush1.xpose.msra.mxu0 0.0
    %1147 = vmatprep.subr.mxu0 0.0
    %1148 = vmatpush1.xpose.msra.mxu0 0.0
    %1149 = vmatprep.mubr.f32.mxu0 0.0
    %1150 = vmatmul.mubr.f32.gmra.mrb[0].mxu0 %v1081
    %v1151 = vpop.f32.mrb[0].mxu0
    %v1152 = vadd.f32 0.0, %v1151
    %v1153 = vpop.f32.mrb[0].mxu0
    %1154 = vdwg.mxu0
    %v1155 = vmul.f32 %v1074, 0.35355338
    %v1156 = vmul.f32 %v1152, 0.35355338
    %v1157 = vadd.f32 %v1155, %v470
    %v1158 = vadd.f32 %v1156, %v474
    %v1159 = vsel %vm290, %v1157, -inf
    %1160 = vmax.xlane.f32.xlu0 %v1159
    %v1161 = vpop.xlane.xlu0 %1160
    %v1162 = vsel %vm290, %v1158, -inf
    %1163 = vmax.xlane.f32.xlu0 %v1162
    %v1164 = vpop.xlane.xlu0 %1163
    %v1165 = vsub.f32 %v1157, %v1161
    %v1166 = vsub.f32 %v1158, %v1164
    %v1167 = vmul.f32 %v1165, 1.442695
    %v1168 = vpow.pop %v1167
    %v1169 = vmul.f32 %v1166, 1.442695
    %v1170 = vpow.pop %v1169
    %v1171 = vsel %vm290, %v1168, 0.0
    %1172 = vadd.xlane.f32.xlu0 %v1171
    %v1173 = vpop.xlane.xlu0 %1172
    %v1174 = vsel %vm290, %v1170, 0.0
    %1175 = vadd.xlane.f32.xlu0 %v1174
    %v1176 = vpop.xlane.xlu0 %1175
    %v1177 = vrcp.pop %v1173
    %v1178 = vrcp.pop %v1176
    %v1179 = vmul.f32 %v1173, %v1177
    %v1180 = vmul.f32 %v1176, %v1178
    %v1181 = vsub.f32 2.0, %v1179
    %v1182 = vsub.f32 2.0, %v1180
    %v1183 = vmul.f32 %v1177, %v1181
    %v1184 = vmul.f32 %v1178, %v1182
    %v1185 = vmul.f32 %v1168, %v1183
    %v1186 = vmul.f32 %v1170, %v1184
    %1187 = vrot.lane.b32.xlu0 %v279, 48
    %v1188 = vpop.permute.xlu0 %1187
    %v1191 = vsel %vm290, %v1185, 0
    %1193 = vmatprep.subr.mxu0 0.0
    %1194 = vmatpush1.msra.mxu0 %v1188
    %1195 = vmatprep.subr.mxu0 0.0
    %1196 = vmatpush1.msra.mxu0 0.0
    %1197 = vmatprep.subr.mxu0 0.0
    %1198 = vmatpush1.msra.mxu0 0.0
    %1199 = vmatprep.subr.mxu0 0.0
    %1200 = vmatpush1.msra.mxu0 0.0
    %1201 = vmatprep.subr.mxu0 0.0
    %1202 = vmatpush1.msra.mxu0 0.0
    %1203 = vmatprep.subr.mxu0 0.0
    %1204 = vmatpush1.msra.mxu0 0.0
    %1205 = vmatprep.subr.mxu0 0.0
    %1206 = vmatpush1.msra.mxu0 0.0
    %1207 = vmatprep.subr.mxu0 0.0
    %1208 = vmatpush1.msra.mxu0 0.0
    %1209 = vmatprep.subr.mxu0 0.0
    %1210 = vmatpush1.msra.mxu0 0.0
    %1211 = vmatprep.subr.mxu0 0.0
    %1212 = vmatpush1.msra.mxu0 0.0
    %1213 = vmatprep.subr.mxu0 0.0
    %1214 = vmatpush1.msra.mxu0 0.0
    %1215 = vmatprep.subr.mxu0 0.0
    %1216 = vmatpush1.msra.mxu0 0.0
    %1217 = vmatprep.subr.mxu0 0.0
    %1218 = vmatpush1.msra.mxu0 0.0
    %1219 = vmatprep.subr.mxu0 0.0
    %1220 = vmatpush1.msra.mxu0 0.0
    %1221 = vmatprep.subr.mxu0 0.0
    %1222 = vmatpush1.msra.mxu0 0.0
    %1223 = vmatprep.subr.mxu0 0.0
    %1224 = vmatpush1.msra.mxu0 0.0
    %1225 = vmatprep.subr.mxu0 0.0
    %1226 = vmatpush1.msra.mxu0 0.0
    %1227 = vmatprep.subr.mxu0 0.0
    %1228 = vmatpush1.msra.mxu0 0.0
    %1229 = vmatprep.subr.mxu0 0.0
    %1230 = vmatpush1.msra.mxu0 0.0
    %1231 = vmatprep.subr.mxu0 0.0
    %1232 = vmatpush1.msra.mxu0 0.0
    %1233 = vmatprep.subr.mxu0 0.0
    %1234 = vmatpush1.msra.mxu0 0.0
    %1235 = vmatprep.subr.mxu0 0.0
    %1236 = vmatpush1.msra.mxu0 0.0
    %1237 = vmatprep.subr.mxu0 0.0
    %1238 = vmatpush1.msra.mxu0 0.0
    %1239 = vmatprep.subr.mxu0 0.0
    %1240 = vmatpush1.msra.mxu0 0.0
    %1241 = vmatprep.subr.mxu0 0.0
    %1242 = vmatpush1.msra.mxu0 0.0
    %1243 = vmatprep.subr.mxu0 0.0
    %1244 = vmatpush1.msra.mxu0 0.0
    %1245 = vmatprep.subr.mxu0 0.0
    %1246 = vmatpush1.msra.mxu0 0.0
    %1247 = vmatprep.subr.mxu0 0.0
    %1248 = vmatpush1.msra.mxu0 0.0
    %1249 = vmatprep.subr.mxu0 0.0
    %1250 = vmatpush1.msra.mxu0 0.0
    %1251 = vmatprep.subr.mxu0 0.0
    %1252 = vmatpush1.msra.mxu0 0.0
    %1253 = vmatprep.subr.mxu0 0.0
    %1254 = vmatpush1.msra.mxu0 0.0
    %1255 = vmatprep.subr.mxu0 0.0
    %1256 = vmatpush1.msra.mxu0 0.0
    %1257 = vmatprep.mubr.f32.mxu0 0.0
    %1258 = vmatmul.mubr.f32.gmra.mrb[0].mxu0 %v1191
    %v1259 = vpop.f32.mrb[0].mxu0
    %v1260 = vadd.f32 0.0, %v1259
    %v1261 = vpop.f32.mrb[0].mxu0
    %1262 = vdwg.mxu0
    %1263 = vrot.lane.b32.xlu0 %v284, 48
    %v1264 = vpop.permute.xlu0 %1263
    %v1267 = vsel %vm290, %v1186, 0
    %1269 = vmatprep.subr.mxu0 0.0
    %1270 = vmatpush1.msra.mxu0 %v1264
    %1271 = vmatprep.subr.mxu0 0.0
    %1272 = vmatpush1.msra.mxu0 0.0
    %1273 = vmatprep.subr.mxu0 0.0
    %1274 = vmatpush1.msra.mxu0 0.0
    %1275 = vmatprep.subr.mxu0 0.0
    %1276 = vmatpush1.msra.mxu0 0.0
    %1277 = vmatprep.subr.mxu0 0.0
    %1278 = vmatpush1.msra.mxu0 0.0
    %1279 = vmatprep.subr.mxu0 0.0
    %1280 = vmatpush1.msra.mxu0 0.0
    %1281 = vmatprep.subr.mxu0 0.0
    %1282 = vmatpush1.msra.mxu0 0.0
    %1283 = vmatprep.subr.mxu0 0.0
    %1284 = vmatpush1.msra.mxu0 0.0
    %1285 = vmatprep.subr.mxu0 0.0
    %1286 = vmatpush1.msra.mxu0 0.0
    %1287 = vmatprep.subr.mxu0 0.0
    %1288 = vmatpush1.msra.mxu0 0.0
    %1289 = vmatprep.subr.mxu0 0.0
    %1290 = vmatpush1.msra.mxu0 0.0
    %1291 = vmatprep.subr.mxu0 0.0
    %1292 = vmatpush1.msra.mxu0 0.0
    %1293 = vmatprep.subr.mxu0 0.0
    %1294 = vmatpush1.msra.mxu0 0.0
    %1295 = vmatprep.subr.mxu0 0.0
    %1296 = vmatpush1.msra.mxu0 0.0
    %1297 = vmatprep.subr.mxu0 0.0
    %1298 = vmatpush1.msra.mxu0 0.0
    %1299 = vmatprep.subr.mxu0 0.0
    %1300 = vmatpush1.msra.mxu0 0.0
    %1301 = vmatprep.subr.mxu0 0.0
    %1302 = vmatpush1.msra.mxu0 0.0
    %1303 = vmatprep.subr.mxu0 0.0
    %1304 = vmatpush1.msra.mxu0 0.0
    %1305 = vmatprep.subr.mxu0 0.0
    %1306 = vmatpush1.msra.mxu0 0.0
    %1307 = vmatprep.subr.mxu0 0.0
    %1308 = vmatpush1.msra.mxu0 0.0
    %1309 = vmatprep.subr.mxu0 0.0
    %1310 = vmatpush1.msra.mxu0 0.0
    %1311 = vmatprep.subr.mxu0 0.0
    %1312 = vmatpush1.msra.mxu0 0.0
    %1313 = vmatprep.subr.mxu0 0.0
    %1314 = vmatpush1.msra.mxu0 0.0
    %1315 = vmatprep.subr.mxu0 0.0
    %1316 = vmatpush1.msra.mxu0 0.0
    %1317 = vmatprep.subr.mxu0 0.0
    %1318 = vmatpush1.msra.mxu0 0.0
    %1319 = vmatprep.subr.mxu0 0.0
    %1320 = vmatpush1.msra.mxu0 0.0
    %1321 = vmatprep.subr.mxu0 0.0
    %1322 = vmatpush1.msra.mxu0 0.0
    %1323 = vmatprep.subr.mxu0 0.0
    %1324 = vmatpush1.msra.mxu0 0.0
    %1325 = vmatprep.subr.mxu0 0.0
    %1326 = vmatpush1.msra.mxu0 0.0
    %1327 = vmatprep.subr.mxu0 0.0
    %1328 = vmatpush1.msra.mxu0 0.0
    %1329 = vmatprep.subr.mxu0 0.0
    %1330 = vmatpush1.msra.mxu0 0.0
    %1331 = vmatprep.subr.mxu0 0.0
    %1332 = vmatpush1.msra.mxu0 0.0
    %1333 = vmatprep.mubr.f32.mxu0 0.0
    %1334 = vmatmul.mubr.f32.gmra.mrb[0].mxu0 %v1267
    %v1335 = vpop.f32.mrb[0].mxu0
    %v1336 = vadd.f32 0.0, %v1335
    %v1337 = vpop.f32.mrb[0].mxu0
    %1338 = vdwg.mxu0
    %1339 = vrot.lane.b32.xlu0 %v279, 104
    %v1340 = vpop.permute.xlu0 %1339
    %1341 = vrot.lane.b32.xlu0 %v279, 72
    %v1342 = vpop.permute.xlu0 %1341
    %v1343 = vsel %vm290, %v1340, 0
    %v1345 = vsel %vm290, %v1342, 0
    %1347 = vmatprep.subr.mxu0 0.0
    %1348 = vmatpush1.xpose.msra.mxu0 %v1345
    %1349 = vmatprep.subr.mxu0 0.0
    %1350 = vmatpush1.xpose.msra.mxu0 0.0
    %1351 = vmatprep.subr.mxu0 0.0
    %1352 = vmatpush1.xpose.msra.mxu0 0.0
    %1353 = vmatprep.subr.mxu0 0.0
    %1354 = vmatpush1.xpose.msra.mxu0 0.0
    %1355 = vmatprep.subr.mxu0 0.0
    %1356 = vmatpush1.xpose.msra.mxu0 0.0
    %1357 = vmatprep.subr.mxu0 0.0
    %1358 = vmatpush1.xpose.msra.mxu0 0.0
    %1359 = vmatprep.subr.mxu0 0.0
    %1360 = vmatpush1.xpose.msra.mxu0 0.0
    %1361 = vmatprep.subr.mxu0 0.0
    %1362 = vmatpush1.xpose.msra.mxu0 0.0
    %1363 = vmatprep.subr.mxu0 0.0
    %1364 = vmatpush1.xpose.msra.mxu0 0.0
    %1365 = vmatprep.subr.mxu0 0.0
    %1366 = vmatpush1.xpose.msra.mxu0 0.0
    %1367 = vmatprep.subr.mxu0 0.0
    %1368 = vmatpush1.xpose.msra.mxu0 0.0
    %1369 = vmatprep.subr.mxu0 0.0
    %1370 = vmatpush1.xpose.msra.mxu0 0.0
    %1371 = vmatprep.subr.mxu0 0.0
    %1372 = vmatpush1.xpose.msra.mxu0 0.0
    %1373 = vmatprep.subr.mxu0 0.0
    %1374 = vmatpush1.xpose.msra.mxu0 0.0
    %1375 = vmatprep.subr.mxu0 0.0
    %1376 = vmatpush1.xpose.msra.mxu0 0.0
    %1377 = vmatprep.subr.mxu0 0.0
    %1378 = vmatpush1.xpose.msra.mxu0 0.0
    %1379 = vmatprep.subr.mxu0 0.0
    %1380 = vmatpush1.xpose.msra.mxu0 0.0
    %1381 = vmatprep.subr.mxu0 0.0
    %1382 = vmatpush1.xpose.msra.mxu0 0.0
    %1383 = vmatprep.subr.mxu0 0.0
    %1384 = vmatpush1.xpose.msra.mxu0 0.0
    %1385 = vmatprep.subr.mxu0 0.0
    %1386 = vmatpush1.xpose.msra.mxu0 0.0
    %1387 = vmatprep.subr.mxu0 0.0
    %1388 = vmatpush1.xpose.msra.mxu0 0.0
    %1389 = vmatprep.subr.mxu0 0.0
    %1390 = vmatpush1.xpose.msra.mxu0 0.0
    %1391 = vmatprep.subr.mxu0 0.0
    %1392 = vmatpush1.xpose.msra.mxu0 0.0
    %1393 = vmatprep.subr.mxu0 0.0
    %1394 = vmatpush1.xpose.msra.mxu0 0.0
    %1395 = vmatprep.subr.mxu0 0.0
    %1396 = vmatpush1.xpose.msra.mxu0 0.0
    %1397 = vmatprep.subr.mxu0 0.0
    %1398 = vmatpush1.xpose.msra.mxu0 0.0
    %1399 = vmatprep.subr.mxu0 0.0
    %1400 = vmatpush1.xpose.msra.mxu0 0.0
    %1401 = vmatprep.subr.mxu0 0.0
    %1402 = vmatpush1.xpose.msra.mxu0 0.0
    %1403 = vmatprep.subr.mxu0 0.0
    %1404 = vmatpush1.xpose.msra.mxu0 0.0
    %1405 = vmatprep.subr.mxu0 0.0
    %1406 = vmatpush1.xpose.msra.mxu0 0.0
    %1407 = vmatprep.subr.mxu0 0.0
    %1408 = vmatpush1.xpose.msra.mxu0 0.0
    %1409 = vmatprep.subr.mxu0 0.0
    %1410 = vmatpush1.xpose.msra.mxu0 0.0
    %1411 = vmatprep.mubr.f32.mxu0 0.0
    %1412 = vmatmul.mubr.f32.gmra.mrb[0].mxu0 %v1343
    %v1413 = vpop.f32.mrb[0].mxu0
    %v1414 = vadd.f32 0.0, %v1413
    %v1415 = vpop.f32.mrb[0].mxu0
    %1416 = vdwg.mxu0
    %1417 = vrot.lane.b32.xlu0 %v284, 104
    %v1418 = vpop.permute.xlu0 %1417
    %1419 = vrot.lane.b32.xlu0 %v284, 72
    %v1420 = vpop.permute.xlu0 %1419
    %v1421 = vsel %vm290, %v1418, 0
    %v1423 = vsel %vm290, %v1420, 0
    %1425 = vmatprep.subr.mxu0 0.0
    %1426 = vmatpush1.xpose.msra.mxu0 %v1423
    %1427 = vmatprep.subr.mxu0 0.0
    %1428 = vmatpush1.xpose.msra.mxu0 0.0
    %1429 = vmatprep.subr.mxu0 0.0
    %1430 = vmatpush1.xpose.msra.mxu0 0.0
    %1431 = vmatprep.subr.mxu0 0.0
    %1432 = vmatpush1.xpose.msra.mxu0 0.0
    %1433 = vmatprep.subr.mxu0 0.0
    %1434 = vmatpush1.xpose.msra.mxu0 0.0
    %1435 = vmatprep.subr.mxu0 0.0
    %1436 = vmatpush1.xpose.msra.mxu0 0.0
    %1437 = vmatprep.subr.mxu0 0.0
    %1438 = vmatpush1.xpose.msra.mxu0 0.0
    %1439 = vmatprep.subr.mxu0 0.0
    %1440 = vmatpush1.xpose.msra.mxu0 0.0
    %1441 = vmatprep.subr.mxu0 0.0
    %1442 = vmatpush1.xpose.msra.mxu0 0.0
    %1443 = vmatprep.subr.mxu0 0.0
    %1444 = vmatpush1.xpose.msra.mxu0 0.0
    %1445 = vmatprep.subr.mxu0 0.0
    %1446 = vmatpush1.xpose.msra.mxu0 0.0
    %1447 = vmatprep.subr.mxu0 0.0
    %1448 = vmatpush1.xpose.msra.mxu0 0.0
    %1449 = vmatprep.subr.mxu0 0.0
    %1450 = vmatpush1.xpose.msra.mxu0 0.0
    %1451 = vmatprep.subr.mxu0 0.0
    %1452 = vmatpush1.xpose.msra.mxu0 0.0
    %1453 = vmatprep.subr.mxu0 0.0
    %1454 = vmatpush1.xpose.msra.mxu0 0.0
    %1455 = vmatprep.subr.mxu0 0.0
    %1456 = vmatpush1.xpose.msra.mxu0 0.0
    %1457 = vmatprep.subr.mxu0 0.0
    %1458 = vmatpush1.xpose.msra.mxu0 0.0
    %1459 = vmatprep.subr.mxu0 0.0
    %1460 = vmatpush1.xpose.msra.mxu0 0.0
    %1461 = vmatprep.subr.mxu0 0.0
    %1462 = vmatpush1.xpose.msra.mxu0 0.0
    %1463 = vmatprep.subr.mxu0 0.0
    %1464 = vmatpush1.xpose.msra.mxu0 0.0
    %1465 = vmatprep.subr.mxu0 0.0
    %1466 = vmatpush1.xpose.msra.mxu0 0.0
    %1467 = vmatprep.subr.mxu0 0.0
    %1468 = vmatpush1.xpose.msra.mxu0 0.0
    %1469 = vmatprep.subr.mxu0 0.0
    %1470 = vmatpush1.xpose.msra.mxu0 0.0
    %1471 = vmatprep.subr.mxu0 0.0
    %1472 = vmatpush1.xpose.msra.mxu0 0.0
    %1473 = vmatprep.subr.mxu0 0.0
    %1474 = vmatpush1.xpose.msra.mxu0 0.0
    %1475 = vmatprep.subr.mxu0 0.0
    %1476 = vmatpush1.xpose.msra.mxu0 0.0
    %1477 = vmatprep.subr.mxu0 0.0
    %1478 = vmatpush1.xpose.msra.mxu0 0.0
    %1479 = vmatprep.subr.mxu0 0.0
    %1480 = vmatpush1.xpose.msra.mxu0 0.0
    %1481 = vmatprep.subr.mxu0 0.0
    %1482 = vmatpush1.xpose.msra.mxu0 0.0
    %1483 = vmatprep.subr.mxu0 0.0
    %1484 = vmatpush1.xpose.msra.mxu0 0.0
    %1485 = vmatprep.subr.mxu0 0.0
    %1486 = vmatpush1.xpose.msra.mxu0 0.0
    %1487 = vmatprep.subr.mxu0 0.0
    %1488 = vmatpush1.xpose.msra.mxu0 0.0
    %1489 = vmatprep.mubr.f32.mxu0 0.0
    %1490 = vmatmul.mubr.f32.gmra.mrb[0].mxu0 %v1421
    %v1491 = vpop.f32.mrb[0].mxu0
    %v1492 = vadd.f32 0.0, %v1491
    %v1493 = vpop.f32.mrb[0].mxu0
    %1494 = vdwg.mxu0
    %v1495 = vmul.f32 %v1414, 0.35355338
    %v1496 = vmul.f32 %v1492, 0.35355338
    %v1497 = vadd.f32 %v1495, %v470
    %v1498 = vadd.f32 %v1496, %v474
    %v1499 = vsel %vm290, %v1497, -inf
    %1500 = vmax.xlane.f32.xlu0 %v1499
    %v1501 = vpop.xlane.xlu0 %1500
    %v1502 = vsel %vm290, %v1498, -inf
    %1503 = vmax.xlane.f32.xlu0 %v1502
    %v1504 = vpop.xlane.xlu0 %1503
    %v1505 = vsub.f32 %v1497, %v1501
    %v1506 = vsub.f32 %v1498, %v1504
    %v1507 = vmul.f32 %v1505, 1.442695
    %v1508 = vpow.pop %v1507
    %v1509 = vmul.f32 %v1506, 1.442695
    %v1510 = vpow.pop %v1509
    %v1511 = vsel %vm290, %v1508, 0.0
    %1512 = vadd.xlane.f32.xlu0 %v1511
    %v1513 = vpop.xlane.xlu0 %1512
    %v1514 = vsel %vm290, %v1510, 0.0
    %1515 = vadd.xlane.f32.xlu0 %v1514
    %v1516 = vpop.xlane.xlu0 %1515
    %v1517 = vrcp.pop %v1513
    %v1518 = vrcp.pop %v1516
    %v1519 = vmul.f32 %v1513, %v1517
    %v1520 = vmul.f32 %v1516, %v1518
    %v1521 = vsub.f32 2.0, %v1519
    %v1522 = vsub.f32 2.0, %v1520
    %v1523 = vmul.f32 %v1517, %v1521
    %v1524 = vmul.f32 %v1518, %v1522
    %v1525 = vmul.f32 %v1508, %v1523
    %v1526 = vmul.f32 %v1510, %v1524
    %1527 = vrot.lane.b32.xlu0 %v279, 40
    %v1528 = vpop.permute.xlu0 %1527
    %v1531 = vsel %vm290, %v1525, 0
    %1533 = vmatprep.subr.mxu0 0.0
    %1534 = vmatpush1.msra.mxu0 %v1528
    %1535 = vmatprep.subr.mxu0 0.0
    %1536 = vmatpush1.msra.mxu0 0.0
    %1537 = vmatprep.subr.mxu0 0.0
    %1538 = vmatpush1.msra.mxu0 0.0
    %1539 = vmatprep.subr.mxu0 0.0
    %1540 = vmatpush1.msra.mxu0 0.0
    %1541 = vmatprep.subr.mxu0 0.0
    %1542 = vmatpush1.msra.mxu0 0.0
    %1543 = vmatprep.subr.mxu0 0.0
    %1544 = vmatpush1.msra.mxu0 0.0
    %1545 = vmatprep.subr.mxu0 0.0
    %1546 = vmatpush1.msra.mxu0 0.0
    %1547 = vmatprep.subr.mxu0 0.0
    %1548 = vmatpush1.msra.mxu0 0.0
    %1549 = vmatprep.subr.mxu0 0.0
    %1550 = vmatpush1.msra.mxu0 0.0
    %1551 = vmatprep.subr.mxu0 0.0
    %1552 = vmatpush1.msra.mxu0 0.0
    %1553 = vmatprep.subr.mxu0 0.0
    %1554 = vmatpush1.msra.mxu0 0.0
    %1555 = vmatprep.subr.mxu0 0.0
    %1556 = vmatpush1.msra.mxu0 0.0
    %1557 = vmatprep.subr.mxu0 0.0
    %1558 = vmatpush1.msra.mxu0 0.0
    %1559 = vmatprep.subr.mxu0 0.0
    %1560 = vmatpush1.msra.mxu0 0.0
    %1561 = vmatprep.subr.mxu0 0.0
    %1562 = vmatpush1.msra.mxu0 0.0
    %1563 = vmatprep.subr.mxu0 0.0
    %1564 = vmatpush1.msra.mxu0 0.0
    %1565 = vmatprep.subr.mxu0 0.0
    %1566 = vmatpush1.msra.mxu0 0.0
    %1567 = vmatprep.subr.mxu0 0.0
    %1568 = vmatpush1.msra.mxu0 0.0
    %1569 = vmatprep.subr.mxu0 0.0
    %1570 = vmatpush1.msra.mxu0 0.0
    %1571 = vmatprep.subr.mxu0 0.0
    %1572 = vmatpush1.msra.mxu0 0.0
    %1573 = vmatprep.subr.mxu0 0.0
    %1574 = vmatpush1.msra.mxu0 0.0
    %1575 = vmatprep.subr.mxu0 0.0
    %1576 = vmatpush1.msra.mxu0 0.0
    %1577 = vmatprep.subr.mxu0 0.0
    %1578 = vmatpush1.msra.mxu0 0.0
    %1579 = vmatprep.subr.mxu0 0.0
    %1580 = vmatpush1.msra.mxu0 0.0
    %1581 = vmatprep.subr.mxu0 0.0
    %1582 = vmatpush1.msra.mxu0 0.0
    %1583 = vmatprep.subr.mxu0 0.0
    %1584 = vmatpush1.msra.mxu0 0.0
    %1585 = vmatprep.subr.mxu0 0.0
    %1586 = vmatpush1.msra.mxu0 0.0
    %1587 = vmatprep.subr.mxu0 0.0
    %1588 = vmatpush1.msra.mxu0 0.0
    %1589 = vmatprep.subr.mxu0 0.0
    %1590 = vmatpush1.msra.mxu0 0.0
    %1591 = vmatprep.subr.mxu0 0.0
    %1592 = vmatpush1.msra.mxu0 0.0
    %1593 = vmatprep.subr.mxu0 0.0
    %1594 = vmatpush1.msra.mxu0 0.0
    %1595 = vmatprep.subr.mxu0 0.0
    %1596 = vmatpush1.msra.mxu0 0.0
    %1597 = vmatprep.mubr.f32.mxu0 0.0
    %1598 = vmatmul.mubr.f32.gmra.mrb[0].mxu0 %v1531
    %v1599 = vpop.f32.mrb[0].mxu0
    %v1600 = vadd.f32 0.0, %v1599
    %v1601 = vpop.f32.mrb[0].mxu0
    %1602 = vdwg.mxu0
    %1603 = vrot.lane.b32.xlu0 %v284, 40
    %v1604 = vpop.permute.xlu0 %1603
    %v1607 = vsel %vm290, %v1526, 0
    %1609 = vmatprep.subr.mxu0 0.0
    %1610 = vmatpush1.msra.mxu0 %v1604
    %1611 = vmatprep.subr.mxu0 0.0
    %1612 = vmatpush1.msra.mxu0 0.0
    %1613 = vmatprep.subr.mxu0 0.0
    %1614 = vmatpush1.msra.mxu0 0.0
    %1615 = vmatprep.subr.mxu0 0.0
    %1616 = vmatpush1.msra.mxu0 0.0
    %1617 = vmatprep.subr.mxu0 0.0
    %1618 = vmatpush1.msra.mxu0 0.0
    %1619 = vmatprep.subr.mxu0 0.0
    %1620 = vmatpush1.msra.mxu0 0.0
    %1621 = vmatprep.subr.mxu0 0.0
    %1622 = vmatpush1.msra.mxu0 0.0
    %1623 = vmatprep.subr.mxu0 0.0
    %1624 = vmatpush1.msra.mxu0 0.0
    %1625 = vmatprep.subr.mxu0 0.0
    %1626 = vmatpush1.msra.mxu0 0.0
    %1627 = vmatprep.subr.mxu0 0.0
    %1628 = vmatpush1.msra.mxu0 0.0
    %1629 = vmatprep.subr.mxu0 0.0
    %1630 = vmatpush1.msra.mxu0 0.0
    %1631 = vmatprep.subr.mxu0 0.0
    %1632 = vmatpush1.msra.mxu0 0.0
    %1633 = vmatprep.subr.mxu0 0.0
    %1634 = vmatpush1.msra.mxu0 0.0
    %1635 = vmatprep.subr.mxu0 0.0
    %1636 = vmatpush1.msra.mxu0 0.0
    %1637 = vmatprep.subr.mxu0 0.0
    %1638 = vmatpush1.msra.mxu0 0.0
    %1639 = vmatprep.subr.mxu0 0.0
    %1640 = vmatpush1.msra.mxu0 0.0
    %1641 = vmatprep.subr.mxu0 0.0
    %1642 = vmatpush1.msra.mxu0 0.0
    %1643 = vmatprep.subr.mxu0 0.0
    %1644 = vmatpush1.msra.mxu0 0.0
    %1645 = vmatprep.subr.mxu0 0.0
    %1646 = vmatpush1.msra.mxu0 0.0
    %1647 = vmatprep.subr.mxu0 0.0
    %1648 = vmatpush1.msra.mxu0 0.0
    %1649 = vmatprep.subr.mxu0 0.0
    %1650 = vmatpush1.msra.mxu0 0.0
    %1651 = vmatprep.subr.mxu0 0.0
    %1652 = vmatpush1.msra.mxu0 0.0
    %1653 = vmatprep.subr.mxu0 0.0
    %1654 = vmatpush1.msra.mxu0 0.0
    %1655 = vmatprep.subr.mxu0 0.0
    %1656 = vmatpush1.msra.mxu0 0.0
    %1657 = vmatprep.subr.mxu0 0.0
    %1658 = vmatpush1.msra.mxu0 0.0
    %1659 = vmatprep.subr.mxu0 0.0
    %1660 = vmatpush1.msra.mxu0 0.0
    %1661 = vmatprep.subr.mxu0 0.0
    %1662 = vmatpush1.msra.mxu0 0.0
    %1663 = vmatprep.subr.mxu0 0.0
    %1664 = vmatpush1.msra.mxu0 0.0
    %1665 = vmatprep.subr.mxu0 0.0
    %1666 = vmatpush1.msra.mxu0 0.0
    %1667 = vmatprep.subr.mxu0 0.0
    %1668 = vmatpush1.msra.mxu0 0.0
    %1669 = vmatprep.subr.mxu0 0.0
    %1670 = vmatpush1.msra.mxu0 0.0
    %1671 = vmatprep.subr.mxu0 0.0
    %1672 = vmatpush1.msra.mxu0 0.0
    %1673 = vmatprep.mubr.f32.mxu0 0.0
    %1674 = vmatmul.mubr.f32.gmra.mrb[0].mxu0 %v1607
    %v1675 = vpop.f32.mrb[0].mxu0
    %v1676 = vadd.f32 0.0, %v1675
    %v1677 = vpop.f32.mrb[0].mxu0
    %1678 = vdwg.mxu0
    %1681 = vrot.lane.b32.xlu0 %v920, 8
    %v1682 = vpop.permute.xlu0 %1681
    %1683 = vrot.lane.b32.xlu0 %v996, 8
    %v1684 = vpop.permute.xlu0 %1683
    %1689 = vrot.lane.b32.xlu0 %v1260, 16
    %v1690 = vpop.permute.xlu0 %1689
    %1691 = vrot.lane.b32.xlu0 %v1336, 16
    %v1692 = vpop.permute.xlu0 %1691
    %1697 = vrot.lane.b32.xlu0 %v1600, 24
    %v1698 = vpop.permute.xlu0 %1697
    %1699 = vrot.lane.b32.xlu0 %v1676, 24
    %v1700 = vpop.permute.xlu0 %1699
    %v1703 = vsel %vm290, %v580, %v1682
    %v1704 = vsel %vm290, %v656, %v1684
    %vm1705 = vcmask 130048
    %v1706 = vsel %vm1705, %v1703, %v1690
    %v1707 = vsel %vm1705, %v1704, %v1692
    %vm1708 = vcmask 195584
    %v1709 = vsel %vm1708, %v1706, %v1698
    %v1710 = vsel %vm1708, %v1707, %v1700
    %v1711 = vld [vmem:[%s5] sm:$0xff]
    %v1712 = vld [vmem:[%s5 + $0x8] sm:$0xff]
    %v1713 = vld [vmem:[%s5 + $0x10] sm:$0xff]
    %v1714 = vld [vmem:[%s5 + $0x18] sm:$0xff]
    %v1715 = vld [vmem:[%s3 + $0x4] sm:$0x1]
    %v1716 = vlaneseq
    %v1717 = vshrl.u32 %v1716, 7
    %v1718 = vsub.s32 0, %v1717
    %v1719 = vrot.slane %v1715, %v1718
    %v1721 = vsel %vm156, %v1709, 0
    %v1724 = vsel %vm156, %v1710, 0
    %1726 = vmatprep.subr.mxu0 0.0
    %1727 = vmatpush1.msra.mxu0 %v1711
    %1728 = vmatprep.subr.mxu0 0.0
    %1729 = vmatpush1.msra.mxu0 %v1712
    %1730 = vmatprep.subr.mxu0 0.0
    %1731 = vmatpush1.msra.mxu0 %v1713
    %1732 = vmatprep.subr.mxu0 0.0
    %1733 = vmatpush1.msra.mxu0 %v1714
    %1734 = vmatprep.subr.mxu0 0.0
    %1735 = vmatpush1.msra.mxu0 0.0
    %1736 = vmatprep.subr.mxu0 0.0
    %1737 = vmatpush1.msra.mxu0 0.0
    %1738 = vmatprep.subr.mxu0 0.0
    %1739 = vmatpush1.msra.mxu0 0.0
    %1740 = vmatprep.subr.mxu0 0.0
    %1741 = vmatpush1.msra.mxu0 0.0
    %1742 = vmatprep.subr.mxu0 0.0
    %1743 = vmatpush1.msra.mxu0 0.0
    %1744 = vmatprep.subr.mxu0 0.0
    %1745 = vmatpush1.msra.mxu0 0.0
    %1746 = vmatprep.subr.mxu0 0.0
    %1747 = vmatpush1.msra.mxu0 0.0
    %1748 = vmatprep.subr.mxu0 0.0
    %1749 = vmatpush1.msra.mxu0 0.0
    %1750 = vmatprep.subr.mxu0 0.0
    %1751 = vmatpush1.msra.mxu0 0.0
    %1752 = vmatprep.subr.mxu0 0.0
    %1753 = vmatpush1.msra.mxu0 0.0
    %1754 = vmatprep.subr.mxu0 0.0
    %1755 = vmatpush1.msra.mxu0 0.0
    %1756 = vmatprep.subr.mxu0 0.0
    %1757 = vmatpush1.msra.mxu0 0.0
    %1758 = vmatprep.subr.mxu0 0.0
    %1759 = vmatpush1.msra.mxu0 0.0
    %1760 = vmatprep.subr.mxu0 0.0
    %1761 = vmatpush1.msra.mxu0 0.0
    %1762 = vmatprep.subr.mxu0 0.0
    %1763 = vmatpush1.msra.mxu0 0.0
    %1764 = vmatprep.subr.mxu0 0.0
    %1765 = vmatpush1.msra.mxu0 0.0
    %1766 = vmatprep.subr.mxu0 0.0
    %1767 = vmatpush1.msra.mxu0 0.0
    %1768 = vmatprep.subr.mxu0 0.0
    %1769 = vmatpush1.msra.mxu0 0.0
    %1770 = vmatprep.subr.mxu0 0.0
    %1771 = vmatpush1.msra.mxu0 0.0
    %1772 = vmatprep.subr.mxu0 0.0
    %1773 = vmatpush1.msra.mxu0 0.0
    %1774 = vmatprep.subr.mxu0 0.0
    %1775 = vmatpush1.msra.mxu0 0.0
    %1776 = vmatprep.subr.mxu0 0.0
    %1777 = vmatpush1.msra.mxu0 0.0
    %1778 = vmatprep.subr.mxu0 0.0
    %1779 = vmatpush1.msra.mxu0 0.0
    %1780 = vmatprep.subr.mxu0 0.0
    %1781 = vmatpush1.msra.mxu0 0.0
    %1782 = vmatprep.subr.mxu0 0.0
    %1783 = vmatpush1.msra.mxu0 0.0
    %1784 = vmatprep.subr.mxu0 0.0
    %1785 = vmatpush1.msra.mxu0 0.0
    %1786 = vmatprep.subr.mxu0 0.0
    %1787 = vmatpush1.msra.mxu0 0.0
    %1788 = vmatprep.subr.mxu0 0.0
    %1789 = vmatpush1.msra.mxu0 0.0
    %1790 = vmatprep.mubr.f32.mxu0 0.0
    %1791 = vmatmul.mubr.f32.gmra.mrb[0].mxu0 %v1721
    %v1792 = vpop.f32.mrb[0].mxu0
    %v1793 = vadd.f32 %v1719, %v1792
    %v1794 = vpop.f32.mrb[0].mxu0
    %1795 = vmatprep.mubr.f32.mxu0 0.0
    %1796 = vmatmul.mubr.f32.gmra.mrb[0].mxu0 %v1724
    %v1797 = vpop.f32.mrb[0].mxu0
    %v1798 = vadd.f32 %v1719, %v1797
    %v1799 = vpop.f32.mrb[0].mxu0
    %1800 = vdwg.mxu0
    %v1801 = vadd.f32 %v194, %v1793
    %v1802 = vadd.f32 %v195, %v1798
    %v1803 = vld [vmem:[%s3 + $0x5] sm:$0x1]
    %v1804 = vld [vmem:[%s3 + $0x6] sm:$0x1]
    %v1805 = vsel %vm156, %v1801, 0.0
    %1806 = vadd.xlane.f32.xlu0 %v1805
    %v1807 = vpop.xlane.xlu0 %1806
    %v1808 = vsel %vm156, %v1802, 0.0
    %1809 = vadd.xlane.f32.xlu0 %v1808
    %v1810 = vpop.xlane.xlu0 %1809
    %v1811 = vmul.f32 %v1807, %v163
    %v1812 = vmul.f32 %v1810, %v163
    %v1813 = vsub.f32 %v1801, %v1811
    %v1814 = vsub.f32 %v1802, %v1812
    %v1815 = vmul.f32 %v1813, %v1813
    %v1816 = vmul.f32 %v1814, %v1814
    %v1817 = vsel %vm156, %v1815, 0.0
    %1818 = vadd.xlane.f32.xlu0 %v1817
    %v1819 = vpop.xlane.xlu0 %1818
    %v1820 = vsel %vm156, %v1816, 0.0
    %1821 = vadd.xlane.f32.xlu0 %v1820
    %v1822 = vpop.xlane.xlu0 %1821
    %v1823 = vmul.f32 %v1819, %v163
    %v1824 = vmul.f32 %v1822, %v163
    %v1825 = vadd.f32 %v1823, 1e-05
    %v1826 = vadd.f32 %v1824, 1e-05
    %v1827 = vrsqrt.pop %v1825
    %v1828 = vrsqrt.pop %v1826
    %v1829 = vmul.f32 %v1813, %v1827
    %v1830 = vmul.f32 %v1814, %v1828
    %v1831 = vlaneseq
    %v1832 = vshrl.u32 %v1831, 7
    %v1833 = vsub.s32 0, %v1832
    %v1834 = vrot.slane %v1803, %v1833
    %v1835 = vmul.f32 %v1829, %v1834
    %v1836 = vmul.f32 %v1830, %v1834
    %v1837 = vlaneseq
    %v1838 = vshrl.u32 %v1837, 7
    %v1839 = vsub.s32 0, %v1838
    %v1840 = vrot.slane %v1804, %v1839
    %v1841 = vadd.f32 %v1835, %v1840
    %v1842 = vadd.f32 %v1836, %v1840
    %v1843 = vld [vmem:[%s6] sm:$0xff]
    %v1844 = vld [vmem:[%s6 + $0x8] sm:$0xff]
    %v1845 = vld [vmem:[%s6 + $0x10] sm:$0xff]
    %v1846 = vld [vmem:[%s6 + $0x18] sm:$0xff]
    %v1847 = vld [vmem:[%s3 + $0x7] sm:$0x1]
    %v1848 = vlaneseq
    %v1849 = vshrl.u32 %v1848, 7
    %v1850 = vsub.s32 0, %v1849
    %v1851 = vrot.slane %v1847, %v1850
    %v1853 = vsel %vm156, %v1841, 0
    %v1856 = vsel %vm156, %v1842, 0
    %1858 = vmatprep.subr.mxu0 0.0
    %1859 = vmatpush1.msra.mxu0 %v1843
    %1860 = vmatprep.subr.mxu0 0.0
    %1861 = vmatpush1.msra.mxu0 %v1844
    %1862 = vmatprep.subr.mxu0 0.0
    %1863 = vmatpush1.msra.mxu0 %v1845
    %1864 = vmatprep.subr.mxu0 0.0
    %1865 = vmatpush1.msra.mxu0 %v1846
    %1866 = vmatprep.subr.mxu0 0.0
    %1867 = vmatpush1.msra.mxu0 0.0
    %1868 = vmatprep.subr.mxu0 0.0
    %1869 = vmatpush1.msra.mxu0 0.0
    %1870 = vmatprep.subr.mxu0 0.0
    %1871 = vmatpush1.msra.mxu0 0.0
    %1872 = vmatprep.subr.mxu0 0.0
    %1873 = vmatpush1.msra.mxu0 0.0
    %1874 = vmatprep.subr.mxu0 0.0
    %1875 = vmatpush1.msra.mxu0 0.0
    %1876 = vmatprep.subr.mxu0 0.0
    %1877 = vmatpush1.msra.mxu0 0.0
    %1878 = vmatprep.subr.mxu0 0.0
    %1879 = vmatpush1.msra.mxu0 0.0
    %1880 = vmatprep.subr.mxu0 0.0
    %1881 = vmatpush1.msra.mxu0 0.0
    %1882 = vmatprep.subr.mxu0 0.0
    %1883 = vmatpush1.msra.mxu0 0.0
    %1884 = vmatprep.subr.mxu0 0.0
    %1885 = vmatpush1.msra.mxu0 0.0
    %1886 = vmatprep.subr.mxu0 0.0
    %1887 = vmatpush1.msra.mxu0 0.0
    %1888 = vmatprep.subr.mxu0 0.0
    %1889 = vmatpush1.msra.mxu0 0.0
    %1890 = vmatprep.subr.mxu0 0.0
    %1891 = vmatpush1.msra.mxu0 0.0
    %1892 = vmatprep.subr.mxu0 0.0
    %1893 = vmatpush1.msra.mxu0 0.0
    %1894 = vmatprep.subr.mxu0 0.0
    %1895 = vmatpush1.msra.mxu0 0.0
    %1896 = vmatprep.subr.mxu0 0.0
    %1897 = vmatpush1.msra.mxu0 0.0
    %1898 = vmatprep.subr.mxu0 0.0
    %1899 = vmatpush1.msra.mxu0 0.0
    %1900 = vmatprep.subr.mxu0 0.0
    %1901 = vmatpush1.msra.mxu0 0.0
    %1902 = vmatprep.subr.mxu0 0.0
    %1903 = vmatpush1.msra.mxu0 0.0
    %1904 = vmatprep.subr.mxu0 0.0
    %1905 = vmatpush1.msra.mxu0 0.0
    %1906 = vmatprep.subr.mxu0 0.0
    %1907 = vmatpush1.msra.mxu0 0.0
    %1908 = vmatprep.subr.mxu0 0.0
    %1909 = vmatpush1.msra.mxu0 0.0
    %1910 = vmatprep.subr.mxu0 0.0
    %1911 = vmatpush1.msra.mxu0 0.0
    %1912 = vmatprep.subr.mxu0 0.0
    %1913 = vmatpush1.msra.mxu0 0.0
    %1914 = vmatprep.subr.mxu0 0.0
    %1915 = vmatpush1.msra.mxu0 0.0
    %1916 = vmatprep.subr.mxu0 0.0
    %1917 = vmatpush1.msra.mxu0 0.0
    %1918 = vmatprep.subr.mxu0 0.0
    %1919 = vmatpush1.msra.mxu0 0.0
    %1920 = vmatprep.subr.mxu0 0.0
    %1921 = vmatpush1.msra.mxu0 0.0
    %1922 = vmatprep.mubr.f32.mxu0 0.0
    %1923 = vmatmul.mubr.f32.gmra.mrb[0].mxu0 %v1853
    %v1924 = vpop.f32.mrb[0].mxu0
    %v1925 = vadd.f32 %v1851, %v1924
    %v1926 = vpop.f32.mrb[0].mxu0
    %1927 = vmatprep.mubr.f32.mxu0 0.0
    %1928 = vmatmul.mubr.f32.gmra.mrb[0].mxu0 %v1856
    %v1929 = vpop.f32.mrb[0].mxu0
    %v1930 = vadd.f32 %v1851, %v1929
    %v1931 = vpop.f32.mrb[0].mxu0
    %1932 = vdwg.mxu0
    %v1933 = vmul.f32 %v1925, 0.5
    %v1934 = vmul.f32 %v1930, 0.5
    %v1935 = vmul.f32 %v1925, 0.70710677
    %v1936 = vmul.f32 %v1930, 0.70710677
    %vm1937 = vcmp.ge.f32.partialorder %v1935, 0.0
    %vm1938 = vcmp.ge.f32.partialorder %v1936, 0.0
    %v1939 = vsel %vm1937, 1.0, -1.0
    %v1940 = vsel %vm1938, 1.0, -1.0
    %v1941 = vand.u32 2147483647, %v1935
    %v1942 = vand.u32 2147483647, %v1936
    %v1943 = vmul.f32 %v1941, 0.3275911
    %v1944 = vmul.f32 %v1942, 0.3275911
    %v1945 = vadd.f32 %v1943, 1.0
    %v1946 = vadd.f32 %v1944, 1.0
    %v1947 = vrcp.pop %v1945
    %v1948 = vrcp.pop %v1946
    %v1949 = vmul.f32 %v1945, %v1947
    %v1950 = vmul.f32 %v1946, %v1948
    %v1951 = vsub.f32 2.0, %v1949
    %v1952 = vsub.f32 2.0, %v1950
    %v1953 = vmul.f32 %v1947, %v1951
    %v1954 = vmul.f32 %v1948, %v1952
    %v1955 = vmul.f32 %v1953, 1.0614054
    %v1956 = vmul.f32 %v1954, 1.0614054
    %v1957 = vadd.f32 %v1955, -1.4531521
    %v1958 = vadd.f32 %v1956, -1.4531521
    %v1959 = vmul.f32 %v1957, %v1953
    %v1960 = vmul.f32 %v1958, %v1954
    %v1961 = vadd.f32 %v1959, 1.4214138
    %v1962 = vadd.f32 %v1960, 1.4214138
    %v1963 = vmul.f32 %v1961, %v1953
    %v1964 = vmul.f32 %v1962, %v1954
    %v1965 = vadd.f32 %v1963, -0.28449672
    %v1966 = vadd.f32 %v1964, -0.28449672
    %v1967 = vmul.f32 %v1965, %v1953
    %v1968 = vmul.f32 %v1966, %v1954
    %v1969 = vadd.f32 %v1967, 0.2548296
    %v1970 = vadd.f32 %v1968, 0.2548296
    %v1971 = vmul.f32 %v1969, %v1953
    %v1972 = vmul.f32 %v1970, %v1954
    %v1973 = vsub.f32 0.0, %v1941
    %v1974 = vsub.f32 0.0, %v1942
    %v1975 = vmul.f32 %v1973, %v1941
    %v1976 = vmul.f32 %v1974, %v1942
    %v1977 = vmul.f32 %v1975, 1.442695
    %v1978 = vpow.pop %v1977
    %v1979 = vmul.f32 %v1976, 1.442695
    %v1980 = vpow.pop %v1979
    %v1981 = vmul.f32 %v1971, %v1978
    %v1982 = vmul.f32 %v1972, %v1980
    %v1983 = vsub.f32 1.0, %v1981
    %v1984 = vsub.f32 1.0, %v1982
    %v1985 = vmul.f32 %v1939, %v1983
    %v1986 = vmul.f32 %v1940, %v1984
    %v1987 = vadd.f32 %v1985, 1.0
    %v1988 = vadd.f32 %v1986, 1.0
    %v1989 = vmul.f32 %v1933, %v1987
    %v1990 = vmul.f32 %v1934, %v1988
    %v1991 = vld [vmem:[%s7] sm:$0xff]
    %v1992 = vld [vmem:[%s7 + $0x8] sm:$0xff]
    %v1993 = vld [vmem:[%s7 + $0x10] sm:$0xff]
    %v1994 = vld [vmem:[%s7 + $0x18] sm:$0xff]
    %v1995 = vld [vmem:[%s7 + $0x20] sm:$0xff]
    %v1996 = vld [vmem:[%s7 + $0x28] sm:$0xff]
    %v1997 = vld [vmem:[%s7 + $0x30] sm:$0xff]
    %v1998 = vld [vmem:[%s7 + $0x38] sm:$0xff]
    %v1999 = vld [vmem:[%s3 + $0x8] sm:$0x1]
    %v2000 = vlaneseq
    %v2001 = vshrl.u32 %v2000, 7
    %v2002 = vsub.s32 0, %v2001
    %v2003 = vrot.slane %v1999, %v2002
    %vm2004 = vcmask 523264
    %v2006 = vsel %vm2004, %v1989, 0
    %v2009 = vsel %vm2004, %v1990, 0
    %2011 = vmatprep.subr.mxu0 0.0
    %2012 = vmatpush1.msra.mxu0 %v1991
    %2013 = vmatprep.subr.mxu0 0.0
    %2014 = vmatpush1.msra.mxu0 %v1992
    %2015 = vmatprep.subr.mxu0 0.0
    %2016 = vmatpush1.msra.mxu0 %v1993
    %2017 = vmatprep.subr.mxu0 0.0
    %2018 = vmatpush1.msra.mxu0 %v1994
    %2019 = vmatprep.subr.mxu0 0.0
    %2020 = vmatpush1.msra.mxu0 %v1995
    %2021 = vmatprep.subr.mxu0 0.0
    %2022 = vmatpush1.msra.mxu0 %v1996
    %2023 = vmatprep.subr.mxu0 0.0
    %2024 = vmatpush1.msra.mxu0 %v1997
    %2025 = vmatprep.subr.mxu0 0.0
    %2026 = vmatpush1.msra.mxu0 %v1998
    %2027 = vmatprep.subr.mxu0 0.0
    %2028 = vmatpush1.msra.mxu0 0.0
    %2029 = vmatprep.subr.mxu0 0.0
    %2030 = vmatpush1.msra.mxu0 0.0
    %2031 = vmatprep.subr.mxu0 0.0
    %2032 = vmatpush1.msra.mxu0 0.0
    %2033 = vmatprep.subr.mxu0 0.0
    %2034 = vmatpush1.msra.mxu0 0.0
    %2035 = vmatprep.subr.mxu0 0.0
    %2036 = vmatpush1.msra.mxu0 0.0
    %2037 = vmatprep.subr.mxu0 0.0
    %2038 = vmatpush1.msra.mxu0 0.0
    %2039 = vmatprep.subr.mxu0 0.0
    %2040 = vmatpush1.msra.mxu0 0.0
    %2041 = vmatprep.subr.mxu0 0.0
    %2042 = vmatpush1.msra.mxu0 0.0
    %2043 = vmatprep.subr.mxu0 0.0
    %2044 = vmatpush1.msra.mxu0 0.0
    %2045 = vmatprep.subr.mxu0 0.0
    %2046 = vmatpush1.msra.mxu0 0.0
    %2047 = vmatprep.subr.mxu0 0.0
    %2048 = vmatpush1.msra.mxu0 0.0
    %2049 = vmatprep.subr.mxu0 0.0
    %2050 = vmatpush1.msra.mxu0 0.0
    %2051 = vmatprep.subr.mxu0 0.0
    %2052 = vmatpush1.msra.mxu0 0.0
    %2053 = vmatprep.subr.mxu0 0.0
    %2054 = vmatpush1.msra.mxu0 0.0
    %2055 = vmatprep.subr.mxu0 0.0
    %2056 = vmatpush1.msra.mxu0 0.0
    %2057 = vmatprep.subr.mxu0 0.0
    %2058 = vmatpush1.msra.mxu0 0.0
    %2059 = vmatprep.subr.mxu0 0.0
    %2060 = vmatpush1.msra.mxu0 0.0
    %2061 = vmatprep.subr.mxu0 0.0
    %2062 = vmatpush1.msra.mxu0 0.0
    %2063 = vmatprep.subr.mxu0 0.0
    %2064 = vmatpush1.msra.mxu0 0.0
    %2065 = vmatprep.subr.mxu0 0.0
    %2066 = vmatpush1.msra.mxu0 0.0
    %2067 = vmatprep.subr.mxu0 0.0
    %2068 = vmatpush1.msra.mxu0 0.0
    %2069 = vmatprep.subr.mxu0 0.0
    %2070 = vmatpush1.msra.mxu0 0.0
    %2071 = vmatprep.subr.mxu0 0.0
    %2072 = vmatpush1.msra.mxu0 0.0
    %2073 = vmatprep.subr.mxu0 0.0
    %2074 = vmatpush1.msra.mxu0 0.0
    %2075 = vmatprep.mubr.f32.mxu0 0.0
    %2076 = vmatmul.mubr.f32.gmra.mrb[0].mxu0 %v2006
    %v2077 = vpop.f32.mrb[0].mxu0
    %v2078 = vadd.f32 %v2003, %v2077
    %v2079 = vpop.f32.mrb[0].mxu0
    %2080 = vmatprep.mubr.f32.mxu0 0.0
    %2081 = vmatmul.mubr.f32.gmra.mrb[0].mxu0 %v2009
    %v2082 = vpop.f32.mrb[0].mxu0
    %v2083 = vadd.f32 %v2003, %v2082
    %v2084 = vpop.f32.mrb[0].mxu0
    %2085 = vdwg.mxu0
    %v2086 = vadd.f32 %v1841, %v2078
    %v2087 = vadd.f32 %v1842, %v2083
    %v2088 = vld [vmem:[%s3 + $0x9] sm:$0x1]
    %v2089 = vld [vmem:[%s3 + $0xa] sm:$0x1]
    %v2090 = vsel %vm156, %v2086, 0.0
    %2091 = vadd.xlane.f32.xlu0 %v2090
    %v2092 = vpop.xlane.xlu0 %2091
    %v2093 = vsel %vm156, %v2087, 0.0
    %2094 = vadd.xlane.f32.xlu0 %v2093
    %v2095 = vpop.xlane.xlu0 %2094
    %v2096 = vmul.f32 %v2092, %v163
    %v2097 = vmul.f32 %v2095, %v163
    %v2098 = vsub.f32 %v2086, %v2096
    %v2099 = vsub.f32 %v2087, %v2097
    %v2100 = vmul.f32 %v2098, %v2098
    %v2101 = vmul.f32 %v2099, %v2099
    %v2102 = vsel %vm156, %v2100, 0.0
    %2103 = vadd.xlane.f32.xlu0 %v2102
    %v2104 = vpop.xlane.xlu0 %2103
    %v2105 = vsel %vm156, %v2101, 0.0
    %2106 = vadd.xlane.f32.xlu0 %v2105
    %v2107 = vpop.xlane.xlu0 %2106
    %v2108 = vmul.f32 %v2104, %v163
    %v2109 = vmul.f32 %v2107, %v163
    %v2110 = vadd.f32 %v2108, 1e-05
    %v2111 = vadd.f32 %v2109, 1e-05
    %v2112 = vrsqrt.pop %v2110
    %v2113 = vrsqrt.pop %v2111
    %v2114 = vmul.f32 %v2098, %v2112
    %v2115 = vmul.f32 %v2099, %v2113
    %v2116 = vlaneseq
    %v2117 = vshrl.u32 %v2116, 7
    %v2118 = vsub.s32 0, %v2117
    %v2119 = vrot.slane %v2088, %v2118
    %v2120 = vmul.f32 %v2114, %v2119
    %v2121 = vmul.f32 %v2115, %v2119
    %v2122 = vlaneseq
    %v2123 = vshrl.u32 %v2122, 7
    %v2124 = vsub.s32 0, %v2123
    %v2125 = vrot.slane %v2089, %v2124
    %v2126 = vadd.f32 %v2120, %v2125
    %v2127 = vadd.f32 %v2121, %v2125
    %s2128 = scalar_lea.vmem %s4, 32
    %v2129 = vld [vmem:[%s2128] sm:$0xff]
    %v2130 = vld [vmem:[%s2128 + $0x8] sm:$0xff]
    %v2131 = vld [vmem:[%s2128 + $0x10] sm:$0xff]
    %v2132 = vld [vmem:[%s2128 + $0x18] sm:$0xff]
    %v2133 = vld [vmem:[%s3 + $0xb] sm:$0x1]
    %v2134 = vlaneseq
    %v2135 = vshrl.u32 %v2134, 7
    %v2136 = vsub.s32 0, %v2135
    %v2137 = vrot.slane %v2133, %v2136
    %v2139 = vsel %vm156, %v2126, 0
    %v2142 = vsel %vm156, %v2127, 0
    %2144 = vmatprep.subr.mxu0 0.0
    %2145 = vmatpush1.msra.mxu0 %v2129
    %2146 = vmatprep.subr.mxu0 0.0
    %2147 = vmatpush1.msra.mxu0 %v2130
    %2148 = vmatprep.subr.mxu0 0.0
    %2149 = vmatpush1.msra.mxu0 %v2131
    %2150 = vmatprep.subr.mxu0 0.0
    %2151 = vmatpush1.msra.mxu0 %v2132
    %2152 = vmatprep.subr.mxu0 0.0
    %2153 = vmatpush1.msra.mxu0 0.0
    %2154 = vmatprep.subr.mxu0 0.0
    %2155 = vmatpush1.msra.mxu0 0.0
    %2156 = vmatprep.subr.mxu0 0.0
    %2157 = vmatpush1.msra.mxu0 0.0
    %2158 = vmatprep.subr.mxu0 0.0
    %2159 = vmatpush1.msra.mxu0 0.0
    %2160 = vmatprep.subr.mxu0 0.0
    %2161 = vmatpush1.msra.mxu0 0.0
    %2162 = vmatprep.subr.mxu0 0.0
    %2163 = vmatpush1.msra.mxu0 0.0
    %2164 = vmatprep.subr.mxu0 0.0
    %2165 = vmatpush1.msra.mxu0 0.0
    %2166 = vmatprep.subr.mxu0 0.0
    %2167 = vmatpush1.msra.mxu0 0.0
    %2168 = vmatprep.subr.mxu0 0.0
    %2169 = vmatpush1.msra.mxu0 0.0
    %2170 = vmatprep.subr.mxu0 0.0
    %2171 = vmatpush1.msra.mxu0 0.0
    %2172 = vmatprep.subr.mxu0 0.0
    %2173 = vmatpush1.msra.mxu0 0.0
    %2174 = vmatprep.subr.mxu0 0.0
    %2175 = vmatpush1.msra.mxu0 0.0
    %2176 = vmatprep.subr.mxu0 0.0
    %2177 = vmatpush1.msra.mxu0 0.0
    %2178 = vmatprep.subr.mxu0 0.0
    %2179 = vmatpush1.msra.mxu0 0.0
    %2180 = vmatprep.subr.mxu0 0.0
    %2181 = vmatpush1.msra.mxu0 0.0
    %2182 = vmatprep.subr.mxu0 0.0
    %2183 = vmatpush1.msra.mxu0 0.0
    %2184 = vmatprep.subr.mxu0 0.0
    %2185 = vmatpush1.msra.mxu0 0.0
    %2186 = vmatprep.subr.mxu0 0.0
    %2187 = vmatpush1.msra.mxu0 0.0
    %2188 = vmatprep.subr.mxu0 0.0
    %2189 = vmatpush1.msra.mxu0 0.0
    %2190 = vmatprep.subr.mxu0 0.0
    %2191 = vmatpush1.msra.mxu0 0.0
    %2192 = vmatprep.subr.mxu0 0.0
    %2193 = vmatpush1.msra.mxu0 0.0
    %2194 = vmatprep.subr.mxu0 0.0
    %2195 = vmatpush1.msra.mxu0 0.0
    %2196 = vmatprep.subr.mxu0 0.0
    %2197 = vmatpush1.msra.mxu0 0.0
    %2198 = vmatprep.subr.mxu0 0.0
    %2199 = vmatpush1.msra.mxu0 0.0
    %2200 = vmatprep.subr.mxu0 0.0
    %2201 = vmatpush1.msra.mxu0 0.0
    %2202 = vmatprep.subr.mxu0 0.0
    %2203 = vmatpush1.msra.mxu0 0.0
    %2204 = vmatprep.subr.mxu0 0.0
    %2205 = vmatpush1.msra.mxu0 0.0
    %2206 = vmatprep.subr.mxu0 0.0
    %2207 = vmatpush1.msra.mxu0 0.0
    %2208 = vmatprep.mubr.f32.mxu0 0.0
    %2209 = vmatmul.mubr.f32.gmra.mrb[0].mxu0 %v2139
    %v2210 = vpop.f32.mrb[0].mxu0
    %v2211 = vadd.f32 %v2137, %v2210
    %v2212 = vpop.f32.mrb[0].mxu0
    %2213 = vmatprep.mubr.f32.mxu0 0.0
    %2214 = vmatmul.mubr.f32.gmra.mrb[0].mxu0 %v2142
    %v2215 = vpop.f32.mrb[0].mxu0
    %v2216 = vadd.f32 %v2137, %v2215
    %v2217 = vpop.f32.mrb[0].mxu0
    %2218 = vdwg.mxu0
    %2220 = vrot.lane.b32.xlu0 %v2211, 96
    %v2221 = vpop.permute.xlu0 %2220
    %v2222 = vsel %vm290, %v2211, 0
    %v2224 = vsel %vm290, %v2221, 0
    %2226 = vmatprep.subr.mxu0 0.0
    %2227 = vmatpush1.xpose.msra.mxu0 %v2224
    %2228 = vmatprep.subr.mxu0 0.0
    %2229 = vmatpush1.xpose.msra.mxu0 0.0
    %2230 = vmatprep.subr.mxu0 0.0
    %2231 = vmatpush1.xpose.msra.mxu0 0.0
    %2232 = vmatprep.subr.mxu0 0.0
    %2233 = vmatpush1.xpose.msra.mxu0 0.0
    %2234 = vmatprep.subr.mxu0 0.0
    %2235 = vmatpush1.xpose.msra.mxu0 0.0
    %2236 = vmatprep.subr.mxu0 0.0
    %2237 = vmatpush1.xpose.msra.mxu0 0.0
    %2238 = vmatprep.subr.mxu0 0.0
    %2239 = vmatpush1.xpose.msra.mxu0 0.0
    %2240 = vmatprep.subr.mxu0 0.0
    %2241 = vmatpush1.xpose.msra.mxu0 0.0
    %2242 = vmatprep.subr.mxu0 0.0
    %2243 = vmatpush1.xpose.msra.mxu0 0.0
    %2244 = vmatprep.subr.mxu0 0.0
    %2245 = vmatpush1.xpose.msra.mxu0 0.0
    %2246 = vmatprep.subr.mxu0 0.0
    %2247 = vmatpush1.xpose.msra.mxu0 0.0
    %2248 = vmatprep.subr.mxu0 0.0
    %2249 = vmatpush1.xpose.msra.mxu0 0.0
    %2250 = vmatprep.subr.mxu0 0.0
    %2251 = vmatpush1.xpose.msra.mxu0 0.0
    %2252 = vmatprep.subr.mxu0 0.0
    %2253 = vmatpush1.xpose.msra.mxu0 0.0
    %2254 = vmatprep.subr.mxu0 0.0
    %2255 = vmatpush1.xpose.msra.mxu0 0.0
    %2256 = vmatprep.subr.mxu0 0.0
    %2257 = vmatpush1.xpose.msra.mxu0 0.0
    %2258 = vmatprep.subr.mxu0 0.0
    %2259 = vmatpush1.xpose.msra.mxu0 0.0
    %2260 = vmatprep.subr.mxu0 0.0
    %2261 = vmatpush1.xpose.msra.mxu0 0.0
    %2262 = vmatprep.subr.mxu0 0.0
    %2263 = vmatpush1.xpose.msra.mxu0 0.0
    %2264 = vmatprep.subr.mxu0 0.0
    %2265 = vmatpush1.xpose.msra.mxu0 0.0
    %2266 = vmatprep.subr.mxu0 0.0
    %2267 = vmatpush1.xpose.msra.mxu0 0.0
    %2268 = vmatprep.subr.mxu0 0.0
    %2269 = vmatpush1.xpose.msra.mxu0 0.0
    %2270 = vmatprep.subr.mxu0 0.0
    %2271 = vmatpush1.xpose.msra.mxu0 0.0
    %2272 = vmatprep.subr.mxu0 0.0
    %2273 = vmatpush1.xpose.msra.mxu0 0.0
    %2274 = vmatprep.subr.mxu0 0.0
    %2275 = vmatpush1.xpose.msra.mxu0 0.0
    %2276 = vmatprep.subr.mxu0 0.0
    %2277 = vmatpush1.xpose.msra.mxu0 0.0
    %2278 = vmatprep.subr.mxu0 0.0
    %2279 = vmatpush1.xpose.msra.mxu0 0.0
    %2280 = vmatprep.subr.mxu0 0.0
    %2281 = vmatpush1.xpose.msra.mxu0 0.0
    %2282 = vmatprep.subr.mxu0 0.0
    %2283 = vmatpush1.xpose.msra.mxu0 0.0
    %2284 = vmatprep.subr.mxu0 0.0
    %2285 = vmatpush1.xpose.msra.mxu0 0.0
    %2286 = vmatprep.subr.mxu0 0.0
    %2287 = vmatpush1.xpose.msra.mxu0 0.0
    %2288 = vmatprep.subr.mxu0 0.0
    %2289 = vmatpush1.xpose.msra.mxu0 0.0
    %2290 = vmatprep.mubr.f32.mxu0 0.0
    %2291 = vmatmul.mubr.f32.gmra.mrb[0].mxu0 %v2222
    %v2292 = vpop.f32.mrb[0].mxu0
    %v2293 = vadd.f32 0.0, %v2292
    %v2294 = vpop.f32.mrb[0].mxu0
    %2295 = vdwg.mxu0
    %2297 = vrot.lane.b32.xlu0 %v2216, 96
    %v2298 = vpop.permute.xlu0 %2297
    %v2299 = vsel %vm290, %v2216, 0
    %v2301 = vsel %vm290, %v2298, 0
    %2303 = vmatprep.subr.mxu0 0.0
    %2304 = vmatpush1.xpose.msra.mxu0 %v2301
    %2305 = vmatprep.subr.mxu0 0.0
    %2306 = vmatpush1.xpose.msra.mxu0 0.0
    %2307 = vmatprep.subr.mxu0 0.0
    %2308 = vmatpush1.xpose.msra.mxu0 0.0
    %2309 = vmatprep.subr.mxu0 0.0
    %2310 = vmatpush1.xpose.msra.mxu0 0.0
    %2311 = vmatprep.subr.mxu0 0.0
    %2312 = vmatpush1.xpose.msra.mxu0 0.0
    %2313 = vmatprep.subr.mxu0 0.0
    %2314 = vmatpush1.xpose.msra.mxu0 0.0
    %2315 = vmatprep.subr.mxu0 0.0
    %2316 = vmatpush1.xpose.msra.mxu0 0.0
    %2317 = vmatprep.subr.mxu0 0.0
    %2318 = vmatpush1.xpose.msra.mxu0 0.0
    %2319 = vmatprep.subr.mxu0 0.0
    %2320 = vmatpush1.xpose.msra.mxu0 0.0
    %2321 = vmatprep.subr.mxu0 0.0
    %2322 = vmatpush1.xpose.msra.mxu0 0.0
    %2323 = vmatprep.subr.mxu0 0.0
    %2324 = vmatpush1.xpose.msra.mxu0 0.0
    %2325 = vmatprep.subr.mxu0 0.0
    %2326 = vmatpush1.xpose.msra.mxu0 0.0
    %2327 = vmatprep.subr.mxu0 0.0
    %2328 = vmatpush1.xpose.msra.mxu0 0.0
    %2329 = vmatprep.subr.mxu0 0.0
    %2330 = vmatpush1.xpose.msra.mxu0 0.0
    %2331 = vmatprep.subr.mxu0 0.0
    %2332 = vmatpush1.xpose.msra.mxu0 0.0
    %2333 = vmatprep.subr.mxu0 0.0
    %2334 = vmatpush1.xpose.msra.mxu0 0.0
    %2335 = vmatprep.subr.mxu0 0.0
    %2336 = vmatpush1.xpose.msra.mxu0 0.0
    %2337 = vmatprep.subr.mxu0 0.0
    %2338 = vmatpush1.xpose.msra.mxu0 0.0
    %2339 = vmatprep.subr.mxu0 0.0
    %2340 = vmatpush1.xpose.msra.mxu0 0.0
    %2341 = vmatprep.subr.mxu0 0.0
    %2342 = vmatpush1.xpose.msra.mxu0 0.0
    %2343 = vmatprep.subr.mxu0 0.0
    %2344 = vmatpush1.xpose.msra.mxu0 0.0
    %2345 = vmatprep.subr.mxu0 0.0
    %2346 = vmatpush1.xpose.msra.mxu0 0.0
    %2347 = vmatprep.subr.mxu0 0.0
    %2348 = vmatpush1.xpose.msra.mxu0 0.0
    %2349 = vmatprep.subr.mxu0 0.0
    %2350 = vmatpush1.xpose.msra.mxu0 0.0
    %2351 = vmatprep.subr.mxu0 0.0
    %2352 = vmatpush1.xpose.msra.mxu0 0.0
    %2353 = vmatprep.subr.mxu0 0.0
    %2354 = vmatpush1.xpose.msra.mxu0 0.0
    %2355 = vmatprep.subr.mxu0 0.0
    %2356 = vmatpush1.xpose.msra.mxu0 0.0
    %2357 = vmatprep.subr.mxu0 0.0
    %2358 = vmatpush1.xpose.msra.mxu0 0.0
    %2359 = vmatprep.subr.mxu0 0.0
    %2360 = vmatpush1.xpose.msra.mxu0 0.0
    %2361 = vmatprep.subr.mxu0 0.0
    %2362 = vmatpush1.xpose.msra.mxu0 0.0
    %2363 = vmatprep.subr.mxu0 0.0
    %2364 = vmatpush1.xpose.msra.mxu0 0.0
    %2365 = vmatprep.subr.mxu0 0.0
    %2366 = vmatpush1.xpose.msra.mxu0 0.0
    %2367 = vmatprep.mubr.f32.mxu0 0.0
    %2368 = vmatmul.mubr.f32.gmra.mrb[0].mxu0 %v2299
    %v2369 = vpop.f32.mrb[0].mxu0
    %v2370 = vadd.f32 0.0, %v2369
    %v2371 = vpop.f32.mrb[0].mxu0
    %2372 = vdwg.mxu0
    %v2373 = vmul.f32 %v2293, 0.35355338
    %v2374 = vmul.f32 %v2370, 0.35355338
    %v2375 = vadd.f32 %v2373, %v470
    %v2376 = vadd.f32 %v2374, %v474
    %v2377 = vsel %vm290, %v2375, -inf
    %2378 = vmax.xlane.f32.xlu0 %v2377
    %v2379 = vpop.xlane.xlu0 %2378
    %v2380 = vsel %vm290, %v2376, -inf
    %2381 = vmax.xlane.f32.xlu0 %v2380
    %v2382 = vpop.xlane.xlu0 %2381
    %v2383 = vsub.f32 %v2375, %v2379
    %v2384 = vsub.f32 %v2376, %v2382
    %v2385 = vmul.f32 %v2383, 1.442695
    %v2386 = vpow.pop %v2385
    %v2387 = vmul.f32 %v2384, 1.442695
    %v2388 = vpow.pop %v2387
    %v2389 = vsel %vm290, %v2386, 0.0
    %2390 = vadd.xlane.f32.xlu0 %v2389
    %v2391 = vpop.xlane.xlu0 %2390
    %v2392 = vsel %vm290, %v2388, 0.0
    %2393 = vadd.xlane.f32.xlu0 %v2392
    %v2394 = vpop.xlane.xlu0 %2393
    %v2395 = vrcp.pop %v2391
    %v2396 = vrcp.pop %v2394
    %v2397 = vmul.f32 %v2391, %v2395
    %v2398 = vmul.f32 %v2394, %v2396
    %v2399 = vsub.f32 2.0, %v2397
    %v2400 = vsub.f32 2.0, %v2398
    %v2401 = vmul.f32 %v2395, %v2399
    %v2402 = vmul.f32 %v2396, %v2400
    %v2403 = vmul.f32 %v2386, %v2401
    %v2404 = vmul.f32 %v2388, %v2402
    %2405 = vrot.lane.b32.xlu0 %v2211, 64
    %v2406 = vpop.permute.xlu0 %2405
    %v2409 = vsel %vm290, %v2403, 0
    %2411 = vmatprep.subr.mxu0 0.0
    %2412 = vmatpush1.msra.mxu0 %v2406
    %2413 = vmatprep.subr.mxu0 0.0
    %2414 = vmatpush1.msra.mxu0 0.0
    %2415 = vmatprep.subr.mxu0 0.0
    %2416 = vmatpush1.msra.mxu0 0.0
    %2417 = vmatprep.subr.mxu0 0.0
    %2418 = vmatpush1.msra.mxu0 0.0
    %2419 = vmatprep.subr.mxu0 0.0
    %2420 = vmatpush1.msra.mxu0 0.0
    %2421 = vmatprep.subr.mxu0 0.0
    %2422 = vmatpush1.msra.mxu0 0.0
    %2423 = vmatprep.subr.mxu0 0.0
    %2424 = vmatpush1.msra.mxu0 0.0
    %2425 = vmatprep.subr.mxu0 0.0
    %2426 = vmatpush1.msra.mxu0 0.0
    %2427 = vmatprep.subr.mxu0 0.0
    %2428 = vmatpush1.msra.mxu0 0.0
    %2429 = vmatprep.subr.mxu0 0.0
    %2430 = vmatpush1.msra.mxu0 0.0
    %2431 = vmatprep.subr.mxu0 0.0
    %2432 = vmatpush1.msra.mxu0 0.0
    %2433 = vmatprep.subr.mxu0 0.0
    %2434 = vmatpush1.msra.mxu0 0.0
    %2435 = vmatprep.subr.mxu0 0.0
    %2436 = vmatpush1.msra.mxu0 0.0
    %2437 = vmatprep.subr.mxu0 0.0
    %2438 = vmatpush1.msra.mxu0 0.0
    %2439 = vmatprep.subr.mxu0 0.0
    %2440 = vmatpush1.msra.mxu0 0.0
    %2441 = vmatprep.subr.mxu0 0.0
    %2442 = vmatpush1.msra.mxu0 0.0
    %2443 = vmatprep.subr.mxu0 0.0
    %2444 = vmatpush1.msra.mxu0 0.0
    %2445 = vmatprep.subr.mxu0 0.0
    %2446 = vmatpush1.msra.mxu0 0.0
    %2447 = vmatprep.subr.mxu0 0.0
    %2448 = vmatpush1.msra.mxu0 0.0
    %2449 = vmatprep.subr.mxu0 0.0
    %2450 = vmatpush1.msra.mxu0 0.0
    %2451 = vmatprep.subr.mxu0 0.0
    %2452 = vmatpush1.msra.mxu0 0.0
    %2453 = vmatprep.subr.mxu0 0.0
    %2454 = vmatpush1.msra.mxu0 0.0
    %2455 = vmatprep.subr.mxu0 0.0
    %2456 = vmatpush1.msra.mxu0 0.0
    %2457 = vmatprep.subr.mxu0 0.0
    %2458 = vmatpush1.msra.mxu0 0.0
    %2459 = vmatprep.subr.mxu0 0.0
    %2460 = vmatpush1.msra.mxu0 0.0
    %2461 = vmatprep.subr.mxu0 0.0
    %2462 = vmatpush1.msra.mxu0 0.0
    %2463 = vmatprep.subr.mxu0 0.0
    %2464 = vmatpush1.msra.mxu0 0.0
    %2465 = vmatprep.subr.mxu0 0.0
    %2466 = vmatpush1.msra.mxu0 0.0
    %2467 = vmatprep.subr.mxu0 0.0
    %2468 = vmatpush1.msra.mxu0 0.0
    %2469 = vmatprep.subr.mxu0 0.0
    %2470 = vmatpush1.msra.mxu0 0.0
    %2471 = vmatprep.subr.mxu0 0.0
    %2472 = vmatpush1.msra.mxu0 0.0
    %2473 = vmatprep.subr.mxu0 0.0
    %2474 = vmatpush1.msra.mxu0 0.0
    %2475 = vmatprep.mubr.f32.mxu0 0.0
    %2476 = vmatmul.mubr.f32.gmra.mrb[0].mxu0 %v2409
    %v2477 = vpop.f32.mrb[0].mxu0
    %v2478 = vadd.f32 0.0, %v2477
    %v2479 = vpop.f32.mrb[0].mxu0
    %2480 = vdwg.mxu0
    %2481 = vrot.lane.b32.xlu0 %v2216, 64
    %v2482 = vpop.permute.xlu0 %2481
    %v2485 = vsel %vm290, %v2404, 0
    %2487 = vmatprep.subr.mxu0 0.0
    %2488 = vmatpush1.msra.mxu0 %v2482
    %2489 = vmatprep.subr.mxu0 0.0
    %2490 = vmatpush1.msra.mxu0 0.0
    %2491 = vmatprep.subr.mxu0 0.0
    %2492 = vmatpush1.msra.mxu0 0.0
    %2493 = vmatprep.subr.mxu0 0.0
    %2494 = vmatpush1.msra.mxu0 0.0
    %2495 = vmatprep.subr.mxu0 0.0
    %2496 = vmatpush1.msra.mxu0 0.0
    %2497 = vmatprep.subr.mxu0 0.0
    %2498 = vmatpush1.msra.mxu0 0.0
    %2499 = vmatprep.subr.mxu0 0.0
    %2500 = vmatpush1.msra.mxu0 0.0
    %2501 = vmatprep.subr.mxu0 0.0
    %2502 = vmatpush1.msra.mxu0 0.0
    %2503 = vmatprep.subr.mxu0 0.0
    %2504 = vmatpush1.msra.mxu0 0.0
    %2505 = vmatprep.subr.mxu0 0.0
    %2506 = vmatpush1.msra.mxu0 0.0
    %2507 = vmatprep.subr.mxu0 0.0
    %2508 = vmatpush1.msra.mxu0 0.0
    %2509 = vmatprep.subr.mxu0 0.0
    %2510 = vmatpush1.msra.mxu0 0.0
    %2511 = vmatprep.subr.mxu0 0.0
    %2512 = vmatpush1.msra.mxu0 0.0
    %2513 = vmatprep.subr.mxu0 0.0
    %2514 = vmatpush1.msra.mxu0 0.0
    %2515 = vmatprep.subr.mxu0 0.0
    %2516 = vmatpush1.msra.mxu0 0.0
    %2517 = vmatprep.subr.mxu0 0.0
    %2518 = vmatpush1.msra.mxu0 0.0
    %2519 = vmatprep.subr.mxu0 0.0
    %2520 = vmatpush1.msra.mxu0 0.0
    %2521 = vmatprep.subr.mxu0 0.0
    %2522 = vmatpush1.msra.mxu0 0.0
    %2523 = vmatprep.subr.mxu0 0.0
    %2524 = vmatpush1.msra.mxu0 0.0
    %2525 = vmatprep.subr.mxu0 0.0
    %2526 = vmatpush1.msra.mxu0 0.0
    %2527 = vmatprep.subr.mxu0 0.0
    %2528 = vmatpush1.msra.mxu0 0.0
    %2529 = vmatprep.subr.mxu0 0.0
    %2530 = vmatpush1.msra.mxu0 0.0
    %2531 = vmatprep.subr.mxu0 0.0
    %2532 = vmatpush1.msra.mxu0 0.0
    %2533 = vmatprep.subr.mxu0 0.0
    %2534 = vmatpush1.msra.mxu0 0.0
    %2535 = vmatprep.subr.mxu0 0.0
    %2536 = vmatpush1.msra.mxu0 0.0
    %2537 = vmatprep.subr.mxu0 0.0
    %2538 = vmatpush1.msra.mxu0 0.0
    %2539 = vmatprep.subr.mxu0 0.0
    %2540 = vmatpush1.msra.mxu0 0.0
    %2541 = vmatprep.subr.mxu0 0.0
    %2542 = vmatpush1.msra.mxu0 0.0
    %2543 = vmatprep.subr.mxu0 0.0
    %2544 = vmatpush1.msra.mxu0 0.0
    %2545 = vmatprep.subr.mxu0 0.0
    %2546 = vmatpush1.msra.mxu0 0.0
    %2547 = vmatprep.subr.mxu0 0.0
    %2548 = vmatpush1.msra.mxu0 0.0
    %2549 = vmatprep.subr.mxu0 0.0
    %2550 = vmatpush1.msra.mxu0 0.0
    %2551 = vmatprep.mubr.f32.mxu0 0.0
    %2552 = vmatmul.mubr.f32.gmra.mrb[0].mxu0 %v2485
    %v2553 = vpop.f32.mrb[0].mxu0
    %v2554 = vadd.f32 0.0, %v2553
    %v2555 = vpop.f32.mrb[0].mxu0
    %2556 = vdwg.mxu0
    %2557 = vrot.lane.b32.xlu0 %v2211, 120
    %v2558 = vpop.permute.xlu0 %2557
    %2559 = vrot.lane.b32.xlu0 %v2211, 88
    %v2560 = vpop.permute.xlu0 %2559
    %v2561 = vsel %vm290, %v2558, 0
    %v2563 = vsel %vm290, %v2560, 0
    %2565 = vmatprep.subr.mxu0 0.0
    %2566 = vmatpush1.xpose.msra.mxu0 %v2563
    %2567 = vmatprep.subr.mxu0 0.0
    %2568 = vmatpush1.xpose.msra.mxu0 0.0
    %2569 = vmatprep.subr.mxu0 0.0
    %2570 = vmatpush1.xpose.msra.mxu0 0.0
    %2571 = vmatprep.subr.mxu0 0.0
    %2572 = vmatpush1.xpose.msra.mxu0 0.0
    %2573 = vmatprep.subr.mxu0 0.0
    %2574 = vmatpush1.xpose.msra.mxu0 0.0
    %2575 = vmatprep.subr.mxu0 0.0
    %2576 = vmatpush1.xpose.msra.mxu0 0.0
    %2577 = vmatprep.subr.mxu0 0.0
    %2578 = vmatpush1.xpose.msra.mxu0 0.0
    %2579 = vmatprep.subr.mxu0 0.0
    %2580 = vmatpush1.xpose.msra.mxu0 0.0
    %2581 = vmatprep.subr.mxu0 0.0
    %2582 = vmatpush1.xpose.msra.mxu0 0.0
    %2583 = vmatprep.subr.mxu0 0.0
    %2584 = vmatpush1.xpose.msra.mxu0 0.0
    %2585 = vmatprep.subr.mxu0 0.0
    %2586 = vmatpush1.xpose.msra.mxu0 0.0
    %2587 = vmatprep.subr.mxu0 0.0
    %2588 = vmatpush1.xpose.msra.mxu0 0.0
    %2589 = vmatprep.subr.mxu0 0.0
    %2590 = vmatpush1.xpose.msra.mxu0 0.0
    %2591 = vmatprep.subr.mxu0 0.0
    %2592 = vmatpush1.xpose.msra.mxu0 0.0
    %2593 = vmatprep.subr.mxu0 0.0
    %2594 = vmatpush1.xpose.msra.mxu0 0.0
    %2595 = vmatprep.subr.mxu0 0.0
    %2596 = vmatpush1.xpose.msra.mxu0 0.0
    %2597 = vmatprep.subr.mxu0 0.0
    %2598 = vmatpush1.xpose.msra.mxu0 0.0
    %2599 = vmatprep.subr.mxu0 0.0
    %2600 = vmatpush1.xpose.msra.mxu0 0.0
    %2601 = vmatprep.subr.mxu0 0.0
    %2602 = vmatpush1.xpose.msra.mxu0 0.0
    %2603 = vmatprep.subr.mxu0 0.0
    %2604 = vmatpush1.xpose.msra.mxu0 0.0
    %2605 = vmatprep.subr.mxu0 0.0
    %2606 = vmatpush1.xpose.msra.mxu0 0.0
    %2607 = vmatprep.subr.mxu0 0.0
    %2608 = vmatpush1.xpose.msra.mxu0 0.0
    %2609 = vmatprep.subr.mxu0 0.0
    %2610 = vmatpush1.xpose.msra.mxu0 0.0
    %2611 = vmatprep.subr.mxu0 0.0
    %2612 = vmatpush1.xpose.msra.mxu0 0.0
    %2613 = vmatprep.subr.mxu0 0.0
    %2614 = vmatpush1.xpose.msra.mxu0 0.0
    %2615 = vmatprep.subr.mxu0 0.0
    %2616 = vmatpush1.xpose.msra.mxu0 0.0
    %2617 = vmatprep.subr.mxu0 0.0
    %2618 = vmatpush1.xpose.msra.mxu0 0.0
    %2619 = vmatprep.subr.mxu0 0.0
    %2620 = vmatpush1.xpose.msra.mxu0 0.0
    %2621 = vmatprep.subr.mxu0 0.0
    %2622 = vmatpush1.xpose.msra.mxu0 0.0
    %2623 = vmatprep.subr.mxu0 0.0
    %2624 = vmatpush1.xpose.msra.mxu0 0.0
    %2625 = vmatprep.subr.mxu0 0.0
    %2626 = vmatpush1.xpose.msra.mxu0 0.0
    %2627 = vmatprep.subr.mxu0 0.0
    %2628 = vmatpush1.xpose.msra.mxu0 0.0
    %2629 = vmatprep.mubr.f32.mxu0 0.0
    %2630 = vmatmul.mubr.f32.gmra.mrb[0].mxu0 %v2561
    %v2631 = vpop.f32.mrb[0].mxu0
    %v2632 = vadd.f32 0.0, %v2631
    %v2633 = vpop.f32.mrb[0].mxu0
    %2634 = vdwg.mxu0
    %2635 = vrot.lane.b32.xlu0 %v2216, 120
    %v2636 = vpop.permute.xlu0 %2635
    %2637 = vrot.lane.b32.xlu0 %v2216, 88
    %v2638 = vpop.permute.xlu0 %2637
    %v2639 = vsel %vm290, %v2636, 0
    %v2641 = vsel %vm290, %v2638, 0
    %2643 = vmatprep.subr.mxu0 0.0
    %2644 = vmatpush1.xpose.msra.mxu0 %v2641
    %2645 = vmatprep.subr.mxu0 0.0
    %2646 = vmatpush1.xpose.msra.mxu0 0.0
    %2647 = vmatprep.subr.mxu0 0.0
    %2648 = vmatpush1.xpose.msra.mxu0 0.0
    %2649 = vmatprep.subr.mxu0 0.0
    %2650 = vmatpush1.xpose.msra.mxu0 0.0
    %2651 = vmatprep.subr.mxu0 0.0
    %2652 = vmatpush1.xpose.msra.mxu0 0.0
    %2653 = vmatprep.subr.mxu0 0.0
    %2654 = vmatpush1.xpose.msra.mxu0 0.0
    %2655 = vmatprep.subr.mxu0 0.0
    %2656 = vmatpush1.xpose.msra.mxu0 0.0
    %2657 = vmatprep.subr.mxu0 0.0
    %2658 = vmatpush1.xpose.msra.mxu0 0.0
    %2659 = vmatprep.subr.mxu0 0.0
    %2660 = vmatpush1.xpose.msra.mxu0 0.0
    %2661 = vmatprep.subr.mxu0 0.0
    %2662 = vmatpush1.xpose.msra.mxu0 0.0
    %2663 = vmatprep.subr.mxu0 0.0
    %2664 = vmatpush1.xpose.msra.mxu0 0.0
    %2665 = vmatprep.subr.mxu0 0.0
    %2666 = vmatpush1.xpose.msra.mxu0 0.0
    %2667 = vmatprep.subr.mxu0 0.0
    %2668 = vmatpush1.xpose.msra.mxu0 0.0
    %2669 = vmatprep.subr.mxu0 0.0
    %2670 = vmatpush1.xpose.msra.mxu0 0.0
    %2671 = vmatprep.subr.mxu0 0.0
    %2672 = vmatpush1.xpose.msra.mxu0 0.0
    %2673 = vmatprep.subr.mxu0 0.0
    %2674 = vmatpush1.xpose.msra.mxu0 0.0
    %2675 = vmatprep.subr.mxu0 0.0
    %2676 = vmatpush1.xpose.msra.mxu0 0.0
    %2677 = vmatprep.subr.mxu0 0.0
    %2678 = vmatpush1.xpose.msra.mxu0 0.0
    %2679 = vmatprep.subr.mxu0 0.0
    %2680 = vmatpush1.xpose.msra.mxu0 0.0
    %2681 = vmatprep.subr.mxu0 0.0
    %2682 = vmatpush1.xpose.msra.mxu0 0.0
    %2683 = vmatprep.subr.mxu0 0.0
    %2684 = vmatpush1.xpose.msra.mxu0 0.0
    %2685 = vmatprep.subr.mxu0 0.0
    %2686 = vmatpush1.xpose.msra.mxu0 0.0
    %2687 = vmatprep.subr.mxu0 0.0
    %2688 = vmatpush1.xpose.msra.mxu0 0.0
    %2689 = vmatprep.subr.mxu0 0.0
    %2690 = vmatpush1.xpose.msra.mxu0 0.0
    %2691 = vmatprep.subr.mxu0 0.0
    %2692 = vmatpush1.xpose.msra.mxu0 0.0
    %2693 = vmatprep.subr.mxu0 0.0
    %2694 = vmatpush1.xpose.msra.mxu0 0.0
    %2695 = vmatprep.subr.mxu0 0.0
    %2696 = vmatpush1.xpose.msra.mxu0 0.0
    %2697 = vmatprep.subr.mxu0 0.0
    %2698 = vmatpush1.xpose.msra.mxu0 0.0
    %2699 = vmatprep.subr.mxu0 0.0
    %2700 = vmatpush1.xpose.msra.mxu0 0.0
    %2701 = vmatprep.subr.mxu0 0.0
    %2702 = vmatpush1.xpose.msra.mxu0 0.0
    %2703 = vmatprep.subr.mxu0 0.0
    %2704 = vmatpush1.xpose.msra.mxu0 0.0
    %2705 = vmatprep.subr.mxu0 0.0
    %2706 = vmatpush1.xpose.msra.mxu0 0.0
    %2707 = vmatprep.mubr.f32.mxu0 0.0
    %2708 = vmatmul.mubr.f32.gmra.mrb[0].mxu0 %v2639
    %v2709 = vpop.f32.mrb[0].mxu0
    %v2710 = vadd.f32 0.0, %v2709
    %v2711 = vpop.f32.mrb[0].mxu0
    %2712 = vdwg.mxu0
    %v2713 = vmul.f32 %v2632, 0.35355338
    %v2714 = vmul.f32 %v2710, 0.35355338
    %v2715 = vadd.f32 %v2713, %v470
    %v2716 = vadd.f32 %v2714, %v474
    %v2717 = vsel %vm290, %v2715, -inf
    %2718 = vmax.xlane.f32.xlu0 %v2717
    %v2719 = vpop.xlane.xlu0 %2718
    %v2720 = vsel %vm290, %v2716, -inf
    %2721 = vmax.xlane.f32.xlu0 %v2720
    %v2722 = vpop.xlane.xlu0 %2721
    %v2723 = vsub.f32 %v2715, %v2719
    %v2724 = vsub.f32 %v2716, %v2722
    %v2725 = vmul.f32 %v2723, 1.442695
    %v2726 = vpow.pop %v2725
    %v2727 = vmul.f32 %v2724, 1.442695
    %v2728 = vpow.pop %v2727
    %v2729 = vsel %vm290, %v2726, 0.0
    %2730 = vadd.xlane.f32.xlu0 %v2729
    %v2731 = vpop.xlane.xlu0 %2730
    %v2732 = vsel %vm290, %v2728, 0.0
    %2733 = vadd.xlane.f32.xlu0 %v2732
    %v2734 = vpop.xlane.xlu0 %2733
    %v2735 = vrcp.pop %v2731
    %v2736 = vrcp.pop %v2734
    %v2737 = vmul.f32 %v2731, %v2735
    %v2738 = vmul.f32 %v2734, %v2736
    %v2739 = vsub.f32 2.0, %v2737
    %v2740 = vsub.f32 2.0, %v2738
    %v2741 = vmul.f32 %v2735, %v2739
    %v2742 = vmul.f32 %v2736, %v2740
    %v2743 = vmul.f32 %v2726, %v2741
    %v2744 = vmul.f32 %v2728, %v2742
    %2745 = vrot.lane.b32.xlu0 %v2211, 56
    %v2746 = vpop.permute.xlu0 %2745
    %v2749 = vsel %vm290, %v2743, 0
    %2751 = vmatprep.subr.mxu0 0.0
    %2752 = vmatpush1.msra.mxu0 %v2746
    %2753 = vmatprep.subr.mxu0 0.0
    %2754 = vmatpush1.msra.mxu0 0.0
    %2755 = vmatprep.subr.mxu0 0.0
    %2756 = vmatpush1.msra.mxu0 0.0
    %2757 = vmatprep.subr.mxu0 0.0
    %2758 = vmatpush1.msra.mxu0 0.0
    %2759 = vmatprep.subr.mxu0 0.0
    %2760 = vmatpush1.msra.mxu0 0.0
    %2761 = vmatprep.subr.mxu0 0.0
    %2762 = vmatpush1.msra.mxu0 0.0
    %2763 = vmatprep.subr.mxu0 0.0
    %2764 = vmatpush1.msra.mxu0 0.0
    %2765 = vmatprep.subr.mxu0 0.0
    %2766 = vmatpush1.msra.mxu0 0.0
    %2767 = vmatprep.subr.mxu0 0.0
    %2768 = vmatpush1.msra.mxu0 0.0
    %2769 = vmatprep.subr.mxu0 0.0
    %2770 = vmatpush1.msra.mxu0 0.0
    %2771 = vmatprep.subr.mxu0 0.0
    %2772 = vmatpush1.msra.mxu0 0.0
    %2773 = vmatprep.subr.mxu0 0.0
    %2774 = vmatpush1.msra.mxu0 0.0
    %2775 = vmatprep.subr.mxu0 0.0
    %2776 = vmatpush1.msra.mxu0 0.0
    %2777 = vmatprep.subr.mxu0 0.0
    %2778 = vmatpush1.msra.mxu0 0.0
    %2779 = vmatprep.subr.mxu0 0.0
    %2780 = vmatpush1.msra.mxu0 0.0
    %2781 = vmatprep.subr.mxu0 0.0
    %2782 = vmatpush1.msra.mxu0 0.0
    %2783 = vmatprep.subr.mxu0 0.0
    %2784 = vmatpush1.msra.mxu0 0.0
    %2785 = vmatprep.subr.mxu0 0.0
    %2786 = vmatpush1.msra.mxu0 0.0
    %2787 = vmatprep.subr.mxu0 0.0
    %2788 = vmatpush1.msra.mxu0 0.0
    %2789 = vmatprep.subr.mxu0 0.0
    %2790 = vmatpush1.msra.mxu0 0.0
    %2791 = vmatprep.subr.mxu0 0.0
    %2792 = vmatpush1.msra.mxu0 0.0
    %2793 = vmatprep.subr.mxu0 0.0
    %2794 = vmatpush1.msra.mxu0 0.0
    %2795 = vmatprep.subr.mxu0 0.0
    %2796 = vmatpush1.msra.mxu0 0.0
    %2797 = vmatprep.subr.mxu0 0.0
    %2798 = vmatpush1.msra.mxu0 0.0
    %2799 = vmatprep.subr.mxu0 0.0
    %2800 = vmatpush1.msra.mxu0 0.0
    %2801 = vmatprep.subr.mxu0 0.0
    %2802 = vmatpush1.msra.mxu0 0.0
    %2803 = vmatprep.subr.mxu0 0.0
    %2804 = vmatpush1.msra.mxu0 0.0
    %2805 = vmatprep.subr.mxu0 0.0
    %2806 = vmatpush1.msra.mxu0 0.0
    %2807 = vmatprep.subr.mxu0 0.0
    %2808 = vmatpush1.msra.mxu0 0.0
    %2809 = vmatprep.subr.mxu0 0.0
    %2810 = vmatpush1.msra.mxu0 0.0
    %2811 = vmatprep.subr.mxu0 0.0
    %2812 = vmatpush1.msra.mxu0 0.0
    %2813 = vmatprep.subr.mxu0 0.0
    %2814 = vmatpush1.msra.mxu0 0.0
    %2815 = vmatprep.mubr.f32.mxu0 0.0
    %2816 = vmatmul.mubr.f32.gmra.mrb[0].mxu0 %v2749
    %v2817 = vpop.f32.mrb[0].mxu0
    %v2818 = vadd.f32 0.0, %v2817
    %v2819 = vpop.f32.mrb[0].mxu0
    %2820 = vdwg.mxu0
    %2821 = vrot.lane.b32.xlu0 %v2216, 56
    %v2822 = vpop.permute.xlu0 %2821
    %v2825 = vsel %vm290, %v2744, 0
    %2827 = vmatprep.subr.mxu0 0.0
    %2828 = vmatpush1.msra.mxu0 %v2822
    %2829 = vmatprep.subr.mxu0 0.0
    %2830 = vmatpush1.msra.mxu0 0.0
    %2831 = vmatprep.subr.mxu0 0.0
    %2832 = vmatpush1.msra.mxu0 0.0
    %2833 = vmatprep.subr.mxu0 0.0
    %2834 = vmatpush1.msra.mxu0 0.0
    %2835 = vmatprep.subr.mxu0 0.0
    %2836 = vmatpush1.msra.mxu0 0.0
    %2837 = vmatprep.subr.mxu0 0.0
    %2838 = vmatpush1.msra.mxu0 0.0
    %2839 = vmatprep.subr.mxu0 0.0
    %2840 = vmatpush1.msra.mxu0 0.0
    %2841 = vmatprep.subr.mxu0 0.0
    %2842 = vmatpush1.msra.mxu0 0.0
    %2843 = vmatprep.subr.mxu0 0.0
    %2844 = vmatpush1.msra.mxu0 0.0
    %2845 = vmatprep.subr.mxu0 0.0
    %2846 = vmatpush1.msra.mxu0 0.0
    %2847 = vmatprep.subr.mxu0 0.0
    %2848 = vmatpush1.msra.mxu0 0.0
    %2849 = vmatprep.subr.mxu0 0.0
    %2850 = vmatpush1.msra.mxu0 0.0
    %2851 = vmatprep.subr.mxu0 0.0
    %2852 = vmatpush1.msra.mxu0 0.0
    %2853 = vmatprep.subr.mxu0 0.0
    %2854 = vmatpush1.msra.mxu0 0.0
    %2855 = vmatprep.subr.mxu0 0.0
    %2856 = vmatpush1.msra.mxu0 0.0
    %2857 = vmatprep.subr.mxu0 0.0
    %2858 = vmatpush1.msra.mxu0 0.0
    %2859 = vmatprep.subr.mxu0 0.0
    %2860 = vmatpush1.msra.mxu0 0.0
    %2861 = vmatprep.subr.mxu0 0.0
    %2862 = vmatpush1.msra.mxu0 0.0
    %2863 = vmatprep.subr.mxu0 0.0
    %2864 = vmatpush1.msra.mxu0 0.0
    %2865 = vmatprep.subr.mxu0 0.0
    %2866 = vmatpush1.msra.mxu0 0.0
    %2867 = vmatprep.subr.mxu0 0.0
    %2868 = vmatpush1.msra.mxu0 0.0
    %2869 = vmatprep.subr.mxu0 0.0
    %2870 = vmatpush1.msra.mxu0 0.0
    %2871 = vmatprep.subr.mxu0 0.0
    %2872 = vmatpush1.msra.mxu0 0.0
    %2873 = vmatprep.subr.mxu0 0.0
    %2874 = vmatpush1.msra.mxu0 0.0
    %2875 = vmatprep.subr.mxu0 0.0
    %2876 = vmatpush1.msra.mxu0 0.0
    %2877 = vmatprep.subr.mxu0 0.0
    %2878 = vmatpush1.msra.mxu0 0.0
    %2879 = vmatprep.subr.mxu0 0.0
    %2880 = vmatpush1.msra.mxu0 0.0
    %2881 = vmatprep.subr.mxu0 0.0
    %2882 = vmatpush1.msra.mxu0 0.0
    %2883 = vmatprep.subr.mxu0 0.0
    %2884 = vmatpush1.msra.mxu0 0.0
    %2885 = vmatprep.subr.mxu0 0.0
    %2886 = vmatpush1.msra.mxu0 0.0
    %2887 = vmatprep.subr.mxu0 0.0
    %2888 = vmatpush1.msra.mxu0 0.0
    %2889 = vmatprep.subr.mxu0 0.0
    %2890 = vmatpush1.msra.mxu0 0.0
    %2891 = vmatprep.mubr.f32.mxu0 0.0
    %2892 = vmatmul.mubr.f32.gmra.mrb[0].mxu0 %v2825
    %v2893 = vpop.f32.mrb[0].mxu0
    %v2894 = vadd.f32 0.0, %v2893
    %v2895 = vpop.f32.mrb[0].mxu0
    %2896 = vdwg.mxu0
    %2897 = vrot.lane.b32.xlu0 %v2211, 112
    %v2898 = vpop.permute.xlu0 %2897
    %2899 = vrot.lane.b32.xlu0 %v2211, 80
    %v2900 = vpop.permute.xlu0 %2899
    %v2901 = vsel %vm290, %v2898, 0
    %v2903 = vsel %vm290, %v2900, 0
    %2905 = vmatprep.subr.mxu0 0.0
    %2906 = vmatpush1.xpose.msra.mxu0 %v2903
    %2907 = vmatprep.subr.mxu0 0.0
    %2908 = vmatpush1.xpose.msra.mxu0 0.0
    %2909 = vmatprep.subr.mxu0 0.0
    %2910 = vmatpush1.xpose.msra.mxu0 0.0
    %2911 = vmatprep.subr.mxu0 0.0
    %2912 = vmatpush1.xpose.msra.mxu0 0.0
    %2913 = vmatprep.subr.mxu0 0.0
    %2914 = vmatpush1.xpose.msra.mxu0 0.0
    %2915 = vmatprep.subr.mxu0 0.0
    %2916 = vmatpush1.xpose.msra.mxu0 0.0
    %2917 = vmatprep.subr.mxu0 0.0
    %2918 = vmatpush1.xpose.msra.mxu0 0.0
    %2919 = vmatprep.subr.mxu0 0.0
    %2920 = vmatpush1.xpose.msra.mxu0 0.0
    %2921 = vmatprep.subr.mxu0 0.0
    %2922 = vmatpush1.xpose.msra.mxu0 0.0
    %2923 = vmatprep.subr.mxu0 0.0
    %2924 = vmatpush1.xpose.msra.mxu0 0.0
    %2925 = vmatprep.subr.mxu0 0.0
    %2926 = vmatpush1.xpose.msra.mxu0 0.0
    %2927 = vmatprep.subr.mxu0 0.0
    %2928 = vmatpush1.xpose.msra.mxu0 0.0
    %2929 = vmatprep.subr.mxu0 0.0
    %2930 = vmatpush1.xpose.msra.mxu0 0.0
    %2931 = vmatprep.subr.mxu0 0.0
    %2932 = vmatpush1.xpose.msra.mxu0 0.0
    %2933 = vmatprep.subr.mxu0 0.0
    %2934 = vmatpush1.xpose.msra.mxu0 0.0
    %2935 = vmatprep.subr.mxu0 0.0
    %2936 = vmatpush1.xpose.msra.mxu0 0.0
    %2937 = vmatprep.subr.mxu0 0.0
    %2938 = vmatpush1.xpose.msra.mxu0 0.0
    %2939 = vmatprep.subr.mxu0 0.0
    %2940 = vmatpush1.xpose.msra.mxu0 0.0
    %2941 = vmatprep.subr.mxu0 0.0
    %2942 = vmatpush1.xpose.msra.mxu0 0.0
    %2943 = vmatprep.subr.mxu0 0.0
    %2944 = vmatpush1.xpose.msra.mxu0 0.0
    %2945 = vmatprep.subr.mxu0 0.0
    %2946 = vmatpush1.xpose.msra.mxu0 0.0
    %2947 = vmatprep.subr.mxu0 0.0
    %2948 = vmatpush1.xpose.msra.mxu0 0.0
    %2949 = vmatprep.subr.mxu0 0.0
    %2950 = vmatpush1.xpose.msra.mxu0 0.0
    %2951 = vmatprep.subr.mxu0 0.0
    %2952 = vmatpush1.xpose.msra.mxu0 0.0
    %2953 = vmatprep.subr.mxu0 0.0
    %2954 = vmatpush1.xpose.msra.mxu0 0.0
    %2955 = vmatprep.subr.mxu0 0.0
    %2956 = vmatpush1.xpose.msra.mxu0 0.0
    %2957 = vmatprep.subr.mxu0 0.0
    %2958 = vmatpush1.xpose.msra.mxu0 0.0
    %2959 = vmatprep.subr.mxu0 0.0
    %2960 = vmatpush1.xpose.msra.mxu0 0.0
    %2961 = vmatprep.subr.mxu0 0.0
    %2962 = vmatpush1.xpose.msra.mxu0 0.0
    %2963 = vmatprep.subr.mxu0 0.0
    %2964 = vmatpush1.xpose.msra.mxu0 0.0
    %2965 = vmatprep.subr.mxu0 0.0
    %2966 = vmatpush1.xpose.msra.mxu0 0.0
    %2967 = vmatprep.subr.mxu0 0.0
    %2968 = vmatpush1.xpose.msra.mxu0 0.0
    %2969 = vmatprep.mubr.f32.mxu0 0.0
    %2970 = vmatmul.mubr.f32.gmra.mrb[0].mxu0 %v2901
    %v2971 = vpop.f32.mrb[0].mxu0
    %v2972 = vadd.f32 0.0, %v2971
    %v2973 = vpop.f32.mrb[0].mxu0
    %2974 = vdwg.mxu0
    %2975 = vrot.lane.b32.xlu0 %v2216, 112
    %v2976 = vpop.permute.xlu0 %2975
    %2977 = vrot.lane.b32.xlu0 %v2216, 80
    %v2978 = vpop.permute.xlu0 %2977
    %v2979 = vsel %vm290, %v2976, 0
    %v2981 = vsel %vm290, %v2978, 0
    %2983 = vmatprep.subr.mxu0 0.0
    %2984 = vmatpush1.xpose.msra.mxu0 %v2981
    %2985 = vmatprep.subr.mxu0 0.0
    %2986 = vmatpush1.xpose.msra.mxu0 0.0
    %2987 = vmatprep.subr.mxu0 0.0
    %2988 = vmatpush1.xpose.msra.mxu0 0.0
    %2989 = vmatprep.subr.mxu0 0.0
    %2990 = vmatpush1.xpose.msra.mxu0 0.0
    %2991 = vmatprep.subr.mxu0 0.0
    %2992 = vmatpush1.xpose.msra.mxu0 0.0
    %2993 = vmatprep.subr.mxu0 0.0
    %2994 = vmatpush1.xpose.msra.mxu0 0.0
    %2995 = vmatprep.subr.mxu0 0.0
    %2996 = vmatpush1.xpose.msra.mxu0 0.0
    %2997 = vmatprep.subr.mxu0 0.0
    %2998 = vmatpush1.xpose.msra.mxu0 0.0
    %2999 = vmatprep.subr.mxu0 0.0
    %3000 = vmatpush1.xpose.msra.mxu0 0.0
    %3001 = vmatprep.subr.mxu0 0.0
    %3002 = vmatpush1.xpose.msra.mxu0 0.0
    %3003 = vmatprep.subr.mxu0 0.0
    %3004 = vmatpush1.xpose.msra.mxu0 0.0
    %3005 = vmatprep.subr.mxu0 0.0
    %3006 = vmatpush1.xpose.msra.mxu0 0.0
    %3007 = vmatprep.subr.mxu0 0.0
    %3008 = vmatpush1.xpose.msra.mxu0 0.0
    %3009 = vmatprep.subr.mxu0 0.0
    %3010 = vmatpush1.xpose.msra.mxu0 0.0
    %3011 = vmatprep.subr.mxu0 0.0
    %3012 = vmatpush1.xpose.msra.mxu0 0.0
    %3013 = vmatprep.subr.mxu0 0.0
    %3014 = vmatpush1.xpose.msra.mxu0 0.0
    %3015 = vmatprep.subr.mxu0 0.0
    %3016 = vmatpush1.xpose.msra.mxu0 0.0
    %3017 = vmatprep.subr.mxu0 0.0
    %3018 = vmatpush1.xpose.msra.mxu0 0.0
    %3019 = vmatprep.subr.mxu0 0.0
    %3020 = vmatpush1.xpose.msra.mxu0 0.0
    %3021 = vmatprep.subr.mxu0 0.0
    %3022 = vmatpush1.xpose.msra.mxu0 0.0
    %3023 = vmatprep.subr.mxu0 0.0
    %3024 = vmatpush1.xpose.msra.mxu0 0.0
    %3025 = vmatprep.subr.mxu0 0.0
    %3026 = vmatpush1.xpose.msra.mxu0 0.0
    %3027 = vmatprep.subr.mxu0 0.0
    %3028 = vmatpush1.xpose.msra.mxu0 0.0
    %3029 = vmatprep.subr.mxu0 0.0
    %3030 = vmatpush1.xpose.msra.mxu0 0.0
    %3031 = vmatprep.subr.mxu0 0.0
    %3032 = vmatpush1.xpose.msra.mxu0 0.0
    %3033 = vmatprep.subr.mxu0 0.0
    %3034 = vmatpush1.xpose.msra.mxu0 0.0
    %3035 = vmatprep.subr.mxu0 0.0
    %3036 = vmatpush1.xpose.msra.mxu0 0.0
    %3037 = vmatprep.subr.mxu0 0.0
    %3038 = vmatpush1.xpose.msra.mxu0 0.0
    %3039 = vmatprep.subr.mxu0 0.0
    %3040 = vmatpush1.xpose.msra.mxu0 0.0
    %3041 = vmatprep.subr.mxu0 0.0
    %3042 = vmatpush1.xpose.msra.mxu0 0.0
    %3043 = vmatprep.subr.mxu0 0.0
    %3044 = vmatpush1.xpose.msra.mxu0 0.0
    %3045 = vmatprep.subr.mxu0 0.0
    %3046 = vmatpush1.xpose.msra.mxu0 0.0
    %3047 = vmatprep.mubr.f32.mxu0 0.0
    %3048 = vmatmul.mubr.f32.gmra.mrb[0].mxu0 %v2979
    %v3049 = vpop.f32.mrb[0].mxu0
    %v3050 = vadd.f32 0.0, %v3049
    %v3051 = vpop.f32.mrb[0].mxu0
    %3052 = vdwg.mxu0
    %v3053 = vmul.f32 %v2972, 0.35355338
    %v3054 = vmul.f32 %v3050, 0.35355338
    %v3055 = vadd.f32 %v3053, %v470
    %v3056 = vadd.f32 %v3054, %v474
    %v3057 = vsel %vm290, %v3055, -inf
    %3058 = vmax.xlane.f32.xlu0 %v3057
    %v3059 = vpop.xlane.xlu0 %3058
    %v3060 = vsel %vm290, %v3056, -inf
    %3061 = vmax.xlane.f32.xlu0 %v3060
    %v3062 = vpop.xlane.xlu0 %3061
    %v3063 = vsub.f32 %v3055, %v3059
    %v3064 = vsub.f32 %v3056, %v3062
    %v3065 = vmul.f32 %v3063, 1.442695
    %v3066 = vpow.pop %v3065
    %v3067 = vmul.f32 %v3064, 1.442695
    %v3068 = vpow.pop %v3067
    %v3069 = vsel %vm290, %v3066, 0.0
    %3070 = vadd.xlane.f32.xlu0 %v3069
    %v3071 = vpop.xlane.xlu0 %3070
    %v3072 = vsel %vm290, %v3068, 0.0
    %3073 = vadd.xlane.f32.xlu0 %v3072
    %v3074 = vpop.xlane.xlu0 %3073
    %v3075 = vrcp.pop %v3071
    %v3076 = vrcp.pop %v3074
    %v3077 = vmul.f32 %v3071, %v3075
    %v3078 = vmul.f32 %v3074, %v3076
    %v3079 = vsub.f32 2.0, %v3077
    %v3080 = vsub.f32 2.0, %v3078
    %v3081 = vmul.f32 %v3075, %v3079
    %v3082 = vmul.f32 %v3076, %v3080
    %v3083 = vmul.f32 %v3066, %v3081
    %v3084 = vmul.f32 %v3068, %v3082
    %3085 = vrot.lane.b32.xlu0 %v2211, 48
    %v3086 = vpop.permute.xlu0 %3085
    %v3089 = vsel %vm290, %v3083, 0
    %3091 = vmatprep.subr.mxu0 0.0
    %3092 = vmatpush1.msra.mxu0 %v3086
    %3093 = vmatprep.subr.mxu0 0.0
    %3094 = vmatpush1.msra.mxu0 0.0
    %3095 = vmatprep.subr.mxu0 0.0
    %3096 = vmatpush1.msra.mxu0 0.0
    %3097 = vmatprep.subr.mxu0 0.0
    %3098 = vmatpush1.msra.mxu0 0.0
    %3099 = vmatprep.subr.mxu0 0.0
    %3100 = vmatpush1.msra.mxu0 0.0
    %3101 = vmatprep.subr.mxu0 0.0
    %3102 = vmatpush1.msra.mxu0 0.0
    %3103 = vmatprep.subr.mxu0 0.0
    %3104 = vmatpush1.msra.mxu0 0.0
    %3105 = vmatprep.subr.mxu0 0.0
    %3106 = vmatpush1.msra.mxu0 0.0
    %3107 = vmatprep.subr.mxu0 0.0
    %3108 = vmatpush1.msra.mxu0 0.0
    %3109 = vmatprep.subr.mxu0 0.0
    %3110 = vmatpush1.msra.mxu0 0.0
    %3111 = vmatprep.subr.mxu0 0.0
    %3112 = vmatpush1.msra.mxu0 0.0
    %3113 = vmatprep.subr.mxu0 0.0
    %3114 = vmatpush1.msra.mxu0 0.0
    %3115 = vmatprep.subr.mxu0 0.0
    %3116 = vmatpush1.msra.mxu0 0.0
    %3117 = vmatprep.subr.mxu0 0.0
    %3118 = vmatpush1.msra.mxu0 0.0
    %3119 = vmatprep.subr.mxu0 0.0
    %3120 = vmatpush1.msra.mxu0 0.0
    %3121 = vmatprep.subr.mxu0 0.0
    %3122 = vmatpush1.msra.mxu0 0.0
    %3123 = vmatprep.subr.mxu0 0.0
    %3124 = vmatpush1.msra.mxu0 0.0
    %3125 = vmatprep.subr.mxu0 0.0
    %3126 = vmatpush1.msra.mxu0 0.0
    %3127 = vmatprep.subr.mxu0 0.0
    %3128 = vmatpush1.msra.mxu0 0.0
    %3129 = vmatprep.subr.mxu0 0.0
    %3130 = vmatpush1.msra.mxu0 0.0
    %3131 = vmatprep.subr.mxu0 0.0
    %3132 = vmatpush1.msra.mxu0 0.0
    %3133 = vmatprep.subr.mxu0 0.0
    %3134 = vmatpush1.msra.mxu0 0.0
    %3135 = vmatprep.subr.mxu0 0.0
    %3136 = vmatpush1.msra.mxu0 0.0
    %3137 = vmatprep.subr.mxu0 0.0
    %3138 = vmatpush1.msra.mxu0 0.0
    %3139 = vmatprep.subr.mxu0 0.0
    %3140 = vmatpush1.msra.mxu0 0.0
    %3141 = vmatprep.subr.mxu0 0.0
    %3142 = vmatpush1.msra.mxu0 0.0
    %3143 = vmatprep.subr.mxu0 0.0
    %3144 = vmatpush1.msra.mxu0 0.0
    %3145 = vmatprep.subr.mxu0 0.0
    %3146 = vmatpush1.msra.mxu0 0.0
    %3147 = vmatprep.subr.mxu0 0.0
    %3148 = vmatpush1.msra.mxu0 0.0
    %3149 = vmatprep.subr.mxu0 0.0
    %3150 = vmatpush1.msra.mxu0 0.0
    %3151 = vmatprep.subr.mxu0 0.0
    %3152 = vmatpush1.msra.mxu0 0.0
    %3153 = vmatprep.subr.mxu0 0.0
    %3154 = vmatpush1.msra.mxu0 0.0
    %3155 = vmatprep.mubr.f32.mxu0 0.0
    %3156 = vmatmul.mubr.f32.gmra.mrb[0].mxu0 %v3089
    %v3157 = vpop.f32.mrb[0].mxu0
    %v3158 = vadd.f32 0.0, %v3157
    %v3159 = vpop.f32.mrb[0].mxu0
    %3160 = vdwg.mxu0
    %3161 = vrot.lane.b32.xlu0 %v2216, 48
    %v3162 = vpop.permute.xlu0 %3161
    %v3165 = vsel %vm290, %v3084, 0
    %3167 = vmatprep.subr.mxu0 0.0
    %3168 = vmatpush1.msra.mxu0 %v3162
    %3169 = vmatprep.subr.mxu0 0.0
    %3170 = vmatpush1.msra.mxu0 0.0
    %3171 = vmatprep.subr.mxu0 0.0
    %3172 = vmatpush1.msra.mxu0 0.0
    %3173 = vmatprep.subr.mxu0 0.0
    %3174 = vmatpush1.msra.mxu0 0.0
    %3175 = vmatprep.subr.mxu0 0.0
    %3176 = vmatpush1.msra.mxu0 0.0
    %3177 = vmatprep.subr.mxu0 0.0
    %3178 = vmatpush1.msra.mxu0 0.0
    %3179 = vmatprep.subr.mxu0 0.0
    %3180 = vmatpush1.msra.mxu0 0.0
    %3181 = vmatprep.subr.mxu0 0.0
    %3182 = vmatpush1.msra.mxu0 0.0
    %3183 = vmatprep.subr.mxu0 0.0
    %3184 = vmatpush1.msra.mxu0 0.0
    %3185 = vmatprep.subr.mxu0 0.0
    %3186 = vmatpush1.msra.mxu0 0.0
    %3187 = vmatprep.subr.mxu0 0.0
    %3188 = vmatpush1.msra.mxu0 0.0
    %3189 = vmatprep.subr.mxu0 0.0
    %3190 = vmatpush1.msra.mxu0 0.0
    %3191 = vmatprep.subr.mxu0 0.0
    %3192 = vmatpush1.msra.mxu0 0.0
    %3193 = vmatprep.subr.mxu0 0.0
    %3194 = vmatpush1.msra.mxu0 0.0
    %3195 = vmatprep.subr.mxu0 0.0
    %3196 = vmatpush1.msra.mxu0 0.0
    %3197 = vmatprep.subr.mxu0 0.0
    %3198 = vmatpush1.msra.mxu0 0.0
    %3199 = vmatprep.subr.mxu0 0.0
    %3200 = vmatpush1.msra.mxu0 0.0
    %3201 = vmatprep.subr.mxu0 0.0
    %3202 = vmatpush1.msra.mxu0 0.0
    %3203 = vmatprep.subr.mxu0 0.0
    %3204 = vmatpush1.msra.mxu0 0.0
    %3205 = vmatprep.subr.mxu0 0.0
    %3206 = vmatpush1.msra.mxu0 0.0
    %3207 = vmatprep.subr.mxu0 0.0
    %3208 = vmatpush1.msra.mxu0 0.0
    %3209 = vmatprep.subr.mxu0 0.0
    %3210 = vmatpush1.msra.mxu0 0.0
    %3211 = vmatprep.subr.mxu0 0.0
    %3212 = vmatpush1.msra.mxu0 0.0
    %3213 = vmatprep.subr.mxu0 0.0
    %3214 = vmatpush1.msra.mxu0 0.0
    %3215 = vmatprep.subr.mxu0 0.0
    %3216 = vmatpush1.msra.mxu0 0.0
    %3217 = vmatprep.subr.mxu0 0.0
    %3218 = vmatpush1.msra.mxu0 0.0
    %3219 = vmatprep.subr.mxu0 0.0
    %3220 = vmatpush1.msra.mxu0 0.0
    %3221 = vmatprep.subr.mxu0 0.0
    %3222 = vmatpush1.msra.mxu0 0.0
    %3223 = vmatprep.subr.mxu0 0.0
    %3224 = vmatpush1.msra.mxu0 0.0
    %3225 = vmatprep.subr.mxu0 0.0
    %3226 = vmatpush1.msra.mxu0 0.0
    %3227 = vmatprep.subr.mxu0 0.0
    %3228 = vmatpush1.msra.mxu0 0.0
    %3229 = vmatprep.subr.mxu0 0.0
    %3230 = vmatpush1.msra.mxu0 0.0
    %3231 = vmatprep.mubr.f32.mxu0 0.0
    %3232 = vmatmul.mubr.f32.gmra.mrb[0].mxu0 %v3165
    %v3233 = vpop.f32.mrb[0].mxu0
    %v3234 = vadd.f32 0.0, %v3233
    %v3235 = vpop.f32.mrb[0].mxu0
    %3236 = vdwg.mxu0
    %3237 = vrot.lane.b32.xlu0 %v2211, 104
    %v3238 = vpop.permute.xlu0 %3237
    %3239 = vrot.lane.b32.xlu0 %v2211, 72
    %v3240 = vpop.permute.xlu0 %3239
    %v3241 = vsel %vm290, %v3238, 0
    %v3243 = vsel %vm290, %v3240, 0
    %3245 = vmatprep.subr.mxu0 0.0
    %3246 = vmatpush1.xpose.msra.mxu0 %v3243
    %3247 = vmatprep.subr.mxu0 0.0
    %3248 = vmatpush1.xpose.msra.mxu0 0.0
    %3249 = vmatprep.subr.mxu0 0.0
    %3250 = vmatpush1.xpose.msra.mxu0 0.0
    %3251 = vmatprep.subr.mxu0 0.0
    %3252 = vmatpush1.xpose.msra.mxu0 0.0
    %3253 = vmatprep.subr.mxu0 0.0
    %3254 = vmatpush1.xpose.msra.mxu0 0.0
    %3255 = vmatprep.subr.mxu0 0.0
    %3256 = vmatpush1.xpose.msra.mxu0 0.0
    %3257 = vmatprep.subr.mxu0 0.0
    %3258 = vmatpush1.xpose.msra.mxu0 0.0
    %3259 = vmatprep.subr.mxu0 0.0
    %3260 = vmatpush1.xpose.msra.mxu0 0.0
    %3261 = vmatprep.subr.mxu0 0.0
    %3262 = vmatpush1.xpose.msra.mxu0 0.0
    %3263 = vmatprep.subr.mxu0 0.0
    %3264 = vmatpush1.xpose.msra.mxu0 0.0
    %3265 = vmatprep.subr.mxu0 0.0
    %3266 = vmatpush1.xpose.msra.mxu0 0.0
    %3267 = vmatprep.subr.mxu0 0.0
    %3268 = vmatpush1.xpose.msra.mxu0 0.0
    %3269 = vmatprep.subr.mxu0 0.0
    %3270 = vmatpush1.xpose.msra.mxu0 0.0
    %3271 = vmatprep.subr.mxu0 0.0
    %3272 = vmatpush1.xpose.msra.mxu0 0.0
    %3273 = vmatprep.subr.mxu0 0.0
    %3274 = vmatpush1.xpose.msra.mxu0 0.0
    %3275 = vmatprep.subr.mxu0 0.0
    %3276 = vmatpush1.xpose.msra.mxu0 0.0
    %3277 = vmatprep.subr.mxu0 0.0
    %3278 = vmatpush1.xpose.msra.mxu0 0.0
    %3279 = vmatprep.subr.mxu0 0.0
    %3280 = vmatpush1.xpose.msra.mxu0 0.0
    %3281 = vmatprep.subr.mxu0 0.0
    %3282 = vmatpush1.xpose.msra.mxu0 0.0
    %3283 = vmatprep.subr.mxu0 0.0
    %3284 = vmatpush1.xpose.msra.mxu0 0.0
    %3285 = vmatprep.subr.mxu0 0.0
    %3286 = vmatpush1.xpose.msra.mxu0 0.0
    %3287 = vmatprep.subr.mxu0 0.0
    %3288 = vmatpush1.xpose.msra.mxu0 0.0
    %3289 = vmatprep.subr.mxu0 0.0
    %3290 = vmatpush1.xpose.msra.mxu0 0.0
    %3291 = vmatprep.subr.mxu0 0.0
    %3292 = vmatpush1.xpose.msra.mxu0 0.0
    %3293 = vmatprep.subr.mxu0 0.0
    %3294 = vmatpush1.xpose.msra.mxu0 0.0
    %3295 = vmatprep.subr.mxu0 0.0
    %3296 = vmatpush1.xpose.msra.mxu0 0.0
    %3297 = vmatprep.subr.mxu0 0.0
    %3298 = vmatpush1.xpose.msra.mxu0 0.0
    %3299 = vmatprep.subr.mxu0 0.0
    %3300 = vmatpush1.xpose.msra.mxu0 0.0
    %3301 = vmatprep.subr.mxu0 0.0
    %3302 = vmatpush1.xpose.msra.mxu0 0.0
    %3303 = vmatprep.subr.mxu0 0.0
    %3304 = vmatpush1.xpose.msra.mxu0 0.0
    %3305 = vmatprep.subr.mxu0 0.0
    %3306 = vmatpush1.xpose.msra.mxu0 0.0
    %3307 = vmatprep.subr.mxu0 0.0
    %3308 = vmatpush1.xpose.msra.mxu0 0.0
    %3309 = vmatprep.mubr.f32.mxu0 0.0
    %3310 = vmatmul.mubr.f32.gmra.mrb[0].mxu0 %v3241
    %v3311 = vpop.f32.mrb[0].mxu0
    %v3312 = vadd.f32 0.0, %v3311
    %v3313 = vpop.f32.mrb[0].mxu0
    %3314 = vdwg.mxu0
    %3315 = vrot.lane.b32.xlu0 %v2216, 104
    %v3316 = vpop.permute.xlu0 %3315
    %3317 = vrot.lane.b32.xlu0 %v2216, 72
    %v3318 = vpop.permute.xlu0 %3317
    %v3319 = vsel %vm290, %v3316, 0
    %v3321 = vsel %vm290, %v3318, 0
    %3323 = vmatprep.subr.mxu0 0.0
    %3324 = vmatpush1.xpose.msra.mxu0 %v3321
    %3325 = vmatprep.subr.mxu0 0.0
    %3326 = vmatpush1.xpose.msra.mxu0 0.0
    %3327 = vmatprep.subr.mxu0 0.0
    %3328 = vmatpush1.xpose.msra.mxu0 0.0
    %3329 = vmatprep.subr.mxu0 0.0
    %3330 = vmatpush1.xpose.msra.mxu0 0.0
    %3331 = vmatprep.subr.mxu0 0.0
    %3332 = vmatpush1.xpose.msra.mxu0 0.0
    %3333 = vmatprep.subr.mxu0 0.0
    %3334 = vmatpush1.xpose.msra.mxu0 0.0
    %3335 = vmatprep.subr.mxu0 0.0
    %3336 = vmatpush1.xpose.msra.mxu0 0.0
    %3337 = vmatprep.subr.mxu0 0.0
    %3338 = vmatpush1.xpose.msra.mxu0 0.0
    %3339 = vmatprep.subr.mxu0 0.0
    %3340 = vmatpush1.xpose.msra.mxu0 0.0
    %3341 = vmatprep.subr.mxu0 0.0
    %3342 = vmatpush1.xpose.msra.mxu0 0.0
    %3343 = vmatprep.subr.mxu0 0.0
    %3344 = vmatpush1.xpose.msra.mxu0 0.0
    %3345 = vmatprep.subr.mxu0 0.0
    %3346 = vmatpush1.xpose.msra.mxu0 0.0
    %3347 = vmatprep.subr.mxu0 0.0
    %3348 = vmatpush1.xpose.msra.mxu0 0.0
    %3349 = vmatprep.subr.mxu0 0.0
    %3350 = vmatpush1.xpose.msra.mxu0 0.0
    %3351 = vmatprep.subr.mxu0 0.0
    %3352 = vmatpush1.xpose.msra.mxu0 0.0
    %3353 = vmatprep.subr.mxu0 0.0
    %3354 = vmatpush1.xpose.msra.mxu0 0.0
    %3355 = vmatprep.subr.mxu0 0.0
    %3356 = vmatpush1.xpose.msra.mxu0 0.0
    %3357 = vmatprep.subr.mxu0 0.0
    %3358 = vmatpush1.xpose.msra.mxu0 0.0
    %3359 = vmatprep.subr.mxu0 0.0
    %3360 = vmatpush1.xpose.msra.mxu0 0.0
    %3361 = vmatprep.subr.mxu0 0.0
    %3362 = vmatpush1.xpose.msra.mxu0 0.0
    %3363 = vmatprep.subr.mxu0 0.0
    %3364 = vmatpush1.xpose.msra.mxu0 0.0
    %3365 = vmatprep.subr.mxu0 0.0
    %3366 = vmatpush1.xpose.msra.mxu0 0.0
    %3367 = vmatprep.subr.mxu0 0.0
    %3368 = vmatpush1.xpose.msra.mxu0 0.0
    %3369 = vmatprep.subr.mxu0 0.0
    %3370 = vmatpush1.xpose.msra.mxu0 0.0
    %3371 = vmatprep.subr.mxu0 0.0
    %3372 = vmatpush1.xpose.msra.mxu0 0.0
    %3373 = vmatprep.subr.mxu0 0.0
    %3374 = vmatpush1.xpose.msra.mxu0 0.0
    %3375 = vmatprep.subr.mxu0 0.0
    %3376 = vmatpush1.xpose.msra.mxu0 0.0
    %3377 = vmatprep.subr.mxu0 0.0
    %3378 = vmatpush1.xpose.msra.mxu0 0.0
    %3379 = vmatprep.subr.mxu0 0.0
    %3380 = vmatpush1.xpose.msra.mxu0 0.0
    %3381 = vmatprep.subr.mxu0 0.0
    %3382 = vmatpush1.xpose.msra.mxu0 0.0
    %3383 = vmatprep.subr.mxu0 0.0
    %3384 = vmatpush1.xpose.msra.mxu0 0.0
    %3385 = vmatprep.subr.mxu0 0.0
    %3386 = vmatpush1.xpose.msra.mxu0 0.0
    %3387 = vmatprep.mubr.f32.mxu0 0.0
    %3388 = vmatmul.mubr.f32.gmra.mrb[0].mxu0 %v3319
    %v3389 = vpop.f32.mrb[0].mxu0
    %v3390 = vadd.f32 0.0, %v3389
    %v3391 = vpop.f32.mrb[0].mxu0
    %3392 = vdwg.mxu0
    %v3393 = vmul.f32 %v3312, 0.35355338
    %v3394 = vmul.f32 %v3390, 0.35355338
    %v3395 = vadd.f32 %v3393, %v470
    %v3396 = vadd.f32 %v3394, %v474
    %v3397 = vsel %vm290, %v3395, -inf
    %3398 = vmax.xlane.f32.xlu0 %v3397
    %v3399 = vpop.xlane.xlu0 %3398
    %v3400 = vsel %vm290, %v3396, -inf
    %3401 = vmax.xlane.f32.xlu0 %v3400
    %v3402 = vpop.xlane.xlu0 %3401
    %v3403 = vsub.f32 %v3395, %v3399
    %v3404 = vsub.f32 %v3396, %v3402
    %v3405 = vmul.f32 %v3403, 1.442695
    %v3406 = vpow.pop %v3405
    %v3407 = vmul.f32 %v3404, 1.442695
    %v3408 = vpow.pop %v3407
    %v3409 = vsel %vm290, %v3406, 0.0
    %3410 = vadd.xlane.f32.xlu0 %v3409
    %v3411 = vpop.xlane.xlu0 %3410
    %v3412 = vsel %vm290, %v3408, 0.0
    %3413 = vadd.xlane.f32.xlu0 %v3412
    %v3414 = vpop.xlane.xlu0 %3413
    %v3415 = vrcp.pop %v3411
    %v3416 = vrcp.pop %v3414
    %v3417 = vmul.f32 %v3411, %v3415
    %v3418 = vmul.f32 %v3414, %v3416
    %v3419 = vsub.f32 2.0, %v3417
    %v3420 = vsub.f32 2.0, %v3418
    %v3421 = vmul.f32 %v3415, %v3419
    %v3422 = vmul.f32 %v3416, %v3420
    %v3423 = vmul.f32 %v3406, %v3421
    %v3424 = vmul.f32 %v3408, %v3422
    %3425 = vrot.lane.b32.xlu0 %v2211, 40
    %v3426 = vpop.permute.xlu0 %3425
    %v3429 = vsel %vm290, %v3423, 0
    %3431 = vmatprep.subr.mxu0 0.0
    %3432 = vmatpush1.msra.mxu0 %v3426
    %3433 = vmatprep.subr.mxu0 0.0
    %3434 = vmatpush1.msra.mxu0 0.0
    %3435 = vmatprep.subr.mxu0 0.0
    %3436 = vmatpush1.msra.mxu0 0.0
    %3437 = vmatprep.subr.mxu0 0.0
    %3438 = vmatpush1.msra.mxu0 0.0
    %3439 = vmatprep.subr.mxu0 0.0
    %3440 = vmatpush1.msra.mxu0 0.0
    %3441 = vmatprep.subr.mxu0 0.0
    %3442 = vmatpush1.msra.mxu0 0.0
    %3443 = vmatprep.subr.mxu0 0.0
    %3444 = vmatpush1.msra.mxu0 0.0
    %3445 = vmatprep.subr.mxu0 0.0
    %3446 = vmatpush1.msra.mxu0 0.0
    %3447 = vmatprep.subr.mxu0 0.0
    %3448 = vmatpush1.msra.mxu0 0.0
    %3449 = vmatprep.subr.mxu0 0.0
    %3450 = vmatpush1.msra.mxu0 0.0
    %3451 = vmatprep.subr.mxu0 0.0
    %3452 = vmatpush1.msra.mxu0 0.0
    %3453 = vmatprep.subr.mxu0 0.0
    %3454 = vmatpush1.msra.mxu0 0.0
    %3455 = vmatprep.subr.mxu0 0.0
    %3456 = vmatpush1.msra.mxu0 0.0
    %3457 = vmatprep.subr.mxu0 0.0
    %3458 = vmatpush1.msra.mxu0 0.0
    %3459 = vmatprep.subr.mxu0 0.0
    %3460 = vmatpush1.msra.mxu0 0.0
    %3461 = vmatprep.subr.mxu0 0.0
    %3462 = vmatpush1.msra.mxu0 0.0
    %3463 = vmatprep.subr.mxu0 0.0
    %3464 = vmatpush1.msra.mxu0 0.0
    %3465 = vmatprep.subr.mxu0 0.0
    %3466 = vmatpush1.msra.mxu0 0.0
    %3467 = vmatprep.subr.mxu0 0.0
    %3468 = vmatpush1.msra.mxu0 0.0
    %3469 = vmatprep.subr.mxu0 0.0
    %3470 = vmatpush1.msra.mxu0 0.0
    %3471 = vmatprep.subr.mxu0 0.0
    %3472 = vmatpush1.msra.mxu0 0.0
    %3473 = vmatprep.subr.mxu0 0.0
    %3474 = vmatpush1.msra.mxu0 0.0
    %3475 = vmatprep.subr.mxu0 0.0
    %3476 = vmatpush1.msra.mxu0 0.0
    %3477 = vmatprep.subr.mxu0 0.0
    %3478 = vmatpush1.msra.mxu0 0.0
    %3479 = vmatprep.subr.mxu0 0.0
    %3480 = vmatpush1.msra.mxu0 0.0
    %3481 = vmatprep.subr.mxu0 0.0
    %3482 = vmatpush1.msra.mxu0 0.0
    %3483 = vmatprep.subr.mxu0 0.0
    %3484 = vmatpush1.msra.mxu0 0.0
    %3485 = vmatprep.subr.mxu0 0.0
    %3486 = vmatpush1.msra.mxu0 0.0
    %3487 = vmatprep.subr.mxu0 0.0
    %3488 = vmatpush1.msra.mxu0 0.0
    %3489 = vmatprep.subr.mxu0 0.0
    %3490 = vmatpush1.msra.mxu0 0.0
    %3491 = vmatprep.subr.mxu0 0.0
    %3492 = vmatpush1.msra.mxu0 0.0
    %3493 = vmatprep.subr.mxu0 0.0
    %3494 = vmatpush1.msra.mxu0 0.0
    %3495 = vmatprep.mubr.f32.mxu0 0.0
    %3496 = vmatmul.mubr.f32.gmra.mrb[0].mxu0 %v3429
    %v3497 = vpop.f32.mrb[0].mxu0
    %v3498 = vadd.f32 0.0, %v3497
    %v3499 = vpop.f32.mrb[0].mxu0
    %3500 = vdwg.mxu0
    %3501 = vrot.lane.b32.xlu0 %v2216, 40
    %v3502 = vpop.permute.xlu0 %3501
    %v3505 = vsel %vm290, %v3424, 0
    %3507 = vmatprep.subr.mxu0 0.0
    %3508 = vmatpush1.msra.mxu0 %v3502
    %3509 = vmatprep.subr.mxu0 0.0
    %3510 = vmatpush1.msra.mxu0 0.0
    %3511 = vmatprep.subr.mxu0 0.0
    %3512 = vmatpush1.msra.mxu0 0.0
    %3513 = vmatprep.subr.mxu0 0.0
    %3514 = vmatpush1.msra.mxu0 0.0
    %3515 = vmatprep.subr.mxu0 0.0
    %3516 = vmatpush1.msra.mxu0 0.0
    %3517 = vmatprep.subr.mxu0 0.0
    %3518 = vmatpush1.msra.mxu0 0.0
    %3519 = vmatprep.subr.mxu0 0.0
    %3520 = vmatpush1.msra.mxu0 0.0
    %3521 = vmatprep.subr.mxu0 0.0
    %3522 = vmatpush1.msra.mxu0 0.0
    %3523 = vmatprep.subr.mxu0 0.0
    %3524 = vmatpush1.msra.mxu0 0.0
    %3525 = vmatprep.subr.mxu0 0.0
    %3526 = vmatpush1.msra.mxu0 0.0
    %3527 = vmatprep.subr.mxu0 0.0
    %3528 = vmatpush1.msra.mxu0 0.0
    %3529 = vmatprep.subr.mxu0 0.0
    %3530 = vmatpush1.msra.mxu0 0.0
    %3531 = vmatprep.subr.mxu0 0.0
    %3532 = vmatpush1.msra.mxu0 0.0
    %3533 = vmatprep.subr.mxu0 0.0
    %3534 = vmatpush1.msra.mxu0 0.0
    %3535 = vmatprep.subr.mxu0 0.0
    %3536 = vmatpush1.msra.mxu0 0.0
    %3537 = vmatprep.subr.mxu0 0.0
    %3538 = vmatpush1.msra.mxu0 0.0
    %3539 = vmatprep.subr.mxu0 0.0
    %3540 = vmatpush1.msra.mxu0 0.0
    %3541 = vmatprep.subr.mxu0 0.0
    %3542 = vmatpush1.msra.mxu0 0.0
    %3543 = vmatprep.subr.mxu0 0.0
    %3544 = vmatpush1.msra.mxu0 0.0
    %3545 = vmatprep.subr.mxu0 0.0
    %3546 = vmatpush1.msra.mxu0 0.0
    %3547 = vmatprep.subr.mxu0 0.0
    %3548 = vmatpush1.msra.mxu0 0.0
    %3549 = vmatprep.subr.mxu0 0.0
    %3550 = vmatpush1.msra.mxu0 0.0
    %3551 = vmatprep.subr.mxu0 0.0
    %3552 = vmatpush1.msra.mxu0 0.0
    %3553 = vmatprep.subr.mxu0 0.0
    %3554 = vmatpush1.msra.mxu0 0.0
    %3555 = vmatprep.subr.mxu0 0.0
    %3556 = vmatpush1.msra.mxu0 0.0
    %3557 = vmatprep.subr.mxu0 0.0
    %3558 = vmatpush1.msra.mxu0 0.0
    %3559 = vmatprep.subr.mxu0 0.0
    %3560 = vmatpush1.msra.mxu0 0.0
    %3561 = vmatprep.subr.mxu0 0.0
    %3562 = vmatpush1.msra.mxu0 0.0
    %3563 = vmatprep.subr.mxu0 0.0
    %3564 = vmatpush1.msra.mxu0 0.0
    %3565 = vmatprep.subr.mxu0 0.0
    %3566 = vmatpush1.msra.mxu0 0.0
    %3567 = vmatprep.subr.mxu0 0.0
    %3568 = vmatpush1.msra.mxu0 0.0
    %3569 = vmatprep.subr.mxu0 0.0
    %3570 = vmatpush1.msra.mxu0 0.0
    %3571 = vmatprep.mubr.f32.mxu0 0.0
    %3572 = vmatmul.mubr.f32.gmra.mrb[0].mxu0 %v3505
    %v3573 = vpop.f32.mrb[0].mxu0
    %v3574 = vadd.f32 0.0, %v3573
    %v3575 = vpop.f32.mrb[0].mxu0
    %3576 = vdwg.mxu0
    %3579 = vrot.lane.b32.xlu0 %v2818, 8
    %v3580 = vpop.permute.xlu0 %3579
    %3581 = vrot.lane.b32.xlu0 %v2894, 8
    %v3582 = vpop.permute.xlu0 %3581
    %3587 = vrot.lane.b32.xlu0 %v3158, 16
    %v3588 = vpop.permute.xlu0 %3587
    %3589 = vrot.lane.b32.xlu0 %v3234, 16
    %v3590 = vpop.permute.xlu0 %3589
    %3595 = vrot.lane.b32.xlu0 %v3498, 24
    %v3596 = vpop.permute.xlu0 %3595
    %3597 = vrot.lane.b32.xlu0 %v3574, 24
    %v3598 = vpop.permute.xlu0 %3597
    %v3601 = vsel %vm290, %v2478, %v3580
    %v3602 = vsel %vm290, %v2554, %v3582
    %v3603 = vsel %vm1705, %v3601, %v3588
    %v3604 = vsel %vm1705, %v3602, %v3590
    %v3605 = vsel %vm1708, %v3603, %v3596
    %v3606 = vsel %vm1708, %v3604, %v3598
    %s3607 = scalar_lea.vmem %s5, 32
    %v3608 = vld [vmem:[%s3607] sm:$0xff]
    %v3609 = vld [vmem:[%s3607 + $0x8] sm:$0xff]
    %v3610 = vld [vmem:[%s3607 + $0x10] sm:$0xff]
    %v3611 = vld [vmem:[%s3607 + $0x18] sm:$0xff]
    %v3612 = vld [vmem:[%s3 + $0xc] sm:$0x1]
    %v3613 = vlaneseq
    %v3614 = vshrl.u32 %v3613, 7
    %v3615 = vsub.s32 0, %v3614
    %v3616 = vrot.slane %v3612, %v3615
    %v3618 = vsel %vm156, %v3605, 0
    %v3621 = vsel %vm156, %v3606, 0
    %3623 = vmatprep.subr.mxu0 0.0
    %3624 = vmatpush1.msra.mxu0 %v3608
    %3625 = vmatprep.subr.mxu0 0.0
    %3626 = vmatpush1.msra.mxu0 %v3609
    %3627 = vmatprep.subr.mxu0 0.0
    %3628 = vmatpush1.msra.mxu0 %v3610
    %3629 = vmatprep.subr.mxu0 0.0
    %3630 = vmatpush1.msra.mxu0 %v3611
    %3631 = vmatprep.subr.mxu0 0.0
    %3632 = vmatpush1.msra.mxu0 0.0
    %3633 = vmatprep.subr.mxu0 0.0
    %3634 = vmatpush1.msra.mxu0 0.0
    %3635 = vmatprep.subr.mxu0 0.0
    %3636 = vmatpush1.msra.mxu0 0.0
    %3637 = vmatprep.subr.mxu0 0.0
    %3638 = vmatpush1.msra.mxu0 0.0
    %3639 = vmatprep.subr.mxu0 0.0
    %3640 = vmatpush1.msra.mxu0 0.0
    %3641 = vmatprep.subr.mxu0 0.0
    %3642 = vmatpush1.msra.mxu0 0.0
    %3643 = vmatprep.subr.mxu0 0.0
    %3644 = vmatpush1.msra.mxu0 0.0
    %3645 = vmatprep.subr.mxu0 0.0
    %3646 = vmatpush1.msra.mxu0 0.0
    %3647 = vmatprep.subr.mxu0 0.0
    %3648 = vmatpush1.msra.mxu0 0.0
    %3649 = vmatprep.subr.mxu0 0.0
    %3650 = vmatpush1.msra.mxu0 0.0
    %3651 = vmatprep.subr.mxu0 0.0
    %3652 = vmatpush1.msra.mxu0 0.0
    %3653 = vmatprep.subr.mxu0 0.0
    %3654 = vmatpush1.msra.mxu0 0.0
    %3655 = vmatprep.subr.mxu0 0.0
    %3656 = vmatpush1.msra.mxu0 0.0
    %3657 = vmatprep.subr.mxu0 0.0
    %3658 = vmatpush1.msra.mxu0 0.0
    %3659 = vmatprep.subr.mxu0 0.0
    %3660 = vmatpush1.msra.mxu0 0.0
    %3661 = vmatprep.subr.mxu0 0.0
    %3662 = vmatpush1.msra.mxu0 0.0
    %3663 = vmatprep.subr.mxu0 0.0
    %3664 = vmatpush1.msra.mxu0 0.0
    %3665 = vmatprep.subr.mxu0 0.0
    %3666 = vmatpush1.msra.mxu0 0.0
    %3667 = vmatprep.subr.mxu0 0.0
    %3668 = vmatpush1.msra.mxu0 0.0
    %3669 = vmatprep.subr.mxu0 0.0
    %3670 = vmatpush1.msra.mxu0 0.0
    %3671 = vmatprep.subr.mxu0 0.0
    %3672 = vmatpush1.msra.mxu0 0.0
    %3673 = vmatprep.subr.mxu0 0.0
    %3674 = vmatpush1.msra.mxu0 0.0
    %3675 = vmatprep.subr.mxu0 0.0
    %3676 = vmatpush1.msra.mxu0 0.0
    %3677 = vmatprep.subr.mxu0 0.0
    %3678 = vmatpush1.msra.mxu0 0.0
    %3679 = vmatprep.subr.mxu0 0.0
    %3680 = vmatpush1.msra.mxu0 0.0
    %3681 = vmatprep.subr.mxu0 0.0
    %3682 = vmatpush1.msra.mxu0 0.0
    %3683 = vmatprep.subr.mxu0 0.0
    %3684 = vmatpush1.msra.mxu0 0.0
    %3685 = vmatprep.subr.mxu0 0.0
    %3686 = vmatpush1.msra.mxu0 0.0
    %3687 = vmatprep.mubr.f32.mxu0 0.0
    %3688 = vmatmul.mubr.f32.gmra.mrb[0].mxu0 %v3618
    %v3689 = vpop.f32.mrb[0].mxu0
    %v3690 = vadd.f32 %v3616, %v3689
    %v3691 = vpop.f32.mrb[0].mxu0
    %3692 = vmatprep.mubr.f32.mxu0 0.0
    %3693 = vmatmul.mubr.f32.gmra.mrb[0].mxu0 %v3621
    %v3694 = vpop.f32.mrb[0].mxu0
    %v3695 = vadd.f32 %v3616, %v3694
    %v3696 = vpop.f32.mrb[0].mxu0
    %3697 = vdwg.mxu0
    %v3698 = vadd.f32 %v2126, %v3690
    %v3699 = vadd.f32 %v2127, %v3695
    %v3700 = vld [vmem:[%s3 + $0xd] sm:$0x1]
    %v3701 = vld [vmem:[%s3 + $0xe] sm:$0x1]
    %v3702 = vsel %vm156, %v3698, 0.0
    %3703 = vadd.xlane.f32.xlu0 %v3702
    %v3704 = vpop.xlane.xlu0 %3703
    %v3705 = vsel %vm156, %v3699, 0.0
    %3706 = vadd.xlane.f32.xlu0 %v3705
    %v3707 = vpop.xlane.xlu0 %3706
    %v3708 = vmul.f32 %v3704, %v163
    %v3709 = vmul.f32 %v3707, %v163
    %v3710 = vsub.f32 %v3698, %v3708
    %v3711 = vsub.f32 %v3699, %v3709
    %v3712 = vmul.f32 %v3710, %v3710
    %v3713 = vmul.f32 %v3711, %v3711
    %v3714 = vsel %vm156, %v3712, 0.0
    %3715 = vadd.xlane.f32.xlu0 %v3714
    %v3716 = vpop.xlane.xlu0 %3715
    %v3717 = vsel %vm156, %v3713, 0.0
    %3718 = vadd.xlane.f32.xlu0 %v3717
    %v3719 = vpop.xlane.xlu0 %3718
    %v3720 = vmul.f32 %v3716, %v163
    %v3721 = vmul.f32 %v3719, %v163
    %v3722 = vadd.f32 %v3720, 1e-05
    %v3723 = vadd.f32 %v3721, 1e-05
    %v3724 = vrsqrt.pop %v3722
    %v3725 = vrsqrt.pop %v3723
    %v3726 = vmul.f32 %v3710, %v3724
    %v3727 = vmul.f32 %v3711, %v3725
    %v3728 = vlaneseq
    %v3729 = vshrl.u32 %v3728, 7
    %v3730 = vsub.s32 0, %v3729
    %v3731 = vrot.slane %v3700, %v3730
    %v3732 = vmul.f32 %v3726, %v3731
    %v3733 = vmul.f32 %v3727, %v3731
    %v3734 = vlaneseq
    %v3735 = vshrl.u32 %v3734, 7
    %v3736 = vsub.s32 0, %v3735
    %v3737 = vrot.slane %v3701, %v3736
    %v3738 = vadd.f32 %v3732, %v3737
    %v3739 = vadd.f32 %v3733, %v3737
    %s3740 = scalar_lea.vmem %s6, 32
    %v3741 = vld [vmem:[%s3740] sm:$0xff]
    %v3742 = vld [vmem:[%s3740 + $0x8] sm:$0xff]
    %v3743 = vld [vmem:[%s3740 + $0x10] sm:$0xff]
    %v3744 = vld [vmem:[%s3740 + $0x18] sm:$0xff]
    %v3745 = vld [vmem:[%s3 + $0xf] sm:$0x1]
    %v3746 = vlaneseq
    %v3747 = vshrl.u32 %v3746, 7
    %v3748 = vsub.s32 0, %v3747
    %v3749 = vrot.slane %v3745, %v3748
    %v3751 = vsel %vm156, %v3738, 0
    %v3754 = vsel %vm156, %v3739, 0
    %3756 = vmatprep.subr.mxu0 0.0
    %3757 = vmatpush1.msra.mxu0 %v3741
    %3758 = vmatprep.subr.mxu0 0.0
    %3759 = vmatpush1.msra.mxu0 %v3742
    %3760 = vmatprep.subr.mxu0 0.0
    %3761 = vmatpush1.msra.mxu0 %v3743
    %3762 = vmatprep.subr.mxu0 0.0
    %3763 = vmatpush1.msra.mxu0 %v3744
    %3764 = vmatprep.subr.mxu0 0.0
    %3765 = vmatpush1.msra.mxu0 0.0
    %3766 = vmatprep.subr.mxu0 0.0
    %3767 = vmatpush1.msra.mxu0 0.0
    %3768 = vmatprep.subr.mxu0 0.0
    %3769 = vmatpush1.msra.mxu0 0.0
    %3770 = vmatprep.subr.mxu0 0.0
    %3771 = vmatpush1.msra.mxu0 0.0
    %3772 = vmatprep.subr.mxu0 0.0
    %3773 = vmatpush1.msra.mxu0 0.0
    %3774 = vmatprep.subr.mxu0 0.0
    %3775 = vmatpush1.msra.mxu0 0.0
    %3776 = vmatprep.subr.mxu0 0.0
    %3777 = vmatpush1.msra.mxu0 0.0
    %3778 = vmatprep.subr.mxu0 0.0
    %3779 = vmatpush1.msra.mxu0 0.0
    %3780 = vmatprep.subr.mxu0 0.0
    %3781 = vmatpush1.msra.mxu0 0.0
    %3782 = vmatprep.subr.mxu0 0.0
    %3783 = vmatpush1.msra.mxu0 0.0
    %3784 = vmatprep.subr.mxu0 0.0
    %3785 = vmatpush1.msra.mxu0 0.0
    %3786 = vmatprep.subr.mxu0 0.0
    %3787 = vmatpush1.msra.mxu0 0.0
    %3788 = vmatprep.subr.mxu0 0.0
    %3789 = vmatpush1.msra.mxu0 0.0
    %3790 = vmatprep.subr.mxu0 0.0
    %3791 = vmatpush1.msra.mxu0 0.0
    %3792 = vmatprep.subr.mxu0 0.0
    %3793 = vmatpush1.msra.mxu0 0.0
    %3794 = vmatprep.subr.mxu0 0.0
    %3795 = vmatpush1.msra.mxu0 0.0
    %3796 = vmatprep.subr.mxu0 0.0
    %3797 = vmatpush1.msra.mxu0 0.0
    %3798 = vmatprep.subr.mxu0 0.0
    %3799 = vmatpush1.msra.mxu0 0.0
    %3800 = vmatprep.subr.mxu0 0.0
    %3801 = vmatpush1.msra.mxu0 0.0
    %3802 = vmatprep.subr.mxu0 0.0
    %3803 = vmatpush1.msra.mxu0 0.0
    %3804 = vmatprep.subr.mxu0 0.0
    %3805 = vmatpush1.msra.mxu0 0.0
    %3806 = vmatprep.subr.mxu0 0.0
    %3807 = vmatpush1.msra.mxu0 0.0
    %3808 = vmatprep.subr.mxu0 0.0
    %3809 = vmatpush1.msra.mxu0 0.0
    %3810 = vmatprep.subr.mxu0 0.0
    %3811 = vmatpush1.msra.mxu0 0.0
    %3812 = vmatprep.subr.mxu0 0.0
    %3813 = vmatpush1.msra.mxu0 0.0
    %3814 = vmatprep.subr.mxu0 0.0
    %3815 = vmatpush1.msra.mxu0 0.0
    %3816 = vmatprep.subr.mxu0 0.0
    %3817 = vmatpush1.msra.mxu0 0.0
    %3818 = vmatprep.subr.mxu0 0.0
    %3819 = vmatpush1.msra.mxu0 0.0
    %3820 = vmatprep.mubr.f32.mxu0 0.0
    %3821 = vmatmul.mubr.f32.gmra.mrb[0].mxu0 %v3751
    %v3822 = vpop.f32.mrb[0].mxu0
    %v3823 = vadd.f32 %v3749, %v3822
    %v3824 = vpop.f32.mrb[0].mxu0
    %3825 = vmatprep.mubr.f32.mxu0 0.0
    %3826 = vmatmul.mubr.f32.gmra.mrb[0].mxu0 %v3754
    %v3827 = vpop.f32.mrb[0].mxu0
    %v3828 = vadd.f32 %v3749, %v3827
    %v3829 = vpop.f32.mrb[0].mxu0
    %3830 = vdwg.mxu0
    %v3831 = vmul.f32 %v3823, 0.5
    %v3832 = vmul.f32 %v3828, 0.5
    %v3833 = vmul.f32 %v3823, 0.70710677
    %v3834 = vmul.f32 %v3828, 0.70710677
    %vm3835 = vcmp.ge.f32.partialorder %v3833, 0.0
    %vm3836 = vcmp.ge.f32.partialorder %v3834, 0.0
    %v3837 = vsel %vm3835, 1.0, -1.0
    %v3838 = vsel %vm3836, 1.0, -1.0
    %v3839 = vand.u32 2147483647, %v3833
    %v3840 = vand.u32 2147483647, %v3834
    %v3841 = vmul.f32 %v3839, 0.3275911
    %v3842 = vmul.f32 %v3840, 0.3275911
    %v3843 = vadd.f32 %v3841, 1.0
    %v3844 = vadd.f32 %v3842, 1.0
    %v3845 = vrcp.pop %v3843
    %v3846 = vrcp.pop %v3844
    %v3847 = vmul.f32 %v3843, %v3845
    %v3848 = vmul.f32 %v3844, %v3846
    %v3849 = vsub.f32 2.0, %v3847
    %v3850 = vsub.f32 2.0, %v3848
    %v3851 = vmul.f32 %v3845, %v3849
    %v3852 = vmul.f32 %v3846, %v3850
    %v3853 = vmul.f32 %v3851, 1.0614054
    %v3854 = vmul.f32 %v3852, 1.0614054
    %v3855 = vadd.f32 %v3853, -1.4531521
    %v3856 = vadd.f32 %v3854, -1.4531521
    %v3857 = vmul.f32 %v3855, %v3851
    %v3858 = vmul.f32 %v3856, %v3852
    %v3859 = vadd.f32 %v3857, 1.4214138
    %v3860 = vadd.f32 %v3858, 1.4214138
    %v3861 = vmul.f32 %v3859, %v3851
    %v3862 = vmul.f32 %v3860, %v3852
    %v3863 = vadd.f32 %v3861, -0.28449672
    %v3864 = vadd.f32 %v3862, -0.28449672
    %v3865 = vmul.f32 %v3863, %v3851
    %v3866 = vmul.f32 %v3864, %v3852
    %v3867 = vadd.f32 %v3865, 0.2548296
    %v3868 = vadd.f32 %v3866, 0.2548296
    %v3869 = vmul.f32 %v3867, %v3851
    %v3870 = vmul.f32 %v3868, %v3852
    %v3871 = vsub.f32 0.0, %v3839
    %v3872 = vsub.f32 0.0, %v3840
    %v3873 = vmul.f32 %v3871, %v3839
    %v3874 = vmul.f32 %v3872, %v3840
    %v3875 = vmul.f32 %v3873, 1.442695
    %v3876 = vpow.pop %v3875
    %v3877 = vmul.f32 %v3874, 1.442695
    %v3878 = vpow.pop %v3877
    %v3879 = vmul.f32 %v3869, %v3876
    %v3880 = vmul.f32 %v3870, %v3878
    %v3881 = vsub.f32 1.0, %v3879
    %v3882 = vsub.f32 1.0, %v3880
    %v3883 = vmul.f32 %v3837, %v3881
    %v3884 = vmul.f32 %v3838, %v3882
    %v3885 = vadd.f32 %v3883, 1.0
    %v3886 = vadd.f32 %v3884, 1.0
    %v3887 = vmul.f32 %v3831, %v3885
    %v3888 = vmul.f32 %v3832, %v3886
    %s3889 = scalar_lea.vmem %s7, 64
    %v3890 = vld [vmem:[%s3889] sm:$0xff]
    %v3891 = vld [vmem:[%s3889 + $0x8] sm:$0xff]
    %v3892 = vld [vmem:[%s3889 + $0x10] sm:$0xff]
    %v3893 = vld [vmem:[%s3889 + $0x18] sm:$0xff]
    %v3894 = vld [vmem:[%s3889 + $0x20] sm:$0xff]
    %v3895 = vld [vmem:[%s3889 + $0x28] sm:$0xff]
    %v3896 = vld [vmem:[%s3889 + $0x30] sm:$0xff]
    %v3897 = vld [vmem:[%s3889 + $0x38] sm:$0xff]
    %v3898 = vld [vmem:[%s3 + $0x10] sm:$0x1]
    %v3899 = vlaneseq
    %v3900 = vshrl.u32 %v3899, 7
    %v3901 = vsub.s32 0, %v3900
    %v3902 = vrot.slane %v3898, %v3901
    %v3904 = vsel %vm2004, %v3887, 0
    %v3907 = vsel %vm2004, %v3888, 0
    %3909 = vmatprep.subr.mxu0 0.0
    %3910 = vmatpush1.msra.mxu0 %v3890
    %3911 = vmatprep.subr.mxu0 0.0
    %3912 = vmatpush1.msra.mxu0 %v3891
    %3913 = vmatprep.subr.mxu0 0.0
    %3914 = vmatpush1.msra.mxu0 %v3892
    %3915 = vmatprep.subr.mxu0 0.0
    %3916 = vmatpush1.msra.mxu0 %v3893
    %3917 = vmatprep.subr.mxu0 0.0
    %3918 = vmatpush1.msra.mxu0 %v3894
    %3919 = vmatprep.subr.mxu0 0.0
    %3920 = vmatpush1.msra.mxu0 %v3895
    %3921 = vmatprep.subr.mxu0 0.0
    %3922 = vmatpush1.msra.mxu0 %v3896
    %3923 = vmatprep.subr.mxu0 0.0
    %3924 = vmatpush1.msra.mxu0 %v3897
    %3925 = vmatprep.subr.mxu0 0.0
    %3926 = vmatpush1.msra.mxu0 0.0
    %3927 = vmatprep.subr.mxu0 0.0
    %3928 = vmatpush1.msra.mxu0 0.0
    %3929 = vmatprep.subr.mxu0 0.0
    %3930 = vmatpush1.msra.mxu0 0.0
    %3931 = vmatprep.subr.mxu0 0.0
    %3932 = vmatpush1.msra.mxu0 0.0
    %3933 = vmatprep.subr.mxu0 0.0
    %3934 = vmatpush1.msra.mxu0 0.0
    %3935 = vmatprep.subr.mxu0 0.0
    %3936 = vmatpush1.msra.mxu0 0.0
    %3937 = vmatprep.subr.mxu0 0.0
    %3938 = vmatpush1.msra.mxu0 0.0
    %3939 = vmatprep.subr.mxu0 0.0
    %3940 = vmatpush1.msra.mxu0 0.0
    %3941 = vmatprep.subr.mxu0 0.0
    %3942 = vmatpush1.msra.mxu0 0.0
    %3943 = vmatprep.subr.mxu0 0.0
    %3944 = vmatpush1.msra.mxu0 0.0
    %3945 = vmatprep.subr.mxu0 0.0
    %3946 = vmatpush1.msra.mxu0 0.0
    %3947 = vmatprep.subr.mxu0 0.0
    %3948 = vmatpush1.msra.mxu0 0.0
    %3949 = vmatprep.subr.mxu0 0.0
    %3950 = vmatpush1.msra.mxu0 0.0
    %3951 = vmatprep.subr.mxu0 0.0
    %3952 = vmatpush1.msra.mxu0 0.0
    %3953 = vmatprep.subr.mxu0 0.0
    %3954 = vmatpush1.msra.mxu0 0.0
    %3955 = vmatprep.subr.mxu0 0.0
    %3956 = vmatpush1.msra.mxu0 0.0
    %3957 = vmatprep.subr.mxu0 0.0
    %3958 = vmatpush1.msra.mxu0 0.0
    %3959 = vmatprep.subr.mxu0 0.0
    %3960 = vmatpush1.msra.mxu0 0.0
    %3961 = vmatprep.subr.mxu0 0.0
    %3962 = vmatpush1.msra.mxu0 0.0
    %3963 = vmatprep.subr.mxu0 0.0
    %3964 = vmatpush1.msra.mxu0 0.0
    %3965 = vmatprep.subr.mxu0 0.0
    %3966 = vmatpush1.msra.mxu0 0.0
    %3967 = vmatprep.subr.mxu0 0.0
    %3968 = vmatpush1.msra.mxu0 0.0
    %3969 = vmatprep.subr.mxu0 0.0
    %3970 = vmatpush1.msra.mxu0 0.0
    %3971 = vmatprep.subr.mxu0 0.0
    %3972 = vmatpush1.msra.mxu0 0.0
    %3973 = vmatprep.mubr.f32.mxu0 0.0
    %3974 = vmatmul.mubr.f32.gmra.mrb[0].mxu0 %v3904
    %v3975 = vpop.f32.mrb[0].mxu0
    %v3976 = vadd.f32 %v3902, %v3975
    %v3977 = vpop.f32.mrb[0].mxu0
    %3978 = vmatprep.mubr.f32.mxu0 0.0
    %3979 = vmatmul.mubr.f32.gmra.mrb[0].mxu0 %v3907
    %v3980 = vpop.f32.mrb[0].mxu0
    %v3981 = vadd.f32 %v3902, %v3980
    %v3982 = vpop.f32.mrb[0].mxu0
    %3983 = vdwg.mxu0
    %v3984 = vadd.f32 %v3738, %v3976
    %v3985 = vadd.f32 %v3739, %v3981
    %v3986 = vld [vmem:[%s3 + $0x11] sm:$0x1]
    %v3987 = vld [vmem:[%s3 + $0x12] sm:$0x1]
    %v3988 = vsel %vm156, %v3984, 0.0
    %3989 = vadd.xlane.f32.xlu0 %v3988
    %v3990 = vpop.xlane.xlu0 %3989
    %v3991 = vsel %vm156, %v3985, 0.0
    %3992 = vadd.xlane.f32.xlu0 %v3991
    %v3993 = vpop.xlane.xlu0 %3992
    %v3994 = vmul.f32 %v3990, %v163
    %v3995 = vmul.f32 %v3993, %v163
    %v3996 = vsub.f32 %v3984, %v3994
    %v3997 = vsub.f32 %v3985, %v3995
    %v3998 = vmul.f32 %v3996, %v3996
    %v3999 = vmul.f32 %v3997, %v3997
    %v4000 = vsel %vm156, %v3998, 0.0
    %4001 = vadd.xlane.f32.xlu0 %v4000
    %v4002 = vpop.xlane.xlu0 %4001
    %v4003 = vsel %vm156, %v3999, 0.0
    %4004 = vadd.xlane.f32.xlu0 %v4003
    %v4005 = vpop.xlane.xlu0 %4004
    %v4006 = vmul.f32 %v4002, %v163
    %v4007 = vmul.f32 %v4005, %v163
    %v4008 = vadd.f32 %v4006, 1e-05
    %v4009 = vadd.f32 %v4007, 1e-05
    %v4010 = vrsqrt.pop %v4008
    %v4011 = vrsqrt.pop %v4009
    %v4012 = vmul.f32 %v3996, %v4010
    %v4013 = vmul.f32 %v3997, %v4011
    %v4014 = vlaneseq
    %v4015 = vshrl.u32 %v4014, 7
    %v4016 = vsub.s32 0, %v4015
    %v4017 = vrot.slane %v3986, %v4016
    %v4018 = vmul.f32 %v4012, %v4017
    %v4019 = vmul.f32 %v4013, %v4017
    %v4020 = vlaneseq
    %v4021 = vshrl.u32 %v4020, 7
    %v4022 = vsub.s32 0, %v4021
    %v4023 = vrot.slane %v3987, %v4022
    %v4024 = vadd.f32 %v4018, %v4023
    %v4025 = vadd.f32 %v4019, %v4023
    %v4026 = vld [vmem:[%s8] sm:$0xff]
    %v4027 = vld [vmem:[%s8 + $0x8] sm:$0xff]
    %v4028 = vld [vmem:[%s8 + $0x10] sm:$0xff]
    %v4029 = vld [vmem:[%s8 + $0x18] sm:$0xff]
    %v4030 = vld [vmem:[%s3 + $0x2] sm:$0x1]
    %v4031 = vlaneseq
    %v4032 = vshrl.u32 %v4031, 7
    %v4033 = vsub.s32 0, %v4032
    %v4034 = vrot.slane %v4030, %v4033
    %v4037 = vrot.slane %v4025, 7
    %vm4038 = vcmask 1041409
    %v4039 = vsel %vm4038, %v4037, %v4024
    %v4040 = vsel %vm156, %v4039, 0
    %4042 = vmatprep.subr.mxu0 0.0
    %4043 = vmatpush1.msra.mxu0 %v4026
    %4044 = vmatprep.subr.mxu0 0.0
    %4045 = vmatpush1.msra.mxu0 %v4027
    %4046 = vmatprep.subr.mxu0 0.0
    %4047 = vmatpush1.msra.mxu0 %v4028
    %4048 = vmatprep.subr.mxu0 0.0
    %4049 = vmatpush1.msra.mxu0 %v4029
    %4050 = vmatprep.subr.mxu0 0.0
    %4051 = vmatpush1.msra.mxu0 0.0
    %4052 = vmatprep.subr.mxu0 0.0
    %4053 = vmatpush1.msra.mxu0 0.0
    %4054 = vmatprep.subr.mxu0 0.0
    %4055 = vmatpush1.msra.mxu0 0.0
    %4056 = vmatprep.subr.mxu0 0.0
    %4057 = vmatpush1.msra.mxu0 0.0
    %4058 = vmatprep.subr.mxu0 0.0
    %4059 = vmatpush1.msra.mxu0 0.0
    %4060 = vmatprep.subr.mxu0 0.0
    %4061 = vmatpush1.msra.mxu0 0.0
    %4062 = vmatprep.subr.mxu0 0.0
    %4063 = vmatpush1.msra.mxu0 0.0
    %4064 = vmatprep.subr.mxu0 0.0
    %4065 = vmatpush1.msra.mxu0 0.0
    %4066 = vmatprep.subr.mxu0 0.0
    %4067 = vmatpush1.msra.mxu0 0.0
    %4068 = vmatprep.subr.mxu0 0.0
    %4069 = vmatpush1.msra.mxu0 0.0
    %4070 = vmatprep.subr.mxu0 0.0
    %4071 = vmatpush1.msra.mxu0 0.0
    %4072 = vmatprep.subr.mxu0 0.0
    %4073 = vmatpush1.msra.mxu0 0.0
    %4074 = vmatprep.subr.mxu0 0.0
    %4075 = vmatpush1.msra.mxu0 0.0
    %4076 = vmatprep.subr.mxu0 0.0
    %4077 = vmatpush1.msra.mxu0 0.0
    %4078 = vmatprep.subr.mxu0 0.0
    %4079 = vmatpush1.msra.mxu0 0.0
    %4080 = vmatprep.subr.mxu0 0.0
    %4081 = vmatpush1.msra.mxu0 0.0
    %4082 = vmatprep.subr.mxu0 0.0
    %4083 = vmatpush1.msra.mxu0 0.0
    %4084 = vmatprep.subr.mxu0 0.0
    %4085 = vmatpush1.msra.mxu0 0.0
    %4086 = vmatprep.subr.mxu0 0.0
    %4087 = vmatpush1.msra.mxu0 0.0
    %4088 = vmatprep.subr.mxu0 0.0
    %4089 = vmatpush1.msra.mxu0 0.0
    %4090 = vmatprep.subr.mxu0 0.0
    %4091 = vmatpush1.msra.mxu0 0.0
    %4092 = vmatprep.subr.mxu0 0.0
    %4093 = vmatpush1.msra.mxu0 0.0
    %4094 = vmatprep.subr.mxu0 0.0
    %4095 = vmatpush1.msra.mxu0 0.0
    %4096 = vmatprep.subr.mxu0 0.0
    %4097 = vmatpush1.msra.mxu0 0.0
    %4098 = vmatprep.subr.mxu0 0.0
    %4099 = vmatpush1.msra.mxu0 0.0
    %4100 = vmatprep.subr.mxu0 0.0
    %4101 = vmatpush1.msra.mxu0 0.0
    %4102 = vmatprep.subr.mxu0 0.0
    %4103 = vmatpush1.msra.mxu0 0.0
    %4104 = vmatprep.subr.mxu0 0.0
    %4105 = vmatpush1.msra.mxu0 0.0
    %4106 = vmatprep.mubr.f32.mxu0 0.0
    %4107 = vmatmul.mubr.f32.gmra.mrb[0].mxu0 %v4040
    %v4108 = vpop.f32.mrb[0].mxu0
    %v4109 = vadd.f32 %v4034, %v4108
    %v4110 = vpop.f32.mrb[0].mxu0
    %4111 = vdwg.mxu0
    %4112 = vst [vmem:[#allocation2] sm:$0x3] %v4109
    // Predicated region
    $region38: #{codebert_forward.1} parent=1 // pred_check
      _
    $region39: #{codebert_forward.1} parent=1 // pred_check_branch
      %4114 = sbr.rel (0) target = $region41
    $region40: #{codebert_forward.1} parent=1 // pred_region
      %s4116 = ssub.s32 32, 32
      %4117 = vsyncadd [#allocation3], %s4116
      %s4119 = sshll.u32 [#allocation2], 4
      %s4120 = int_to_ptr.vmem [resolvable:$true] %s4119
      %4122 = dma.vmem_to_hbm [thread:$0]  %s4120, 32, %s9, [#allocation3]
    $region41: #{codebert_forward.1} parent=1 // pred_fallthru
      _
    // Predicated region
    $region42: #{codebert_forward.1} parent=1 // pred_check
      _
    $region43: #{codebert_forward.1} parent=1 // pred_check_branch
      %4124 = sbr.rel (0) target = $region45
    $region44: #{codebert_forward.1} parent=1 // pred_region
      %4125 = dma.done [#allocation3], 32
    $region45: #{codebert_forward.1} parent=1 // pred_fallthru
      _
    %4126 = vsyncpa [#allocation3], 1

</llo_original>
